<compile_context>
chip_gen: v5e
topology: v5e:2x2
jax: 0.10.0
libtpu: 0.0.40
codegen_flags: <defaults>
</compile_context>

<pallas_src>
import functools
import math

import jax
import jax.numpy as jnp
from jax import lax
from jax.experimental import pallas as pl
from jax.experimental.pallas import tpu as pltpu


def _pick_row_tile(m, pref=256):
    """Largest sublane-aligned divisor of m that is <= pref, preferring a tile
    that leaves >= 2 grid steps (so v7x can split work across both TCs)."""
    candidates = [t for t in (512, 256, 128, 64, 32, 16, 8)
                  if t <= pref and m % t == 0]
    for t in candidates:
        if m // t >= 2:
            return t
    if candidates:
        return candidates[0]
    return m  # TODO(synk): pad + pl.cdiv grid for ragged M at large scale.


def _pick_tile(n, pref):
    for t in (1024, 512, 256, 128, 64, 32, 16, 8):
        if t <= pref and n % t == 0:
            return t
    return n


# ---------------------------------------------------------------------------
# Kernel 1: fused Linear (+ bias). Used for the (fused) Q/K/V projections.
# ---------------------------------------------------------------------------
def _linear_kernel(x_ref, w_ref, b_ref, o_ref):
    acc = jnp.dot(x_ref[...], w_ref[...], preferred_element_type=jnp.float32)
    acc = acc + b_ref[...]
    o_ref[...] = acc.astype(o_ref.dtype)


def linear(x, w, b):
    """x: (M, K); w: (K, N); b: (N,)."""
    m, k = x.shape
    _, n = w.shape
    tm = _pick_row_tile(m)
    cost = pl.CostEstimate(
        flops=2 * m * k * n,
        transcendentals=0,
        bytes_accessed=4 * (m * k + k * n + m * n + n),
    )
    return pl.pallas_call(
        _linear_kernel,
        out_shape=jax.ShapeDtypeStruct((m, n), x.dtype),
        grid_spec=pltpu.PrefetchScalarGridSpec(
            num_scalar_prefetch=0,
            grid=(m // tm,),
            in_specs=[
                pl.BlockSpec((tm, k), lambda i: (i, 0)),
                pl.BlockSpec((k, n), lambda i: (0, 0)),   # weights resident
                pl.BlockSpec((1, n), lambda i: (0, 0)),   # bias resident
            ],
            out_specs=pl.BlockSpec((tm, n), lambda i: (i, 0)),
        ),
        compiler_params=pltpu.CompilerParams(
            dimension_semantics=("parallel",),
        ),
        cost_estimate=cost,
    )(x, w, b.reshape(1, n))


# ---------------------------------------------------------------------------
# Kernel 2: fused scaled-dot-product attention.
#   One batch element per grid step, ALL heads processed together via batched
#   dot_general. Mask (if any) is (B, Sq, Sk) and broadcast over heads inside
#   the kernel (no head-broadcast DMA).
# ---------------------------------------------------------------------------
def _attn_kernel(*refs, scale, has_mask):
    if has_mask:
        m_ref, q_ref, k_ref, v_ref, o_ref, w_ref = refs
    else:
        q_ref, k_ref, v_ref, o_ref, w_ref = refs

    q = q_ref[0]                                      # (H, Sq, Dh)
    k = k_ref[0]                                      # (H, Sk, Dh)
    v = v_ref[0]                                      # (H, Sk, Dh)

    scores = jnp.einsum("hqd,hkd->hqk", q, k,
                        preferred_element_type=jnp.float32) * scale
    if has_mask:
        msk = m_ref[0]                                # (Sq, Sk) int32
        scores = jnp.where(msk[None, :, :] == 0, jnp.float32(-1e9), scores)

    s_max = jnp.max(scores, axis=-1, keepdims=True)
    e = jnp.exp(scores - s_max)
    row_sum = jnp.sum(e, axis=-1, keepdims=True)
    probs = e * pl.reciprocal(row_sum, approx=True)   # EUP reciprocal + VPU mul

    w_ref[0] = probs.astype(w_ref.dtype)
    o_ref[0] = jnp.einsum("hqk,hkd->hqd", probs.astype(v.dtype), v,
                          preferred_element_type=jnp.float32).astype(o_ref.dtype)


def scaled_dot_product_attention(q, k, v, mask, *, scale):
    """q: (B, H, Sq, Dh); k, v: (B, H, Sk, Dh); mask: (B, Sq, Sk) int or None."""
    b, h, sq, dh = q.shape
    sk = k.shape[2]
    has_mask = mask is not None

    in_specs = []
    args = []
    if has_mask:
        in_specs.append(pl.BlockSpec((1, sq, sk), lambda bb: (bb, 0, 0)))
        args.append(mask.astype(jnp.int32))
    in_specs += [
        pl.BlockSpec((1, h, sq, dh), lambda bb: (bb, 0, 0, 0)),
        pl.BlockSpec((1, h, sk, dh), lambda bb: (bb, 0, 0, 0)),
        pl.BlockSpec((1, h, sk, dh), lambda bb: (bb, 0, 0, 0)),
    ]
    args += [q, k, v]

    cost = pl.CostEstimate(
        flops=4 * b * h * sq * sk * dh,
        transcendentals=b * h * sq * sk,
        bytes_accessed=4 * b * h * (2 * sq * dh + 2 * sk * dh + sq * sk)
        + (4 * b * sq * sk if has_mask else 0),
    )
    return pl.pallas_call(
        functools.partial(_attn_kernel, scale=scale, has_mask=has_mask),
        out_shape=(
            jax.ShapeDtypeStruct((b, h, sq, dh), q.dtype),
            jax.ShapeDtypeStruct((b, h, sq, sk), jnp.float32),
        ),
        grid_spec=pltpu.PrefetchScalarGridSpec(
            num_scalar_prefetch=0,
            grid=(b,),
            in_specs=in_specs,
            out_specs=(
                pl.BlockSpec((1, h, sq, dh), lambda bb: (bb, 0, 0, 0)),
                pl.BlockSpec((1, h, sq, sk), lambda bb: (bb, 0, 0, 0)),
            ),
        ),
        compiler_params=pltpu.CompilerParams(
            dimension_semantics=("parallel",),
        ),
        cost_estimate=cost,
    )(*args)


# ---------------------------------------------------------------------------
# Kernel 3: fused output projection + residual add + LayerNorm.
#   y = LN(residual + ctx @ Wo + bo)
# ---------------------------------------------------------------------------
def _proj_add_ln_kernel(ctx_ref, res_ref, w_ref, b_ref, g_ref, be_ref, o_ref,
                        *, eps):
    proj = jnp.dot(ctx_ref[...], w_ref[...],
                   preferred_element_type=jnp.float32) + b_ref[...]
    s = res_ref[...].astype(jnp.float32) + proj
    mean = jnp.mean(s, axis=-1, keepdims=True)
    c = s - mean
    var = jnp.mean(c * c, axis=-1, keepdims=True)       # unbiased=False
    inv = lax.rsqrt(var + eps)
    o_ref[...] = (g_ref[...] * (c * inv) + be_ref[...]).astype(o_ref.dtype)


def proj_add_layer_norm(ctx, res, w, bias, gamma, beta, *, eps):
    m, k = ctx.shape
    n = w.shape[1]
    tm = _pick_row_tile(m)
    cost = pl.CostEstimate(
        flops=2 * m * k * n + 12 * m * n,
        transcendentals=m,
        bytes_accessed=4 * (2 * m * k + k * n + m * n + 3 * n),
    )
    return pl.pallas_call(
        functools.partial(_proj_add_ln_kernel, eps=eps),
        out_shape=jax.ShapeDtypeStruct((m, n), ctx.dtype),
        grid_spec=pltpu.PrefetchScalarGridSpec(
            num_scalar_prefetch=0,
            grid=(m // tm,),
            in_specs=[
                pl.BlockSpec((tm, k), lambda i: (i, 0)),
                pl.BlockSpec((tm, n), lambda i: (i, 0)),
                pl.BlockSpec((k, n), lambda i: (0, 0)),   # Wo resident
                pl.BlockSpec((1, n), lambda i: (0, 0)),
                pl.BlockSpec((1, n), lambda i: (0, 0)),
                pl.BlockSpec((1, n), lambda i: (0, 0)),
            ],
            out_specs=pl.BlockSpec((tm, n), lambda i: (i, 0)),
        ),
        compiler_params=pltpu.CompilerParams(
            dimension_semantics=("parallel",),
        ),
        cost_estimate=cost,
    )(ctx, res, w, bias.reshape(1, n), gamma.reshape(1, n), beta.reshape(1, n))


# ---------------------------------------------------------------------------
# Kernel 4: fused FFN (w1 + ReLU + w2) + residual add + LayerNorm.
#   d_ff is tiled as an "arbitrary" reduction grid axis with an f32 VMEM
#   accumulator; no (M, d_ff) intermediate ever hits HBM.
# ---------------------------------------------------------------------------
def _ffn_add_ln_kernel(x_ref, w1_ref, b1_ref, w2_ref, b2_ref, g_ref, be_ref,
                       o_ref, acc_ref, *, eps):
    j = pl.program_id(1)

    @pl.when(j == 0)
    def _():
        acc_ref[...] = jnp.zeros_like(acc_ref)

    h = jnp.dot(x_ref[...], w1_ref[...],
                preferred_element_type=jnp.float32) + b1_ref[...]
    h = jnp.maximum(h, 0.0)
    acc_ref[...] += jnp.dot(h, w2_ref[...], preferred_element_type=jnp.float32)

    @pl.when(j == pl.num_programs(1) - 1)
    def _():
        s = x_ref[...].astype(jnp.float32) + acc_ref[...] + b2_ref[...]
        mean = jnp.mean(s, axis=-1, keepdims=True)
        c = s - mean
        var = jnp.mean(c * c, axis=-1, keepdims=True)
        inv = lax.rsqrt(var + eps)
        o_ref[...] = (g_ref[...] * (c * inv) + be_ref[...]).astype(o_ref.dtype)


def ffn_add_layer_norm(x, w1, b1, w2, b2, gamma, beta, *, eps=1e-12):
    b_, s_, d = x.shape
    m = b_ * s_
    d_ff = w1.shape[1]
    tm = _pick_row_tile(m)
    tdf = _pick_tile(d_ff, 512)
    cost = pl.CostEstimate(
        flops=4 * m * d * d_ff + 14 * m * d,
        transcendentals=m,
        bytes_accessed=4 * (2 * m * d + 2 * d * d_ff + d_ff + 3 * d),
    )
    out = pl.pallas_call(
        functools.partial(_ffn_add_ln_kernel, eps=eps),
        out_shape=jax.ShapeDtypeStruct((m, d), x.dtype),
        grid_spec=pltpu.PrefetchScalarGridSpec(
            num_scalar_prefetch=0,
            grid=(m // tm, d_ff // tdf),
            in_specs=[
                pl.BlockSpec((tm, d), lambda i, j: (i, 0)),
                pl.BlockSpec((d, tdf), lambda i, j: (0, j)),
                pl.BlockSpec((1, tdf), lambda i, j: (0, j)),
                pl.BlockSpec((tdf, d), lambda i, j: (j, 0)),
                pl.BlockSpec((1, d), lambda i, j: (0, 0)),
                pl.BlockSpec((1, d), lambda i, j: (0, 0)),
                pl.BlockSpec((1, d), lambda i, j: (0, 0)),
            ],
            out_specs=pl.BlockSpec((tm, d), lambda i, j: (i, 0)),
            scratch_shapes=[pltpu.VMEM((tm, d), jnp.float32)],
        ),
        compiler_params=pltpu.CompilerParams(
            dimension_semantics=("parallel", "arbitrary"),
        ),
        cost_estimate=cost,
    )(x.reshape(m, d), w1, b1.reshape(1, d_ff), w2, b2.reshape(1, d),
      gamma.reshape(1, d), beta.reshape(1, d))
    return out.reshape(b_, s_, d)


# ---------------------------------------------------------------------------
# Module-level wrappers
# ---------------------------------------------------------------------------
def multi_head_attention(x_q, x_kv, residual, p, mask, gamma, beta, *,
                         num_heads, is_self_attn, eps=1e-12):
    b, sq, d_in = x_q.shape
    _, sk, _ = x_kv.shape
    d_model = p["wo"].shape[0]
    hd = d_model // num_heads

    xq_flat = x_q.reshape(b * sq, d_in)
    if is_self_attn:
        # one fused QKV matmul over the decoder activations
        qkv = linear(xq_flat, p["wqkv"], p["bqkv"])
        q = qkv[:, :d_model]
        k = qkv[:, d_model:2 * d_model]
        v = qkv[:, 2 * d_model:]
    else:
        # Q from decoder stream, fused K|V matmul over the encoder memory
        xkv_flat = x_kv.reshape(b * sk, d_in)
        q = linear(xq_flat, p["wqkv"][:, :d_model], p["bqkv"][:d_model])
        kv = linear(xkv_flat, p["wqkv"][:, d_model:], p["bqkv"][d_model:])
        k = kv[:, :d_model]
        v = kv[:, d_model:]

    # head split: (B, S, H, Dh) -> (B, H, S, Dh)
    # TODO(synk): head split/merge transposes still go through XLA; a
    #             lane-sliced BlockSpec is only worthwhile with Dh >= 128.
    q = q.reshape(b, sq, num_heads, hd).transpose(0, 2, 1, 3)
    k = k.reshape(b, sk, num_heads, hd).transpose(0, 2, 1, 3)
    v = v.reshape(b, sk, num_heads, hd).transpose(0, 2, 1, 3)

    ctx, attn_w = scaled_dot_product_attention(
        q, k, v, mask, scale=1.0 / math.sqrt(hd))

    ctx = ctx.transpose(0, 2, 1, 3).reshape(b * sq, d_model)
    out = proj_add_layer_norm(ctx, residual.reshape(b * sq, d_model),
                              p["wo"], p["bo"], gamma, beta, eps=eps)
    # TODO(synk): nn.Dropout (attention/output) is identity here (eval mode).
    return out.reshape(b, sq, d_model), attn_w


def decoder_layer(dec_inputs, enc_outputs, src_mask, tgt_mask, params, *,
                  num_heads):
    # masked self-attention + out-proj + Add&Norm (fused epilogue)
    x1, dec_attn_w = multi_head_attention(
        dec_inputs, dec_inputs, dec_inputs, params["self_attn"], tgt_mask,
        params["ln0_g"], params["ln0_b"], num_heads=num_heads,
        is_self_attn=True)

    # cross-attention + out-proj + Add&Norm (fused epilogue)
    x2, dec_enc_attn_w = multi_head_attention(
        x1, enc_outputs, x1, params["cross_attn"], src_mask,
        params["ln1_g"], params["ln1_b"], num_heads=num_heads,
        is_self_attn=False)

    # position-wise FFN + Add&Norm, all fused in one kernel
    out = ffn_add_layer_norm(x2, params["w1"], params["b1"],
                             params["w2"], params["b2"],
                             params["ln2_g"], params["ln2_b"])
    return out, dec_attn_w, dec_enc_attn_w


# ---------------------------------------------------------------------------
# Pure-JAX reference (mirrors the PyTorch module, dropout off)
# ---------------------------------------------------------------------------
def _ref_layer_norm(x, g, b, eps=1e-12):
    mean = x.mean(-1, keepdims=True)
    var = ((x - mean) ** 2).mean(-1, keepdims=True)
    return g * (x - mean) / jnp.sqrt(var + eps) + b


def _ref_mha(x_q, x_kv, p, mask, num_heads):
    b, sq, _ = x_q.shape
    _, sk, _ = x_kv.shape
    d_model = p["wo"].shape[0]
    hd = d_model // num_heads
    wq = p["wqkv"][:, :d_model]
    wk = p["wqkv"][:, d_model:2 * d_model]
    wv = p["wqkv"][:, 2 * d_model:]
    bq, bk, bv = jnp.split(p["bqkv"], 3)
    q = (x_q @ wq + bq).reshape(b, sq, num_heads, hd).transpose(0, 2, 1, 3)
    k = (x_kv @ wk + bk).reshape(b, sk, num_heads, hd).transpose(0, 2, 1, 3)
    v = (x_kv @ wv + bv).reshape(b, sk, num_heads, hd).transpose(0, 2, 1, 3)
    scores = jnp.einsum("bhqd,bhkd->bhqk", q, k) / math.sqrt(hd)
    if mask is not None:
        scores = jnp.where(mask[:, None, :, :] == 0, -1e9, scores)
    w = jax.nn.softmax(scores, axis=-1)
    o = jnp.einsum("bhqk,bhkd->bhqd", w, v)
    o = o.transpose(0, 2, 1, 3).reshape(b, sq, d_model)
    return o @ p["wo"] + p["bo"], w


def _ref_decoder_layer(dec_inputs, enc_outputs, src_mask, tgt_mask, params,
                       num_heads):
    a, w_self = _ref_mha(dec_inputs, dec_inputs, params["self_attn"],
                         tgt_mask, num_heads)
    x = _ref_layer_norm(dec_inputs + a, params["ln0_g"], params["ln0_b"])
    c, w_cross = _ref_mha(x, enc_outputs, params["cross_attn"], src_mask,
                          num_heads)
    y = _ref_layer_norm(x + c, params["ln1_g"], params["ln1_b"])
    h = jnp.maximum(y @ params["w1"] + params["b1"], 0.0)
    f = h @ params["w2"] + params["b2"]
    out = _ref_layer_norm(y + f, params["ln2_g"], params["ln2_b"])
    return out, w_self, w_cross


# ---------------------------------------------------------------------------
# Parameter init (nn.Linear-style uniform, weights stored as (in, out);
# the per-MHA Q/K/V weights are stored pre-concatenated as wqkv/bqkv).
# ---------------------------------------------------------------------------
def _init_linear(key, d_in, d_out):
    kw, kb = jax.random.split(key)
    bound = 1.0 / math.sqrt(d_in)
    w = jax.random.uniform(kw, (d_in, d_out), jnp.float32, -bound, bound)
    b = jax.random.uniform(kb, (d_out,), jnp.float32, -bound, bound)
    return w, b


def _init_mha(key, d_model):
    ks = jax.random.split(key, 4)
    wq, bq = _init_linear(ks[0], d_model, d_model)
    wk, bk = _init_linear(ks[1], d_model, d_model)
    wv, bv = _init_linear(ks[2], d_model, d_model)
    wo, bo = _init_linear(ks[3], d_model, d_model)
    return dict(wqkv=jnp.concatenate([wq, wk, wv], axis=1),
                bqkv=jnp.concatenate([bq, bk, bv]),
                wo=wo, bo=bo)


if __name__ == "__main__":
    batch, seq_dec, seq_enc = 2, 8, 16
    d_model, num_heads, d_ff = 32, 4, 64

    key = jax.random.PRNGKey(0)
    k_self, k_cross, k_ff1, k_ff2, k_ln, k_dec, k_enc = jax.random.split(key, 7)

    w1, b1 = _init_linear(k_ff1, d_model, d_ff)
    w2, b2 = _init_linear(k_ff2, d_ff, d_model)
    kg = jax.random.split(k_ln, 6)
    params = dict(
        self_attn=_init_mha(k_self, d_model),
        cross_attn=_init_mha(k_cross, d_model),
        w1=w1, b1=b1, w2=w2, b2=b2,
        ln0_g=1.0 + 0.1 * jax.random.normal(kg[0], (d_model,), jnp.float32),
        ln0_b=0.1 * jax.random.normal(kg[1], (d_model,), jnp.float32),
        ln1_g=1.0 + 0.1 * jax.random.normal(kg[2], (d_model,), jnp.float32),
        ln1_b=0.1 * jax.random.normal(kg[3], (d_model,), jnp.float32),
        ln2_g=1.0 + 0.1 * jax.random.normal(kg[4], (d_model,), jnp.float32),
        ln2_b=0.1 * jax.random.normal(kg[5], (d_model,), jnp.float32),
    )

    dec_inputs = jax.random.normal(k_dec, (batch, seq_dec, d_model), jnp.float32)
    enc_outputs = jax.random.normal(k_enc, (batch, seq_enc, d_model), jnp.float32)

    # causal target mask (1 = keep, 0 = masked); src_mask = None (no masking)
    tgt_mask = jnp.tril(jnp.ones((seq_dec, seq_dec), jnp.int32))
    tgt_mask = jnp.broadcast_to(tgt_mask[None], (batch, seq_dec, seq_dec))
    src_mask = None

    fwd = jax.jit(functools.partial(decoder_layer, num_heads=num_heads))
    out, dec_w, cross_w = fwd(dec_inputs, enc_outputs, src_mask, tgt_mask, params)
    out = jax.block_until_ready(out)

    ref_out, ref_dec_w, ref_cross_w = _ref_decoder_layer(
        dec_inputs, enc_outputs, src_mask, tgt_mask, params, num_heads)

    assert out.shape == (batch, seq_dec, d_model)
    assert dec_w.shape == (batch, num_heads, seq_dec, seq_dec)
    assert cross_w.shape == (batch, num_heads, seq_dec, seq_enc)
    # Tolerance allows for the EUP approximate-reciprocal softmax normalizer.
    tol = dict(atol=2e-3, rtol=2e-3)
    assert jnp.allclose(out, ref_out, **tol), "output mismatch"
    assert jnp.allclose(dec_w, ref_dec_w, **tol), "self-attn weights mismatch"
    assert jnp.allclose(cross_w, ref_cross_w, **tol), "cross-attn weights mismatch"

    print("KERNEL_OK")
</pallas_src>

<mosaic_0001>
module attributes {stable_mosaic.version = 11 : i64} {
  func.func @_linear_kernel(%arg0: i32, %arg1: memref<8x32xf32, #tpu.memory_space<vmem>>, %arg2: memref<32x96xf32, #tpu.memory_space<vmem>>, %arg3: memref<1x96xf32, #tpu.memory_space<vmem>>, %arg4: memref<8x96xf32, #tpu.memory_space<vmem>>) attributes {dimension_semantics = [#tpu.dimension_semantics<parallel>], iteration_bounds = array<i64: 2>, scalar_prefetch = 0 : i64, scratch_operands = 0 : i64, tpu.core_type = #tpu.core_type<tc>, window_params = [{transform_indices = @transform_0, window_bounds = array<i64: 8, 32>}, {pipeline_mode = #tpu.pipeline_mode<synchronous>, transform_indices = @transform_1, window_bounds = array<i64: 32, 96>}, {pipeline_mode = #tpu.pipeline_mode<synchronous>, transform_indices = @transform_2, window_bounds = array<i64: 1, 96>}, {transform_indices = @transform_3, window_bounds = array<i64: 8, 96>}]} {
    %c0 = arith.constant 0 : index
    %c0_0 = arith.constant 0 : index
    %0 = vector.load %arg1[%c0, %c0_0] : memref<8x32xf32, #tpu.memory_space<vmem>>, vector<8x32xf32>
    %c0_1 = arith.constant 0 : index
    %c0_2 = arith.constant 0 : index
    %1 = vector.load %arg2[%c0_1, %c0_2] : memref<32x96xf32, #tpu.memory_space<vmem>>, vector<32x96xf32>
    %cst = arith.constant dense<0.000000e+00> : vector<8x96xf32>
    %2 = tpu.matmul %0, %1, %cst {dimension_numbers = #tpu.dot_dimension_numbers<[1], [0], [0], [1], [0, 0, 1, 1], [], []>} : vector<8x32xf32>, vector<32x96xf32>, vector<8x96xf32> -> vector<8x96xf32>
    %c0_3 = arith.constant 0 : index
    %c0_4 = arith.constant 0 : index
    %3 = vector.load %arg3[%c0_3, %c0_4] : memref<1x96xf32, #tpu.memory_space<vmem>>, vector<1x96xf32>
    %4 = vector.broadcast %3 : vector<1x96xf32> to vector<8x96xf32>
    %5 = arith.addf %2, %4 : vector<8x96xf32>
    %c0_5 = arith.constant 0 : index
    %c0_6 = arith.constant 0 : index
    %6 = vector.load %arg4[%c0_5, %c0_6] : memref<8x96xf32, #tpu.memory_space<vmem>>, vector<8x96xf32>
    tpu.vector_store %arg4[%c0_5, %c0_6], %5 {strides = array<i32>} : memref<8x96xf32, #tpu.memory_space<vmem>>, vector<8x96xf32>,
    return
  }
  func.func @transform_0(%arg0: i32) -> (i32, i32) {
    %c0_i32 = arith.constant 0 : i32
    %c0_i32_0 = arith.constant 0 : i32
    return %arg0, %c0_i32 : i32, i32
  }
  func.func @transform_1(%arg0: i32) -> (i32, i32) {
    %c0_i32 = arith.constant 0 : i32
    %c0_i32_0 = arith.constant 0 : i32
    %c0_i32_1 = arith.constant 0 : i32
    return %c0_i32, %c0_i32_0 : i32, i32
  }
  func.func @transform_2(%arg0: i32) -> (i32, i32) {
    %c0_i32 = arith.constant 0 : i32
    %c0_i32_0 = arith.constant 0 : i32
    %c0_i32_1 = arith.constant 0 : i32
    return %c0_i32, %c0_i32_0 : i32, i32
  }
  func.func @transform_3(%arg0: i32) -> (i32, i32) {
    %c0_i32 = arith.constant 0 : i32
    %c0_i32_0 = arith.constant 0 : i32
    return %arg0, %c0_i32 : i32, i32
  }
}

module attributes {stable_mosaic.version = 11 : i64} {
  func.func @_attn_kernel(%arg0: i32, %arg1: memref<1x8x8xi32, #tpu.memory_space<vmem>>, %arg2: memref<1x4x8x8xf32, #tpu.memory_space<vmem>>, %arg3: memref<1x4x8x8xf32, #tpu.memory_space<vmem>>, %arg4: memref<1x4x8x8xf32, #tpu.memory_space<vmem>>, %arg5: memref<1x4x8x8xf32, #tpu.memory_space<vmem>>, %arg6: memref<1x4x8x8xf32, #tpu.memory_space<vmem>>) attributes {dimension_semantics = [#tpu.dimension_semantics<parallel>], iteration_bounds = array<i64: 2>, scalar_prefetch = 0 : i64, scratch_operands = 0 : i64, tpu.core_type = #tpu.core_type<tc>, window_params = [{transform_indices = @transform_0, window_bounds = array<i64: 1, 8, 8>}, {transform_indices = @transform_1, window_bounds = array<i64: 1, 4, 8, 8>}, {transform_indices = @transform_2, window_bounds = array<i64: 1, 4, 8, 8>}, {transform_indices = @transform_3, window_bounds = array<i64: 1, 4, 8, 8>}, {transform_indices = @transform_4, window_bounds = array<i64: 1, 4, 8, 8>}, {transform_indices = @transform_5, window_bounds = array<i64: 1, 4, 8, 8>}]} {
    %c0 = arith.constant 0 : index
    %c0_0 = arith.constant 0 : index
    %c0_1 = arith.constant 0 : index
    %c0_2 = arith.constant 0 : index
    %0 = vector.load %arg2[%c0, %c0_0, %c0_1, %c0_2] : memref<1x4x8x8xf32, #tpu.memory_space<vmem>>, vector<1x4x8x8xf32>
    %1 = vector.shape_cast %0 : vector<1x4x8x8xf32> to vector<4x8x8xf32>
    %c0_3 = arith.constant 0 : index
    %c0_4 = arith.constant 0 : index
    %c0_5 = arith.constant 0 : index
    %c0_6 = arith.constant 0 : index
    %2 = vector.load %arg3[%c0_3, %c0_4, %c0_5, %c0_6] : memref<1x4x8x8xf32, #tpu.memory_space<vmem>>, vector<1x4x8x8xf32>
    %3 = vector.shape_cast %2 : vector<1x4x8x8xf32> to vector<4x8x8xf32>
    %c0_7 = arith.constant 0 : index
    %c0_8 = arith.constant 0 : index
    %c0_9 = arith.constant 0 : index
    %c0_10 = arith.constant 0 : index
    %4 = vector.load %arg4[%c0_7, %c0_8, %c0_9, %c0_10] : memref<1x4x8x8xf32, #tpu.memory_space<vmem>>, vector<1x4x8x8xf32>
    %5 = vector.shape_cast %4 : vector<1x4x8x8xf32> to vector<4x8x8xf32>
    "tpu.trace_start"() <{level = 10 : i32, message = "hqd,hkd->hqk"}> : () -> ()
    %cst = arith.constant dense<0.000000e+00> : vector<4x8x8xf32>
    %6 = tpu.matmul %1, %3, %cst {dimension_numbers = #tpu.dot_dimension_numbers<[2], [2], [1], [1], [0, 0, 0, 1, 1, 1], [0], [0]>} : vector<4x8x8xf32>, vector<4x8x8xf32>, vector<4x8x8xf32> -> vector<4x8x8xf32>
    "tpu.trace_stop"() : () -> ()
    %cst_11 = arith.constant 0.353553385 : f32
    %7 = vector.broadcast %cst_11 : f32 to vector<4x8x8xf32>
    %8 = arith.mulf %6, %7 : vector<4x8x8xf32>
    %c0_12 = arith.constant 0 : index
    %c0_13 = arith.constant 0 : index
    %c0_14 = arith.constant 0 : index
    %9 = vector.load %arg1[%c0_12, %c0_13, %c0_14] : memref<1x8x8xi32, #tpu.memory_space<vmem>>, vector<1x8x8xi32>
    %10 = vector.shape_cast %9 : vector<1x8x8xi32> to vector<8x8xi32>
    %11 = vector.shape_cast %10 : vector<8x8xi32> to vector<1x8x8xi32>
    %c0_i32 = arith.constant 0 : i32
    %12 = vector.broadcast %c0_i32 : i32 to vector<1x8x8xi32>
    %13 = arith.cmpi eq, %11, %12 : vector<1x8x8xi32>
    %cst_15 = arith.constant -1.000000e+09 : f32
    %14 = vector.shape_cast %13 : vector<1x8x8xi1> to vector<1x8x8xi1>
    %15 = vector.broadcast %14 : vector<1x8x8xi1> to vector<4x8x8xi1>
    %16 = vector.broadcast %cst_15 : f32 to vector<4x8x8xf32>
    %17 = arith.select %15, %16, %8 : vector<4x8x8xi1>, vector<4x8x8xf32>
    %cst_16 = arith.constant dense<0xFF800000> : vector<4x8xf32>
    %18 = vector.multi_reduction <maximumf>, %17, %cst_16 [2] : vector<4x8x8xf32> to vector<4x8xf32>
    %19 = vector.shape_cast %18 : vector<4x8xf32> to vector<4x8x1xf32>
    %20 = vector.broadcast %19 : vector<4x8x1xf32> to vector<4x8x8xf32>
    %21 = arith.subf %17, %20 : vector<4x8x8xf32>
    %22 = math.exp %21 : vector<4x8x8xf32>
    %cst_17 = arith.constant dense<0.000000e+00> : vector<4x8xf32>
    %23 = vector.multi_reduction <add>, %22, %cst_17 [2] : vector<4x8x8xf32> to vector<4x8xf32>
    %24 = vector.shape_cast %23 : vector<4x8xf32> to vector<4x8x1xf32>
    %25 = tpu.reciprocal %24 {approx = true} : vector<4x8x1xf32> -> vector<4x8x1xf32>
    %26 = vector.broadcast %25 : vector<4x8x1xf32> to vector<4x8x8xf32>
    %27 = arith.mulf %22, %26 : vector<4x8x8xf32>
    %c0_18 = arith.constant 0 : index
    %c0_19 = arith.constant 0 : index
    %c0_20 = arith.constant 0 : index
    %c0_21 = arith.constant 0 : index
    %28 = vector.load %arg6[%c0_18, %c0_19, %c0_20, %c0_21] : memref<1x4x8x8xf32, #tpu.memory_space<vmem>>, vector<1x4x8x8xf32>
    %29 = vector.shape_cast %28 : vector<1x4x8x8xf32> to vector<4x8x8xf32>
    %30 = vector.shape_cast %27 : vector<4x8x8xf32> to vector<1x4x8x8xf32>
    tpu.vector_store %arg6[%c0_18, %c0_19, %c0_20, %c0_21], %30 {strides = array<i32>} : memref<1x4x8x8xf32, #tpu.memory_space<vmem>>, vector<1x4x8x8xf32>,
    "tpu.trace_start"() <{level = 10 : i32, message = "hqk,hkd->hqd"}> : () -> ()
    %cst_22 = arith.constant dense<0.000000e+00> : vector<4x8x8xf32>
    %31 = tpu.matmul %27, %5, %cst_22 {dimension_numbers = #tpu.dot_dimension_numbers<[2], [1], [1], [2], [0, 0, 0, 1, 1, 2], [0], [0]>} : vector<4x8x8xf32>, vector<4x8x8xf32>, vector<4x8x8xf32> -> vector<4x8x8xf32>
    "tpu.trace_stop"() : () -> ()
    %c0_23 = arith.constant 0 : index
    %c0_24 = arith.constant 0 : index
    %c0_25 = arith.constant 0 : index
    %c0_26 = arith.constant 0 : index
    %32 = vector.load %arg5[%c0_23, %c0_24, %c0_25, %c0_26] : memref<1x4x8x8xf32, #tpu.memory_space<vmem>>, vector<1x4x8x8xf32>
    %33 = vector.shape_cast %32 : vector<1x4x8x8xf32> to vector<4x8x8xf32>
    %34 = vector.shape_cast %31 : vector<4x8x8xf32> to vector<1x4x8x8xf32>
    tpu.vector_store %arg5[%c0_23, %c0_24, %c0_25, %c0_26], %34 {strides = array<i32>} : memref<1x4x8x8xf32, #tpu.memory_space<vmem>>, vector<1x4x8x8xf32>,
    return
  }
  func.func @transform_0(%arg0: i32) -> (i32, i32, i32) {
    %c0_i32 = arith.constant 0 : i32
    %c0_i32_0 = arith.constant 0 : i32
    %c0_i32_1 = arith.constant 0 : i32
    return %arg0, %c0_i32, %c0_i32_0 : i32, i32, i32
  }
  func.func @transform_1(%arg0: i32) -> (i32, i32, i32, i32) {
    %c0_i32 = arith.constant 0 : i32
    %c0_i32_0 = arith.constant 0 : i32
    %c0_i32_1 = arith.constant 0 : i32
    %c0_i32_2 = arith.constant 0 : i32
    return %arg0, %c0_i32, %c0_i32_0, %c0_i32_1 : i32, i32, i32, i32
  }
  func.func @transform_2(%arg0: i32) -> (i32, i32, i32, i32) {
    %c0_i32 = arith.constant 0 : i32
    %c0_i32_0 = arith.constant 0 : i32
    %c0_i32_1 = arith.constant 0 : i32
    %c0_i32_2 = arith.constant 0 : i32
    return %arg0, %c0_i32, %c0_i32_0, %c0_i32_1 : i32, i32, i32, i32
  }
  func.func @transform_3(%arg0: i32) -> (i32, i32, i32, i32) {
    %c0_i32 = arith.constant 0 : i32
    %c0_i32_0 = arith.constant 0 : i32
    %c0_i32_1 = arith.constant 0 : i32
    %c0_i32_2 = arith.constant 0 : i32
    return %arg0, %c0_i32, %c0_i32_0, %c0_i32_1 : i32, i32, i32, i32
  }
  func.func @transform_4(%arg0: i32) -> (i32, i32, i32, i32) {
    %c0_i32 = arith.constant 0 : i32
    %c0_i32_0 = arith.constant 0 : i32
    %c0_i32_1 = arith.constant 0 : i32
    %c0_i32_2 = arith.constant 0 : i32
    return %arg0, %c0_i32, %c0_i32_0, %c0_i32_1 : i32, i32, i32, i32
  }
  func.func @transform_5(%arg0: i32) -> (i32, i32, i32, i32) {
    %c0_i32 = arith.constant 0 : i32
    %c0_i32_0 = arith.constant 0 : i32
    %c0_i32_1 = arith.constant 0 : i32
    %c0_i32_2 = arith.constant 0 : i32
    return %arg0, %c0_i32, %c0_i32_0, %c0_i32_1 : i32, i32, i32, i32
  }
}

module attributes {stable_mosaic.version = 11 : i64} {
  func.func @_proj_add_ln_kernel(%arg0: i32, %arg1: memref<8x32xf32, #tpu.memory_space<vmem>>, %arg2: memref<8x32xf32, #tpu.memory_space<vmem>>, %arg3: memref<32x32xf32, #tpu.memory_space<vmem>>, %arg4: memref<1x32xf32, #tpu.memory_space<vmem>>, %arg5: memref<1x32xf32, #tpu.memory_space<vmem>>, %arg6: memref<1x32xf32, #tpu.memory_space<vmem>>, %arg7: memref<8x32xf32, #tpu.memory_space<vmem>>) attributes {dimension_semantics = [#tpu.dimension_semantics<parallel>], iteration_bounds = array<i64: 2>, scalar_prefetch = 0 : i64, scratch_operands = 0 : i64, tpu.core_type = #tpu.core_type<tc>, window_params = [{transform_indices = @transform_0, window_bounds = array<i64: 8, 32>}, {transform_indices = @transform_1, window_bounds = array<i64: 8, 32>}, {pipeline_mode = #tpu.pipeline_mode<synchronous>, transform_indices = @transform_2, window_bounds = array<i64: 32, 32>}, {pipeline_mode = #tpu.pipeline_mode<synchronous>, transform_indices = @transform_3, window_bounds = array<i64: 1, 32>}, {pipeline_mode = #tpu.pipeline_mode<synchronous>, transform_indices = @transform_4, window_bounds = array<i64: 1, 32>}, {pipeline_mode = #tpu.pipeline_mode<synchronous>, transform_indices = @transform_5, window_bounds = array<i64: 1, 32>}, {transform_indices = @transform_6, window_bounds = array<i64: 8, 32>}]} {
    %c0 = arith.constant 0 : index
    %c0_0 = arith.constant 0 : index
    %0 = vector.load %arg1[%c0, %c0_0] : memref<8x32xf32, #tpu.memory_space<vmem>>, vector<8x32xf32>
    %c0_1 = arith.constant 0 : index
    %c0_2 = arith.constant 0 : index
    %1 = vector.load %arg3[%c0_1, %c0_2] : memref<32x32xf32, #tpu.memory_space<vmem>>, vector<32x32xf32>
    %cst = arith.constant dense<0.000000e+00> : vector<8x32xf32>
    %2 = tpu.matmul %0, %1, %cst {dimension_numbers = #tpu.dot_dimension_numbers<[1], [0], [0], [1], [0, 0, 1, 1], [], []>} : vector<8x32xf32>, vector<32x32xf32>, vector<8x32xf32> -> vector<8x32xf32>
    %c0_3 = arith.constant 0 : index
    %c0_4 = arith.constant 0 : index
    %3 = vector.load %arg4[%c0_3, %c0_4] : memref<1x32xf32, #tpu.memory_space<vmem>>, vector<1x32xf32>
    %4 = vector.broadcast %3 : vector<1x32xf32> to vector<8x32xf32>
    %5 = arith.addf %2, %4 : vector<8x32xf32>
    %c0_5 = arith.constant 0 : index
    %c0_6 = arith.constant 0 : index
    %6 = vector.load %arg2[%c0_5, %c0_6] : memref<8x32xf32, #tpu.memory_space<vmem>>, vector<8x32xf32>
    %7 = arith.addf %6, %5 : vector<8x32xf32>
    %cst_7 = arith.constant dense<0.000000e+00> : vector<8xf32>
    %8 = vector.multi_reduction <add>, %7, %cst_7 [1] : vector<8x32xf32> to vector<8xf32>
    %9 = vector.shape_cast %8 : vector<8xf32> to vector<8x1xf32>
    %cst_8 = arith.constant 3.200000e+01 : f32
    %10 = vector.broadcast %cst_8 : f32 to vector<8x1xf32>
    %11 = arith.divf %9, %10 : vector<8x1xf32>
    %12 = vector.broadcast %11 : vector<8x1xf32> to vector<8x32xf32>
    %13 = arith.subf %7, %12 : vector<8x32xf32>
    %14 = arith.mulf %13, %13 : vector<8x32xf32>
    %cst_9 = arith.constant dense<0.000000e+00> : vector<8xf32>
    %15 = vector.multi_reduction <add>, %14, %cst_9 [1] : vector<8x32xf32> to vector<8xf32>
    %16 = vector.shape_cast %15 : vector<8xf32> to vector<8x1xf32>
    %cst_10 = arith.constant 3.200000e+01 : f32
    %17 = vector.broadcast %cst_10 : f32 to vector<8x1xf32>
    %18 = arith.divf %16, %17 : vector<8x1xf32>
    %cst_11 = arith.constant 9.99999996E-13 : f32
    %19 = vector.broadcast %cst_11 : f32 to vector<8x1xf32>
    %20 = arith.addf %18, %19 : vector<8x1xf32>
    %21 = math.rsqrt %20 : vector<8x1xf32>
    %c0_12 = arith.constant 0 : index
    %c0_13 = arith.constant 0 : index
    %22 = vector.load %arg5[%c0_12, %c0_13] : memref<1x32xf32, #tpu.memory_space<vmem>>, vector<1x32xf32>
    %23 = vector.broadcast %21 : vector<8x1xf32> to vector<8x32xf32>
    %24 = arith.mulf %13, %23 : vector<8x32xf32>
    %25 = vector.broadcast %22 : vector<1x32xf32> to vector<8x32xf32>
    %26 = arith.mulf %25, %24 : vector<8x32xf32>
    %c0_14 = arith.constant 0 : index
    %c0_15 = arith.constant 0 : index
    %27 = vector.load %arg6[%c0_14, %c0_15] : memref<1x32xf32, #tpu.memory_space<vmem>>, vector<1x32xf32>
    %28 = vector.broadcast %27 : vector<1x32xf32> to vector<8x32xf32>
    %29 = arith.addf %26, %28 : vector<8x32xf32>
    %c0_16 = arith.constant 0 : index
    %c0_17 = arith.constant 0 : index
    %30 = vector.load %arg7[%c0_16, %c0_17] : memref<8x32xf32, #tpu.memory_space<vmem>>, vector<8x32xf32>
    tpu.vector_store %arg7[%c0_16, %c0_17], %29 {strides = array<i32>} : memref<8x32xf32, #tpu.memory_space<vmem>>, vector<8x32xf32>,
    return
  }
  func.func @transform_0(%arg0: i32) -> (i32, i32) {
    %c0_i32 = arith.constant 0 : i32
    %c0_i32_0 = arith.constant 0 : i32
    return %arg0, %c0_i32 : i32, i32
  }
  func.func @transform_1(%arg0: i32) -> (i32, i32) {
    %c0_i32 = arith.constant 0 : i32
    %c0_i32_0 = arith.constant 0 : i32
    return %arg0, %c0_i32 : i32, i32
  }
  func.func @transform_2(%arg0: i32) -> (i32, i32) {
    %c0_i32 = arith.constant 0 : i32
    %c0_i32_0 = arith.constant 0 : i32
    %c0_i32_1 = arith.constant 0 : i32
    return %c0_i32, %c0_i32_0 : i32, i32
  }
  func.func @transform_3(%arg0: i32) -> (i32, i32) {
    %c0_i32 = arith.constant 0 : i32
    %c0_i32_0 = arith.constant 0 : i32
    %c0_i32_1 = arith.constant 0 : i32
    return %c0_i32, %c0_i32_0 : i32, i32
  }
  func.func @transform_4(%arg0: i32) -> (i32, i32) {
    %c0_i32 = arith.constant 0 : i32
    %c0_i32_0 = arith.constant 0 : i32
    %c0_i32_1 = arith.constant 0 : i32
    return %c0_i32, %c0_i32_0 : i32, i32
  }
  func.func @transform_5(%arg0: i32) -> (i32, i32) {
    %c0_i32 = arith.constant 0 : i32
    %c0_i32_0 = arith.constant 0 : i32
    %c0_i32_1 = arith.constant 0 : i32
    return %c0_i32, %c0_i32_0 : i32, i32
  }
  func.func @transform_6(%arg0: i32) -> (i32, i32) {
    %c0_i32 = arith.constant 0 : i32
    %c0_i32_0 = arith.constant 0 : i32
    return %arg0, %c0_i32 : i32, i32
  }
}

module attributes {stable_mosaic.version = 11 : i64} {
  func.func @_linear_kernel(%arg0: i32, %arg1: memref<8x32xf32, #tpu.memory_space<vmem>>, %arg2: memref<32x32xf32, #tpu.memory_space<vmem>>, %arg3: memref<1x32xf32, #tpu.memory_space<vmem>>, %arg4: memref<8x32xf32, #tpu.memory_space<vmem>>) attributes {dimension_semantics = [#tpu.dimension_semantics<parallel>], iteration_bounds = array<i64: 2>, scalar_prefetch = 0 : i64, scratch_operands = 0 : i64, tpu.core_type = #tpu.core_type<tc>, window_params = [{transform_indices = @transform_0, window_bounds = array<i64: 8, 32>}, {pipeline_mode = #tpu.pipeline_mode<synchronous>, transform_indices = @transform_1, window_bounds = array<i64: 32, 32>}, {pipeline_mode = #tpu.pipeline_mode<synchronous>, transform_indices = @transform_2, window_bounds = array<i64: 1, 32>}, {transform_indices = @transform_3, window_bounds = array<i64: 8, 32>}]} {
    %c0 = arith.constant 0 : index
    %c0_0 = arith.constant 0 : index
    %0 = vector.load %arg1[%c0, %c0_0] : memref<8x32xf32, #tpu.memory_space<vmem>>, vector<8x32xf32>
    %c0_1 = arith.constant 0 : index
    %c0_2 = arith.constant 0 : index
    %1 = vector.load %arg2[%c0_1, %c0_2] : memref<32x32xf32, #tpu.memory_space<vmem>>, vector<32x32xf32>
    %cst = arith.constant dense<0.000000e+00> : vector<8x32xf32>
    %2 = tpu.matmul %0, %1, %cst {dimension_numbers = #tpu.dot_dimension_numbers<[1], [0], [0], [1], [0, 0, 1, 1], [], []>} : vector<8x32xf32>, vector<32x32xf32>, vector<8x32xf32> -> vector<8x32xf32>
    %c0_3 = arith.constant 0 : index
    %c0_4 = arith.constant 0 : index
    %3 = vector.load %arg3[%c0_3, %c0_4] : memref<1x32xf32, #tpu.memory_space<vmem>>, vector<1x32xf32>
    %4 = vector.broadcast %3 : vector<1x32xf32> to vector<8x32xf32>
    %5 = arith.addf %2, %4 : vector<8x32xf32>
    %c0_5 = arith.constant 0 : index
    %c0_6 = arith.constant 0 : index
    %6 = vector.load %arg4[%c0_5, %c0_6] : memref<8x32xf32, #tpu.memory_space<vmem>>, vector<8x32xf32>
    tpu.vector_store %arg4[%c0_5, %c0_6], %5 {strides = array<i32>} : memref<8x32xf32, #tpu.memory_space<vmem>>, vector<8x32xf32>,
    return
  }
  func.func @transform_0(%arg0: i32) -> (i32, i32) {
    %c0_i32 = arith.constant 0 : i32
    %c0_i32_0 = arith.constant 0 : i32
    return %arg0, %c0_i32 : i32, i32
  }
  func.func @transform_1(%arg0: i32) -> (i32, i32) {
    %c0_i32 = arith.constant 0 : i32
    %c0_i32_0 = arith.constant 0 : i32
    %c0_i32_1 = arith.constant 0 : i32
    return %c0_i32, %c0_i32_0 : i32, i32
  }
  func.func @transform_2(%arg0: i32) -> (i32, i32) {
    %c0_i32 = arith.constant 0 : i32
    %c0_i32_0 = arith.constant 0 : i32
    %c0_i32_1 = arith.constant 0 : i32
    return %c0_i32, %c0_i32_0 : i32, i32
  }
  func.func @transform_3(%arg0: i32) -> (i32, i32) {
    %c0_i32 = arith.constant 0 : i32
    %c0_i32_0 = arith.constant 0 : i32
    return %arg0, %c0_i32 : i32, i32
  }
}

module attributes {stable_mosaic.version = 11 : i64} {
  func.func @_linear_kernel(%arg0: i32, %arg1: memref<16x32xf32, #tpu.memory_space<vmem>>, %arg2: memref<32x64xf32, #tpu.memory_space<vmem>>, %arg3: memref<1x64xf32, #tpu.memory_space<vmem>>, %arg4: memref<16x64xf32, #tpu.memory_space<vmem>>) attributes {dimension_semantics = [#tpu.dimension_semantics<parallel>], iteration_bounds = array<i64: 2>, scalar_prefetch = 0 : i64, scratch_operands = 0 : i64, tpu.core_type = #tpu.core_type<tc>, window_params = [{transform_indices = @transform_0, window_bounds = array<i64: 16, 32>}, {pipeline_mode = #tpu.pipeline_mode<synchronous>, transform_indices = @transform_1, window_bounds = array<i64: 32, 64>}, {pipeline_mode = #tpu.pipeline_mode<synchronous>, transform_indices = @transform_2, window_bounds = array<i64: 1, 64>}, {transform_indices = @transform_3, window_bounds = array<i64: 16, 64>}]} {
    %c0 = arith.constant 0 : index
    %c0_0 = arith.constant 0 : index
    %0 = vector.load %arg1[%c0, %c0_0] : memref<16x32xf32, #tpu.memory_space<vmem>>, vector<16x32xf32>
    %c0_1 = arith.constant 0 : index
    %c0_2 = arith.constant 0 : index
    %1 = vector.load %arg2[%c0_1, %c0_2] : memref<32x64xf32, #tpu.memory_space<vmem>>, vector<32x64xf32>
    %cst = arith.constant dense<0.000000e+00> : vector<16x64xf32>
    %2 = tpu.matmul %0, %1, %cst {dimension_numbers = #tpu.dot_dimension_numbers<[1], [0], [0], [1], [0, 0, 1, 1], [], []>} : vector<16x32xf32>, vector<32x64xf32>, vector<16x64xf32> -> vector<16x64xf32>
    %c0_3 = arith.constant 0 : index
    %c0_4 = arith.constant 0 : index
    %3 = vector.load %arg3[%c0_3, %c0_4] : memref<1x64xf32, #tpu.memory_space<vmem>>, vector<1x64xf32>
    %4 = vector.broadcast %3 : vector<1x64xf32> to vector<16x64xf32>
    %5 = arith.addf %2, %4 : vector<16x64xf32>
    %c0_5 = arith.constant 0 : index
    %c0_6 = arith.constant 0 : index
    %6 = vector.load %arg4[%c0_5, %c0_6] : memref<16x64xf32, #tpu.memory_space<vmem>>, vector<16x64xf32>
    tpu.vector_store %arg4[%c0_5, %c0_6], %5 {strides = array<i32>} : memref<16x64xf32, #tpu.memory_space<vmem>>, vector<16x64xf32>,
    return
  }
  func.func @transform_0(%arg0: i32) -> (i32, i32) {
    %c0_i32 = arith.constant 0 : i32
    %c0_i32_0 = arith.constant 0 : i32
    return %arg0, %c0_i32 : i32, i32
  }
  func.func @transform_1(%arg0: i32) -> (i32, i32) {
    %c0_i32 = arith.constant 0 : i32
    %c0_i32_0 = arith.constant 0 : i32
    %c0_i32_1 = arith.constant 0 : i32
    return %c0_i32, %c0_i32_0 : i32, i32
  }
  func.func @transform_2(%arg0: i32) -> (i32, i32) {
    %c0_i32 = arith.constant 0 : i32
    %c0_i32_0 = arith.constant 0 : i32
    %c0_i32_1 = arith.constant 0 : i32
    return %c0_i32, %c0_i32_0 : i32, i32
  }
  func.func @transform_3(%arg0: i32) -> (i32, i32) {
    %c0_i32 = arith.constant 0 : i32
    %c0_i32_0 = arith.constant 0 : i32
    return %arg0, %c0_i32 : i32, i32
  }
}

module attributes {stable_mosaic.version = 11 : i64} {
  func.func @_attn_kernel(%arg0: i32, %arg1: memref<1x4x8x8xf32, #tpu.memory_space<vmem>>, %arg2: memref<1x4x16x8xf32, #tpu.memory_space<vmem>>, %arg3: memref<1x4x16x8xf32, #tpu.memory_space<vmem>>, %arg4: memref<1x4x8x8xf32, #tpu.memory_space<vmem>>, %arg5: memref<1x4x8x16xf32, #tpu.memory_space<vmem>>) attributes {dimension_semantics = [#tpu.dimension_semantics<parallel>], iteration_bounds = array<i64: 2>, scalar_prefetch = 0 : i64, scratch_operands = 0 : i64, tpu.core_type = #tpu.core_type<tc>, window_params = [{transform_indices = @transform_0, window_bounds = array<i64: 1, 4, 8, 8>}, {transform_indices = @transform_1, window_bounds = array<i64: 1, 4, 16, 8>}, {transform_indices = @transform_2, window_bounds = array<i64: 1, 4, 16, 8>}, {transform_indices = @transform_3, window_bounds = array<i64: 1, 4, 8, 8>}, {transform_indices = @transform_4, window_bounds = array<i64: 1, 4, 8, 16>}]} {
    %c0 = arith.constant 0 : index
    %c0_0 = arith.constant 0 : index
    %c0_1 = arith.constant 0 : index
    %c0_2 = arith.constant 0 : index
    %0 = vector.load %arg1[%c0, %c0_0, %c0_1, %c0_2] : memref<1x4x8x8xf32, #tpu.memory_space<vmem>>, vector<1x4x8x8xf32>
    %1 = vector.shape_cast %0 : vector<1x4x8x8xf32> to vector<4x8x8xf32>
    %c0_3 = arith.constant 0 : index
    %c0_4 = arith.constant 0 : index
    %c0_5 = arith.constant 0 : index
    %c0_6 = arith.constant 0 : index
    %2 = vector.load %arg2[%c0_3, %c0_4, %c0_5, %c0_6] : memref<1x4x16x8xf32, #tpu.memory_space<vmem>>, vector<1x4x16x8xf32>
    %3 = vector.shape_cast %2 : vector<1x4x16x8xf32> to vector<4x16x8xf32>
    %c0_7 = arith.constant 0 : index
    %c0_8 = arith.constant 0 : index
    %c0_9 = arith.constant 0 : index
    %c0_10 = arith.constant 0 : index
    %4 = vector.load %arg3[%c0_7, %c0_8, %c0_9, %c0_10] : memref<1x4x16x8xf32, #tpu.memory_space<vmem>>, vector<1x4x16x8xf32>
    %5 = vector.shape_cast %4 : vector<1x4x16x8xf32> to vector<4x16x8xf32>
    "tpu.trace_start"() <{level = 10 : i32, message = "hqd,hkd->hqk"}> : () -> ()
    %cst = arith.constant dense<0.000000e+00> : vector<4x8x16xf32>
    %6 = tpu.matmul %1, %3, %cst {dimension_numbers = #tpu.dot_dimension_numbers<[2], [2], [1], [1], [0, 0, 0, 1, 1, 1], [0], [0]>} : vector<4x8x8xf32>, vector<4x16x8xf32>, vector<4x8x16xf32> -> vector<4x8x16xf32>
    "tpu.trace_stop"() : () -> ()
    %cst_11 = arith.constant 0.353553385 : f32
    %7 = vector.broadcast %cst_11 : f32 to vector<4x8x16xf32>
    %8 = arith.mulf %6, %7 : vector<4x8x16xf32>
    %cst_12 = arith.constant dense<0xFF800000> : vector<4x8xf32>
    %9 = vector.multi_reduction <maximumf>, %8, %cst_12 [2] : vector<4x8x16xf32> to vector<4x8xf32>
    %10 = vector.shape_cast %9 : vector<4x8xf32> to vector<4x8x1xf32>
    %11 = vector.broadcast %10 : vector<4x8x1xf32> to vector<4x8x16xf32>
    %12 = arith.subf %8, %11 : vector<4x8x16xf32>
    %13 = math.exp %12 : vector<4x8x16xf32>
    %cst_13 = arith.constant dense<0.000000e+00> : vector<4x8xf32>
    %14 = vector.multi_reduction <add>, %13, %cst_13 [2] : vector<4x8x16xf32> to vector<4x8xf32>
    %15 = vector.shape_cast %14 : vector<4x8xf32> to vector<4x8x1xf32>
    %16 = tpu.reciprocal %15 {approx = true} : vector<4x8x1xf32> -> vector<4x8x1xf32>
    %17 = vector.broadcast %16 : vector<4x8x1xf32> to vector<4x8x16xf32>
    %18 = arith.mulf %13, %17 : vector<4x8x16xf32>
    %c0_14 = arith.constant 0 : index
    %c0_15 = arith.constant 0 : index
    %c0_16 = arith.constant 0 : index
    %c0_17 = arith.constant 0 : index
    %19 = vector.load %arg5[%c0_14, %c0_15, %c0_16, %c0_17] : memref<1x4x8x16xf32, #tpu.memory_space<vmem>>, vector<1x4x8x16xf32>
    %20 = vector.shape_cast %19 : vector<1x4x8x16xf32> to vector<4x8x16xf32>
    %21 = vector.shape_cast %18 : vector<4x8x16xf32> to vector<1x4x8x16xf32>
    tpu.vector_store %arg5[%c0_14, %c0_15, %c0_16, %c0_17], %21 {strides = array<i32>} : memref<1x4x8x16xf32, #tpu.memory_space<vmem>>, vector<1x4x8x16xf32>,
    "tpu.trace_start"() <{level = 10 : i32, message = "hqk,hkd->hqd"}> : () -> ()
    %cst_18 = arith.constant dense<0.000000e+00> : vector<4x8x8xf32>
    %22 = tpu.matmul %18, %5, %cst_18 {dimension_numbers = #tpu.dot_dimension_numbers<[2], [1], [1], [2], [0, 0, 0, 1, 1, 2], [0], [0]>} : vector<4x8x16xf32>, vector<4x16x8xf32>, vector<4x8x8xf32> -> vector<4x8x8xf32>
    "tpu.trace_stop"() : () -> ()
    %c0_19 = arith.constant 0 : index
    %c0_20 = arith.constant 0 : index
    %c0_21 = arith.constant 0 : index
    %c0_22 = arith.constant 0 : index
    %23 = vector.load %arg4[%c0_19, %c0_20, %c0_21, %c0_22] : memref<1x4x8x8xf32, #tpu.memory_space<vmem>>, vector<1x4x8x8xf32>
    %24 = vector.shape_cast %23 : vector<1x4x8x8xf32> to vector<4x8x8xf32>
    %25 = vector.shape_cast %22 : vector<4x8x8xf32> to vector<1x4x8x8xf32>
    tpu.vector_store %arg4[%c0_19, %c0_20, %c0_21, %c0_22], %25 {strides = array<i32>} : memref<1x4x8x8xf32, #tpu.memory_space<vmem>>, vector<1x4x8x8xf32>,
    return
  }
  func.func @transform_0(%arg0: i32) -> (i32, i32, i32, i32) {
    %c0_i32 = arith.constant 0 : i32
    %c0_i32_0 = arith.constant 0 : i32
    %c0_i32_1 = arith.constant 0 : i32
    %c0_i32_2 = arith.constant 0 : i32
    return %arg0, %c0_i32, %c0_i32_0, %c0_i32_1 : i32, i32, i32, i32
  }
  func.func @transform_1(%arg0: i32) -> (i32, i32, i32, i32) {
    %c0_i32 = arith.constant 0 : i32
    %c0_i32_0 = arith.constant 0 : i32
    %c0_i32_1 = arith.constant 0 : i32
    %c0_i32_2 = arith.constant 0 : i32
    return %arg0, %c0_i32, %c0_i32_0, %c0_i32_1 : i32, i32, i32, i32
  }
  func.func @transform_2(%arg0: i32) -> (i32, i32, i32, i32) {
    %c0_i32 = arith.constant 0 : i32
    %c0_i32_0 = arith.constant 0 : i32
    %c0_i32_1 = arith.constant 0 : i32
    %c0_i32_2 = arith.constant 0 : i32
    return %arg0, %c0_i32, %c0_i32_0, %c0_i32_1 : i32, i32, i32, i32
  }
  func.func @transform_3(%arg0: i32) -> (i32, i32, i32, i32) {
    %c0_i32 = arith.constant 0 : i32
    %c0_i32_0 = arith.constant 0 : i32
    %c0_i32_1 = arith.constant 0 : i32
    %c0_i32_2 = arith.constant 0 : i32
    return %arg0, %c0_i32, %c0_i32_0, %c0_i32_1 : i32, i32, i32, i32
  }
  func.func @transform_4(%arg0: i32) -> (i32, i32, i32, i32) {
    %c0_i32 = arith.constant 0 : i32
    %c0_i32_0 = arith.constant 0 : i32
    %c0_i32_1 = arith.constant 0 : i32
    %c0_i32_2 = arith.constant 0 : i32
    return %arg0, %c0_i32, %c0_i32_0, %c0_i32_1 : i32, i32, i32, i32
  }
}

module attributes {stable_mosaic.version = 11 : i64} {
  func.func @_ffn_add_ln_kernel(%arg0: i32, %arg1: i32, %arg2: memref<8x32xf32, #tpu.memory_space<vmem>>, %arg3: memref<32x64xf32, #tpu.memory_space<vmem>>, %arg4: memref<1x64xf32, #tpu.memory_space<vmem>>, %arg5: memref<64x32xf32, #tpu.memory_space<vmem>>, %arg6: memref<1x32xf32, #tpu.memory_space<vmem>>, %arg7: memref<1x32xf32, #tpu.memory_space<vmem>>, %arg8: memref<1x32xf32, #tpu.memory_space<vmem>>, %arg9: memref<8x32xf32, #tpu.memory_space<vmem>>, %arg10: memref<8x32xf32, #tpu.memory_space<vmem>>) attributes {dimension_semantics = [#tpu.dimension_semantics<parallel>, #tpu.dimension_semantics<arbitrary>], iteration_bounds = array<i64: 2, 1>, scalar_prefetch = 0 : i64, scratch_operands = 1 : i64, tpu.core_type = #tpu.core_type<tc>, window_params = [{transform_indices = @transform_0, window_bounds = array<i64: 8, 32>}, {transform_indices = @transform_1, window_bounds = array<i64: 32, 64>}, {transform_indices = @transform_2, window_bounds = array<i64: 1, 64>}, {transform_indices = @transform_3, window_bounds = array<i64: 64, 32>}, {pipeline_mode = #tpu.pipeline_mode<synchronous>, transform_indices = @transform_4, window_bounds = array<i64: 1, 32>}, {pipeline_mode = #tpu.pipeline_mode<synchronous>, transform_indices = @transform_5, window_bounds = array<i64: 1, 32>}, {pipeline_mode = #tpu.pipeline_mode<synchronous>, transform_indices = @transform_6, window_bounds = array<i64: 1, 32>}, {transform_indices = @transform_7, window_bounds = array<i64: 8, 32>}]} {
    %c0_i32 = arith.constant 0 : i32
    %0 = arith.cmpi eq, %arg1, %c0_i32 : i32
    %1 = arith.extui %0 : i1 to i32
    %c0_i32_0 = arith.constant 0 : i32
    %2 = arith.cmpi ne, %1, %c0_i32_0 : i32
    scf.if %2 {
      %cst_16 = arith.constant 0.000000e+00 : f32
      %19 = vector.broadcast %cst_16 : f32 to vector<8x32xf32>
      %c0_17 = arith.constant 0 : index
      %c0_18 = arith.constant 0 : index
      %20 = vector.load %arg10[%c0_17, %c0_18] : memref<8x32xf32, #tpu.memory_space<vmem>>, vector<8x32xf32>
      tpu.vector_store %arg10[%c0_17, %c0_18], %19 {strides = array<i32>} : memref<8x32xf32, #tpu.memory_space<vmem>>, vector<8x32xf32>,
    } else {
    }
    %c0 = arith.constant 0 : index
    %c0_1 = arith.constant 0 : index
    %3 = vector.load %arg2[%c0, %c0_1] : memref<8x32xf32, #tpu.memory_space<vmem>>, vector<8x32xf32>
    %c0_2 = arith.constant 0 : index
    %c0_3 = arith.constant 0 : index
    %4 = vector.load %arg3[%c0_2, %c0_3] : memref<32x64xf32, #tpu.memory_space<vmem>>, vector<32x64xf32>
    %cst = arith.constant dense<0.000000e+00> : vector<8x64xf32>
    %5 = tpu.matmul %3, %4, %cst {dimension_numbers = #tpu.dot_dimension_numbers<[1], [0], [0], [1], [0, 0, 1, 1], [], []>} : vector<8x32xf32>, vector<32x64xf32>, vector<8x64xf32> -> vector<8x64xf32>
    %c0_4 = arith.constant 0 : index
    %c0_5 = arith.constant 0 : index
    %6 = vector.load %arg4[%c0_4, %c0_5] : memref<1x64xf32, #tpu.memory_space<vmem>>, vector<1x64xf32>
    %7 = vector.broadcast %6 : vector<1x64xf32> to vector<8x64xf32>
    %8 = arith.addf %5, %7 : vector<8x64xf32>
    %cst_6 = arith.constant 0.000000e+00 : f32
    %9 = vector.broadcast %cst_6 : f32 to vector<8x64xf32>
    %10 = arith.maximumf %8, %9 : vector<8x64xf32>
    %c0_7 = arith.constant 0 : index
    %c0_8 = arith.constant 0 : index
    %11 = vector.load %arg10[%c0_7, %c0_8] : memref<8x32xf32, #tpu.memory_space<vmem>>, vector<8x32xf32>
    %c0_9 = arith.constant 0 : index
    %c0_10 = arith.constant 0 : index
    %12 = vector.load %arg5[%c0_9, %c0_10] : memref<64x32xf32, #tpu.memory_space<vmem>>, vector<64x32xf32>
    %cst_11 = arith.constant dense<0.000000e+00> : vector<8x32xf32>
    %13 = tpu.matmul %10, %12, %cst_11 {dimension_numbers = #tpu.dot_dimension_numbers<[1], [0], [0], [1], [0, 0, 1, 1], [], []>} : vector<8x64xf32>, vector<64x32xf32>, vector<8x32xf32> -> vector<8x32xf32>
    %14 = arith.addf %11, %13 : vector<8x32xf32>
    %c0_12 = arith.constant 0 : index
    %c0_13 = arith.constant 0 : index
    %15 = vector.load %arg10[%c0_12, %c0_13] : memref<8x32xf32, #tpu.memory_space<vmem>>, vector<8x32xf32>
    tpu.vector_store %arg10[%c0_12, %c0_13], %14 {strides = array<i32>} : memref<8x32xf32, #tpu.memory_space<vmem>>, vector<8x32xf32>,
    %c0_i32_14 = arith.constant 0 : i32
    %16 = arith.cmpi eq, %arg1, %c0_i32_14 : i32
    %17 = arith.extui %16 : i1 to i32
    %c0_i32_15 = arith.constant 0 : i32
    %18 = arith.cmpi ne, %17, %c0_i32_15 : i32
    scf.if %18 {
      %c0_16 = arith.constant 0 : index
      %c0_17 = arith.constant 0 : index
      %19 = vector.load %arg2[%c0_16, %c0_17] : memref<8x32xf32, #tpu.memory_space<vmem>>, vector<8x32xf32>
      %c0_18 = arith.constant 0 : index
      %c0_19 = arith.constant 0 : index
      %20 = vector.load %arg10[%c0_18, %c0_19] : memref<8x32xf32, #tpu.memory_space<vmem>>, vector<8x32xf32>
      %21 = arith.addf %19, %20 : vector<8x32xf32>
      %c0_20 = arith.constant 0 : index
      %c0_21 = arith.constant 0 : index
      %22 = vector.load %arg6[%c0_20, %c0_21] : memref<1x32xf32, #tpu.memory_space<vmem>>, vector<1x32xf32>
      %23 = vector.broadcast %22 : vector<1x32xf32> to vector<8x32xf32>
      %24 = arith.addf %21, %23 : vector<8x32xf32>
      %cst_22 = arith.constant dense<0.000000e+00> : vector<8xf32>
      %25 = vector.multi_reduction <add>, %24, %cst_22 [1] : vector<8x32xf32> to vector<8xf32>
      %26 = vector.shape_cast %25 : vector<8xf32> to vector<8x1xf32>
      %cst_23 = arith.constant 3.200000e+01 : f32
      %27 = vector.broadcast %cst_23 : f32 to vector<8x1xf32>
      %28 = arith.divf %26, %27 : vector<8x1xf32>
      %29 = vector.broadcast %28 : vector<8x1xf32> to vector<8x32xf32>
      %30 = arith.subf %24, %29 : vector<8x32xf32>
      %31 = arith.mulf %30, %30 : vector<8x32xf32>
      %cst_24 = arith.constant dense<0.000000e+00> : vector<8xf32>
      %32 = vector.multi_reduction <add>, %31, %cst_24 [1] : vector<8x32xf32> to vector<8xf32>
      %33 = vector.shape_cast %32 : vector<8xf32> to vector<8x1xf32>
      %cst_25 = arith.constant 3.200000e+01 : f32
      %34 = vector.broadcast %cst_25 : f32 to vector<8x1xf32>
      %35 = arith.divf %33, %34 : vector<8x1xf32>
      %cst_26 = arith.constant 9.99999996E-13 : f32
      %36 = vector.broadcast %cst_26 : f32 to vector<8x1xf32>
      %37 = arith.addf %35, %36 : vector<8x1xf32>
      %38 = math.rsqrt %37 : vector<8x1xf32>
      %c0_27 = arith.constant 0 : index
      %c0_28 = arith.constant 0 : index
      %39 = vector.load %arg7[%c0_27, %c0_28] : memref<1x32xf32, #tpu.memory_space<vmem>>, vector<1x32xf32>
      %40 = vector.broadcast %38 : vector<8x1xf32> to vector<8x32xf32>
      %41 = arith.mulf %30, %40 : vector<8x32xf32>
      %42 = vector.broadcast %39 : vector<1x32xf32> to vector<8x32xf32>
      %43 = arith.mulf %42, %41 : vector<8x32xf32>
      %c0_29 = arith.constant 0 : index
      %c0_30 = arith.constant 0 : index
      %44 = vector.load %arg8[%c0_29, %c0_30] : memref<1x32xf32, #tpu.memory_space<vmem>>, vector<1x32xf32>
      %45 = vector.broadcast %44 : vector<1x32xf32> to vector<8x32xf32>
      %46 = arith.addf %43, %45 : vector<8x32xf32>
      %c0_31 = arith.constant 0 : index
      %c0_32 = arith.constant 0 : index
      %47 = vector.load %arg9[%c0_31, %c0_32] : memref<8x32xf32, #tpu.memory_space<vmem>>, vector<8x32xf32>
      tpu.vector_store %arg9[%c0_31, %c0_32], %46 {strides = array<i32>} : memref<8x32xf32, #tpu.memory_space<vmem>>, vector<8x32xf32>,
    } else {
    }
    return
  }
  func.func @transform_0(%arg0: i32, %arg1: i32) -> (i32, i32) {
    %c0_i32 = arith.constant 0 : i32
    %c0_i32_0 = arith.constant 0 : i32
    return %arg0, %c0_i32 : i32, i32
  }
  func.func @transform_1(%arg0: i32, %arg1: i32) -> (i32, i32) {
    %c0_i32 = arith.constant 0 : i32
    %c0_i32_0 = arith.constant 0 : i32
    return %c0_i32, %arg1 : i32, i32
  }
  func.func @transform_2(%arg0: i32, %arg1: i32) -> (i32, i32) {
    %c0_i32 = arith.constant 0 : i32
    %c0_i32_0 = arith.constant 0 : i32
    return %c0_i32, %arg1 : i32, i32
  }
  func.func @transform_3(%arg0: i32, %arg1: i32) -> (i32, i32) {
    %c0_i32 = arith.constant 0 : i32
    %c0_i32_0 = arith.constant 0 : i32
    return %arg1, %c0_i32 : i32, i32
  }
  func.func @transform_4(%arg0: i32, %arg1: i32) -> (i32, i32) {
    %c0_i32 = arith.constant 0 : i32
    %c0_i32_0 = arith.constant 0 : i32
    %c0_i32_1 = arith.constant 0 : i32
    return %c0_i32, %c0_i32_0 : i32, i32
  }
  func.func @transform_5(%arg0: i32, %arg1: i32) -> (i32, i32) {
    %c0_i32 = arith.constant 0 : i32
    %c0_i32_0 = arith.constant 0 : i32
    %c0_i32_1 = arith.constant 0 : i32
    return %c0_i32, %c0_i32_0 : i32, i32
  }
  func.func @transform_6(%arg0: i32, %arg1: i32) -> (i32, i32) {
    %c0_i32 = arith.constant 0 : i32
    %c0_i32_0 = arith.constant 0 : i32
    %c0_i32_1 = arith.constant 0 : i32
    return %c0_i32, %c0_i32_0 : i32, i32
  }
  func.func @transform_7(%arg0: i32, %arg1: i32) -> (i32, i32) {
    %c0_i32 = arith.constant 0 : i32
    %c0_i32_0 = arith.constant 0 : i32
    return %arg0, %c0_i32 : i32, i32
  }
}

</mosaic_0001>

<llo_original>
// kernel: decoder_layer.8
$region0: #{decoder_layer.8}
  #allocation0 [shape = 'u32[]', space=smem, size = 0x4, offset = 0x4, fixed_abs, tag = 'smem constant byte address 0x4 - core index']
  #allocation1 [shape = 'u32[72,128]{1,0:T(1,128)}', space=vmem, size = 0x9000, scoped, tag = 'internal scratch']
  %s0 = inlined_call_operand.vmem [shape: f32[16,32], index: 0, kind: input, shape index: {}]
  %s1 = inlined_call_operand.hbm [shape: f32[32,96], index: 1, kind: input, shape index: {}]
  %s2 = inlined_call_operand.vmem [shape: f32[1,96], index: 2, kind: input, shape index: {}]
  %s3 = inlined_call_operand.vmem [shape: f32[16,96], index: 3, kind: output, shape index: {}]
  %s4 = sld [smem:[#allocation0]]
  $region49: #{decoder_layer.8} parent=0
    _
  %s6 = ssub.s32 1, %s4
  %s7 = scalar_select 0, %s6, %s4
  $region1: #{decoder_layer.8} parent=0
    #allocation2 [shape = 'u8[16384]{0}', space=vmem, size = 0x4000, scoped, tag = 'input window, operand 1, single buffered']
    #allocation3 [shape = 's32[2]{0}', space=sflag, size = 0x8, scoped, tag = 'scoped memory for decoder_layer.8']
    %8 = vsyncpa [#allocation3], 0
    loop: start=0, step=1, limit=4
    $region2: #{decoder_layer.8} parent=1 // loop_pre_header
      _
    $region3: #{decoder_layer.8} parent=1 // loop_header
      %s10 = sphi 0, %s14
      %p11 = scmp.ge.s32.totalorder %s10, 4
      %s20 = sphi 0, %s22
      %s23 = sphi 0, %s20
      %s24 = sphi 0, %s23
      %s40 = sphi 0, %s24
      %s44 = sphi 0, %s44
      %s46 = sphi 0, %s44
      %s47 = sphi 0, %s46
      %s61 = sphi 0, %s47
      %s65 = sphi 0, %s65
      %s67 = sphi 0, %s65
      %s68 = sphi 0, %s67
      %s82 = sphi 0, %s68
      %s88 = sphi 0, %s90
      %s91 = sphi 0, %s88
      %s92 = sphi 0, %s91
      %s108 = sphi 0, %s92
    $region4: #{decoder_layer.8} parent=1 // loop_header_branch
      %13 = sbr.rel (%p11) target = $region8
    $region5: #{decoder_layer.8} parent=1 // loop_body
      %s15 = ssub.s32 %s10, 1
      %s16 = ssub.s32 %s10, 2
      %s17 = sadd.s32 %s10, 1
      %s18 = ssub.s32 %s10, %s17
      %p19 = scmp.eq.s32.totalorder %s18, 0
      %s21 = sadd.s32 %s20, 1
      %s22 = scalar_select %p19, %s20, %s21
      %p25 = pneg %p19
      %p26 = scmp.eq.s32.totalorder %s10, 1
      %p27 = por %p25, %p26
      %p28 = scmp.ne.s32.totalorder %s20, %s23
      %p29 = scmp.eq.s32.totalorder %s10, 0
      %p30 = por %p28, %p29
      %p31 = scmp.ne.s32.totalorder %s20, %s23
      %p32 = scmp.eq.s32.totalorder %s15, 1
      %p33 = por %p31, %p32
      %p34 = scmp.ne.s32.totalorder %s23, %s24
      %p35 = scmp.eq.s32.totalorder %s15, 0
      %p36 = por %p34, %p35
      %p37 = scmp.ne.s32.totalorder %s23, %s24
      %p38 = scmp.eq.s32.totalorder %s16, 1
      %p39 = por %p37, %p38
      %p41 = scmp.ne.s32.totalorder %s24, %s40
      %p42 = scmp.eq.s32.totalorder %s16, 0
      %p43 = por %p41, %p42
      %s45 = sadd.s32 %s44, 1
      %p48 = scmp.eq.s32.totalorder %s10, 1
      %p49 = scmp.ne.s32.totalorder %s44, %s46
      %p50 = scmp.eq.s32.totalorder %s10, 0
      %p51 = por %p49, %p50
      %p52 = scmp.ne.s32.totalorder %s44, %s46
      %p53 = scmp.eq.s32.totalorder %s15, 1
      %p54 = por %p52, %p53
      %p55 = scmp.ne.s32.totalorder %s46, %s47
      %p56 = scmp.eq.s32.totalorder %s15, 0
      %p57 = por %p55, %p56
      %p58 = scmp.ne.s32.totalorder %s46, %s47
      %p59 = scmp.eq.s32.totalorder %s16, 1
      %p60 = por %p58, %p59
      %p62 = scmp.ne.s32.totalorder %s47, %s61
      %p63 = scmp.eq.s32.totalorder %s16, 0
      %p64 = por %p62, %p63
      %s66 = sadd.s32 %s65, 1
      %p69 = scmp.eq.s32.totalorder %s10, 1
      %p70 = scmp.ne.s32.totalorder %s65, %s67
      %p71 = scmp.eq.s32.totalorder %s10, 0
      %p72 = por %p70, %p71
      %p73 = scmp.ne.s32.totalorder %s65, %s67
      %p74 = scmp.eq.s32.totalorder %s15, 1
      %p75 = por %p73, %p74
      %p76 = scmp.ne.s32.totalorder %s67, %s68
      %p77 = scmp.eq.s32.totalorder %s15, 0
      %p78 = por %p76, %p77
      %p79 = scmp.ne.s32.totalorder %s67, %s68
      %p80 = scmp.eq.s32.totalorder %s16, 1
      %p81 = por %p79, %p80
      %p83 = scmp.ne.s32.totalorder %s68, %s82
      %p84 = scmp.eq.s32.totalorder %s16, 0
      %p85 = por %p83, %p84
      %s86 = ssub.s32 %s10, %s17
      %p87 = scmp.eq.s32.totalorder %s86, 0
      %s89 = sadd.s32 %s88, 1
      %s90 = scalar_select %p87, %s88, %s89
      %p93 = pneg %p87
      %p94 = scmp.eq.s32.totalorder %s10, 1
      %p95 = por %p93, %p94
      %p96 = scmp.ne.s32.totalorder %s88, %s91
      %p97 = scmp.eq.s32.totalorder %s10, 0
      %p98 = por %p96, %p97
      %p99 = scmp.ne.s32.totalorder %s88, %s91
      %p100 = scmp.eq.s32.totalorder %s15, 1
      %p101 = por %p99, %p100
      %p102 = scmp.ne.s32.totalorder %s91, %s92
      %p103 = scmp.eq.s32.totalorder %s15, 0
      %p104 = por %p102, %p103
      %p105 = scmp.ne.s32.totalorder %s91, %s92
      %p106 = scmp.eq.s32.totalorder %s16, 1
      %p107 = por %p105, %p106
      %p109 = scmp.ne.s32.totalorder %s92, %s108
      %p110 = scmp.eq.s32.totalorder %s16, 0
      %p111 = por %p109, %p110
      %p112 = scmp.le.s32.totalorder 1, %s10
      %p113 = scmp.lt.s32.totalorder %s10, 3
      %p114 = pnand %p112, %p113
      %p115 = pneg %p114
      // Predicated region
      $region9: #{decoder_layer.8} parent=5 // pred_check
        _
      $region10: #{decoder_layer.8} parent=5 // pred_check_branch
        %117 = sbr.rel (%p114) target = $region12
      $region11: #{decoder_layer.8} parent=5 // pred_region
        %s118 = ssub.s32 %s10, 1
        // Predicated region
        $region13: #{decoder_layer.8} parent=11 // pred_check
          %p119 = pneg %p57
        $region14: #{decoder_layer.8} parent=11 // pred_check_branch
          %121 = sbr.rel (%p119) target = $region16
        $region15: #{decoder_layer.8} parent=11 // pred_region
          %123 = vsyncadd [#allocation3], 0
          %s124 = sshll.u32 %s1, 4
          %s125 = int_to_ptr.hbm [resolvable:$true] %s124
          %s126 = sshll.u32 [#allocation2], 4
          %s127 = int_to_ptr.vmem [resolvable:$true] %s126
          %132 = dma.hbm_to_vmem [thread:$0]  %s125, 512, %s127, [#allocation3], 128, 128, 8
        $region16: #{decoder_layer.8} parent=11 // pred_fallthru
          _
        // Predicated region
        $region17: #{decoder_layer.8} parent=11 // pred_check
          %p133 = pneg %p78
        $region18: #{decoder_layer.8} parent=11 // pred_check_branch
          %135 = sbr.rel (%p133) target = $region20
        $region19: #{decoder_layer.8} parent=11 // pred_region
          _
        $region20: #{decoder_layer.8} parent=11 // pred_fallthru
          _
      $region12: #{decoder_layer.8} parent=5 // pred_fallthru
        _
      %p136 = scmp.lt.s32.totalorder %s10, 2
      // Predicated region
      $region21: #{decoder_layer.8} parent=5 // pred_check
        %p137 = pneg %p136
      $region22: #{decoder_layer.8} parent=5 // pred_check_branch
        %139 = sbr.rel (%p137) target = $region24
      $region23: #{decoder_layer.8} parent=5 // pred_region
        // Predicated region
        $region25: #{decoder_layer.8} parent=23 // pred_check
          %p140 = pneg %p30
        $region26: #{decoder_layer.8} parent=23 // pred_check_branch
          %142 = sbr.rel (%p140) target = $region28
        $region27: #{decoder_layer.8} parent=23 // pred_region
          %p143 = scmp.lt.s32.totalorder %s10, 1
          %s144 = scalar_select %p143, %s10, 1
          %s145 = smul.addr %s144, 8
          %s146 = scalar_lea.vmem %s0, %s145
        $region28: #{decoder_layer.8} parent=23 // pred_fallthru
          _
      $region24: #{decoder_layer.8} parent=5 // pred_fallthru
        _
      %p147 = scmp.le.s32.totalorder 1, %s10
      %p148 = scmp.lt.s32.totalorder %s10, 3
      %p149 = pnand %p147, %p148
      %p150 = pneg %p149
      // Predicated region
      $region29: #{decoder_layer.8} parent=5 // pred_check
        _
      $region30: #{decoder_layer.8} parent=5 // pred_check_branch
        %152 = sbr.rel (%p149) target = $region32
      $region31: #{decoder_layer.8} parent=5 // pred_region
        %s153 = ssub.s32 %s10, 1
        // Predicated region
        $region33: #{decoder_layer.8} parent=31 // pred_check
          %p154 = pneg %p57
        $region34: #{decoder_layer.8} parent=31 // pred_check_branch
          %156 = sbr.rel (%p154) target = $region36
        $region35: #{decoder_layer.8} parent=31 // pred_region
          %158 = dma.done [#allocation3], 512
        $region36: #{decoder_layer.8} parent=31 // pred_fallthru
          _
        %p159 = scmp.lt.s32.totalorder %s15, 1
        %s160 = scalar_select %p159, %s15, 1
        %s161 = smul.addr %s160, 8
        %s162 = scalar_lea.vmem %s0, %s161
        %p163 = pneg %p36
        %p164 = pneg %p33
        %p165 = pneg %p57
        %p166 = pneg %p54
        %p167 = pneg %p78
        %p168 = pneg %p75
        %p169 = pneg %p104
        %p170 = pneg %p101
        %p171 = scmp.lt.s32.totalorder %s15, 1
        %s172 = scalar_select %p171, %s15, 1
        %s173 = smul.addr %s172, 8
        %s174 = scalar_lea.vmem %s3, %s173
        %p175 = scmp.lt.s32.totalorder %s15, 1
        %s176 = scalar_select %p175, %s15, 1
        %s177 = smul.addr %s176, 8
        %s178 = scalar_lea.vmem %s0, %s177
        %p179 = scmp.lt.s32.totalorder %s15, 1
        %s180 = scalar_select %p179, %s15, 1
        %s181 = smul.addr %s180, 8
        %s182 = scalar_lea.vmem %s3, %s181
        %v183 = vld [vmem:[%s178] sm:$0xff]
        %v184 = vld [vmem:[#allocation2] sm:$0xff]
        %v185 = vld [vmem:[#allocation2 + $0x8] sm:$0xff]
        %v186 = vld [vmem:[#allocation2 + $0x10] sm:$0xff]
        %v187 = vld [vmem:[#allocation2 + $0x18] sm:$0xff]
        %v188 = vld [vmem:[%s2] sm:$0x1]
        %v190 = vperm.slane %v188, 0
        %vm192 = vcmask 261120
        %v194 = vsel %vm192, %v183, 0
        %196 = vmatpush.msra.mxu0 0.0
        %197 = vmatpush.msra.mxu0 0.0
        %198 = vmatpush.msra.mxu0 0.0
        %199 = vmatpush.msra.mxu0 0.0
        %200 = vmatpush.msra.mxu0 0.0
        %201 = vmatpush.msra.mxu0 0.0
        %202 = vmatpush.msra.mxu0 0.0
        %203 = vmatpush.msra.mxu0 0.0
        %204 = vmatpush.msra.mxu0 0.0
        %205 = vmatpush.msra.mxu0 0.0
        %206 = vmatpush.msra.mxu0 0.0
        %207 = vmatpush.msra.mxu0 0.0
        %208 = vmatpush.msra.mxu0 %v187
        %209 = vmatpush.msra.mxu0 %v186
        %210 = vmatpush.msra.mxu0 %v185
        %211 = vmatpush.msra.mxu0 %v184
        %212 = vmatmul.f32.gmra.mxu0 %v194
        %v213 = vpop.f32.mrf.mxu0
        %v214 = vadd.f32 %v190, %v213
        %215 = vdwg.mxu0
        %vm216 = vcmask 785408
        %217 = vst.msk [vmem:[%s182] sm:$0xff] %vm216, %v214
        %p218 = scmp.lt.s32.totalorder %s15, 1
        %s219 = scalar_select %p218, %s15, 1
        %s220 = smul.addr %s219, 8
        %s221 = scalar_lea.vmem %s3, %s220
        // Predicated region
        $region37: #{decoder_layer.8} parent=31 // pred_check
          %p222 = pneg %p101
        $region38: #{decoder_layer.8} parent=31 // pred_check_branch
          %224 = sbr.rel (%p222) target = $region40
        $region39: #{decoder_layer.8} parent=31 // pred_region
          _
        $region40: #{decoder_layer.8} parent=31 // pred_fallthru
          _
      $region32: #{decoder_layer.8} parent=5 // pred_fallthru
        _
      %p225 = scmp.le.s32.totalorder 2, %s10
      // Predicated region
      $region41: #{decoder_layer.8} parent=5 // pred_check
        %p226 = pneg %p225
      $region42: #{decoder_layer.8} parent=5 // pred_check_branch
        %228 = sbr.rel (%p226) target = $region44
      $region43: #{decoder_layer.8} parent=5 // pred_region
        %s229 = ssub.s32 %s10, 2
        // Predicated region
        $region45: #{decoder_layer.8} parent=43 // pred_check
          %p230 = pneg %p107
        $region46: #{decoder_layer.8} parent=43 // pred_check_branch
          %232 = sbr.rel (%p230) target = $region48
        $region47: #{decoder_layer.8} parent=43 // pred_region
          %p233 = scmp.lt.s32.totalorder %s16, 1
          %s234 = scalar_select %p233, %s16, 1
          %s235 = smul.addr %s234, 8
          %s236 = scalar_lea.vmem %s3, %s235
        $region48: #{decoder_layer.8} parent=43 // pred_fallthru
          _
      $region44: #{decoder_layer.8} parent=5 // pred_fallthru
        _
    $region6: #{decoder_layer.8} parent=1 // loop_footer
      %s14 = sadd.s32 1, %s10
    $region7: #{decoder_layer.8} parent=1 // loop_footer_branch
      %9 = sbr.rel target = $region3
    $region8: #{decoder_layer.8} parent=1 // loop_exit
      _
    %237 = vsyncpa [#allocation3], 1
    %s238 = scalar_lea.sflag [#allocation3], 1
    %239 = vsyncpa %s238, 1

// kernel: decoder_layer.11
$region0: #{decoder_layer.11}
  #allocation0 [shape = 'u32[]', space=smem, size = 0x4, offset = 0x4, fixed_abs, tag = 'smem constant byte address 0x4 - core index']
  #allocation1 [shape = 'u32[72,128]{1,0:T(1,128)}', space=vmem, size = 0x9000, scoped, tag = 'internal scratch']
  %s0 = inlined_call_operand.vmem [shape: f32[16,32], index: 0, kind: input, shape index: {}]
  %s1 = inlined_call_operand.vmem [shape: f32[32,32], index: 1, kind: input, shape index: {}]
  %s2 = inlined_call_operand.vmem [shape: f32[1,32], index: 2, kind: input, shape index: {}]
  %s3 = inlined_call_operand.vmem [shape: f32[16,32], index: 3, kind: output, shape index: {}]
  %s4 = sld [smem:[#allocation0]]
  $region45: #{decoder_layer.11} parent=0
    _
  %s6 = ssub.s32 1, %s4
  %s7 = scalar_select 0, %s6, %s4
  loop: start=0, step=1, limit=4
  $region2: #{decoder_layer.11} parent=0 // loop_pre_header
    _
  $region3: #{decoder_layer.11} parent=0 // loop_header
    %s9 = sphi 0, %s13
    %p10 = scmp.ge.s32.totalorder %s9, 4
    %s19 = sphi 0, %s21
    %s22 = sphi 0, %s19
    %s23 = sphi 0, %s22
    %s39 = sphi 0, %s23
    %s43 = sphi 0, %s43
    %s45 = sphi 0, %s43
    %s46 = sphi 0, %s45
    %s60 = sphi 0, %s46
    %s64 = sphi 0, %s64
    %s66 = sphi 0, %s64
    %s67 = sphi 0, %s66
    %s81 = sphi 0, %s67
    %s87 = sphi 0, %s89
    %s90 = sphi 0, %s87
    %s91 = sphi 0, %s90
    %s107 = sphi 0, %s91
  $region4: #{decoder_layer.11} parent=0 // loop_header_branch
    %12 = sbr.rel (%p10) target = $region8
  $region5: #{decoder_layer.11} parent=0 // loop_body
    %s14 = ssub.s32 %s9, 1
    %s15 = ssub.s32 %s9, 2
    %s16 = sadd.s32 %s9, 1
    %s17 = ssub.s32 %s9, %s16
    %p18 = scmp.eq.s32.totalorder %s17, 0
    %s20 = sadd.s32 %s19, 1
    %s21 = scalar_select %p18, %s19, %s20
    %p24 = pneg %p18
    %p25 = scmp.eq.s32.totalorder %s9, 1
    %p26 = por %p24, %p25
    %p27 = scmp.ne.s32.totalorder %s19, %s22
    %p28 = scmp.eq.s32.totalorder %s9, 0
    %p29 = por %p27, %p28
    %p30 = scmp.ne.s32.totalorder %s19, %s22
    %p31 = scmp.eq.s32.totalorder %s14, 1
    %p32 = por %p30, %p31
    %p33 = scmp.ne.s32.totalorder %s22, %s23
    %p34 = scmp.eq.s32.totalorder %s14, 0
    %p35 = por %p33, %p34
    %p36 = scmp.ne.s32.totalorder %s22, %s23
    %p37 = scmp.eq.s32.totalorder %s15, 1
    %p38 = por %p36, %p37
    %p40 = scmp.ne.s32.totalorder %s23, %s39
    %p41 = scmp.eq.s32.totalorder %s15, 0
    %p42 = por %p40, %p41
    %s44 = sadd.s32 %s43, 1
    %p47 = scmp.eq.s32.totalorder %s9, 1
    %p48 = scmp.ne.s32.totalorder %s43, %s45
    %p49 = scmp.eq.s32.totalorder %s9, 0
    %p50 = por %p48, %p49
    %p51 = scmp.ne.s32.totalorder %s43, %s45
    %p52 = scmp.eq.s32.totalorder %s14, 1
    %p53 = por %p51, %p52
    %p54 = scmp.ne.s32.totalorder %s45, %s46
    %p55 = scmp.eq.s32.totalorder %s14, 0
    %p56 = por %p54, %p55
    %p57 = scmp.ne.s32.totalorder %s45, %s46
    %p58 = scmp.eq.s32.totalorder %s15, 1
    %p59 = por %p57, %p58
    %p61 = scmp.ne.s32.totalorder %s46, %s60
    %p62 = scmp.eq.s32.totalorder %s15, 0
    %p63 = por %p61, %p62
    %s65 = sadd.s32 %s64, 1
    %p68 = scmp.eq.s32.totalorder %s9, 1
    %p69 = scmp.ne.s32.totalorder %s64, %s66
    %p70 = scmp.eq.s32.totalorder %s9, 0
    %p71 = por %p69, %p70
    %p72 = scmp.ne.s32.totalorder %s64, %s66
    %p73 = scmp.eq.s32.totalorder %s14, 1
    %p74 = por %p72, %p73
    %p75 = scmp.ne.s32.totalorder %s66, %s67
    %p76 = scmp.eq.s32.totalorder %s14, 0
    %p77 = por %p75, %p76
    %p78 = scmp.ne.s32.totalorder %s66, %s67
    %p79 = scmp.eq.s32.totalorder %s15, 1
    %p80 = por %p78, %p79
    %p82 = scmp.ne.s32.totalorder %s67, %s81
    %p83 = scmp.eq.s32.totalorder %s15, 0
    %p84 = por %p82, %p83
    %s85 = ssub.s32 %s9, %s16
    %p86 = scmp.eq.s32.totalorder %s85, 0
    %s88 = sadd.s32 %s87, 1
    %s89 = scalar_select %p86, %s87, %s88
    %p92 = pneg %p86
    %p93 = scmp.eq.s32.totalorder %s9, 1
    %p94 = por %p92, %p93
    %p95 = scmp.ne.s32.totalorder %s87, %s90
    %p96 = scmp.eq.s32.totalorder %s9, 0
    %p97 = por %p95, %p96
    %p98 = scmp.ne.s32.totalorder %s87, %s90
    %p99 = scmp.eq.s32.totalorder %s14, 1
    %p100 = por %p98, %p99
    %p101 = scmp.ne.s32.totalorder %s90, %s91
    %p102 = scmp.eq.s32.totalorder %s14, 0
    %p103 = por %p101, %p102
    %p104 = scmp.ne.s32.totalorder %s90, %s91
    %p105 = scmp.eq.s32.totalorder %s15, 1
    %p106 = por %p104, %p105
    %p108 = scmp.ne.s32.totalorder %s91, %s107
    %p109 = scmp.eq.s32.totalorder %s15, 0
    %p110 = por %p108, %p109
    %p111 = scmp.le.s32.totalorder 1, %s9
    %p112 = scmp.lt.s32.totalorder %s9, 3
    %p113 = pnand %p111, %p112
    %p114 = pneg %p113
    // Predicated region
    $region9: #{decoder_layer.11} parent=5 // pred_check
      _
    $region10: #{decoder_layer.11} parent=5 // pred_check_branch
      %116 = sbr.rel (%p113) target = $region12
    $region11: #{decoder_layer.11} parent=5 // pred_region
      %s117 = ssub.s32 %s9, 1
      // Predicated region
      $region13: #{decoder_layer.11} parent=11 // pred_check
        %p118 = pneg %p56
      $region14: #{decoder_layer.11} parent=11 // pred_check_branch
        %120 = sbr.rel (%p118) target = $region16
      $region15: #{decoder_layer.11} parent=11 // pred_region
        _
      $region16: #{decoder_layer.11} parent=11 // pred_fallthru
        _
      // Predicated region
      $region17: #{decoder_layer.11} parent=11 // pred_check
        %p121 = pneg %p77
      $region18: #{decoder_layer.11} parent=11 // pred_check_branch
        %123 = sbr.rel (%p121) target = $region20
      $region19: #{decoder_layer.11} parent=11 // pred_region
        _
      $region20: #{decoder_layer.11} parent=11 // pred_fallthru
        _
    $region12: #{decoder_layer.11} parent=5 // pred_fallthru
      _
    %p124 = scmp.lt.s32.totalorder %s9, 2
    // Predicated region
    $region21: #{decoder_layer.11} parent=5 // pred_check
      %p125 = pneg %p124
    $region22: #{decoder_layer.11} parent=5 // pred_check_branch
      %127 = sbr.rel (%p125) target = $region24
    $region23: #{decoder_layer.11} parent=5 // pred_region
      // Predicated region
      $region25: #{decoder_layer.11} parent=23 // pred_check
        %p128 = pneg %p29
      $region26: #{decoder_layer.11} parent=23 // pred_check_branch
        %130 = sbr.rel (%p128) target = $region28
      $region27: #{decoder_layer.11} parent=23 // pred_region
        %p131 = scmp.lt.s32.totalorder %s9, 1
        %s132 = scalar_select %p131, %s9, 1
        %s133 = smul.addr %s132, 8
        %s134 = scalar_lea.vmem %s0, %s133
      $region28: #{decoder_layer.11} parent=23 // pred_fallthru
        _
    $region24: #{decoder_layer.11} parent=5 // pred_fallthru
      _
    %p135 = scmp.le.s32.totalorder 1, %s9
    %p136 = scmp.lt.s32.totalorder %s9, 3
    %p137 = pnand %p135, %p136
    %p138 = pneg %p137
    // Predicated region
    $region29: #{decoder_layer.11} parent=5 // pred_check
      _
    $region30: #{decoder_layer.11} parent=5 // pred_check_branch
      %140 = sbr.rel (%p137) target = $region32
    $region31: #{decoder_layer.11} parent=5 // pred_region
      %s141 = ssub.s32 %s9, 1
      %p142 = scmp.lt.s32.totalorder %s14, 1
      %s143 = scalar_select %p142, %s14, 1
      %s144 = smul.addr %s143, 8
      %s145 = scalar_lea.vmem %s0, %s144
      %p146 = pneg %p35
      %p147 = pneg %p32
      %p148 = pneg %p56
      %p149 = pneg %p53
      %p150 = pneg %p77
      %p151 = pneg %p74
      %p152 = pneg %p103
      %p153 = pneg %p100
      %p154 = scmp.lt.s32.totalorder %s14, 1
      %s155 = scalar_select %p154, %s14, 1
      %s156 = smul.addr %s155, 8
      %s157 = scalar_lea.vmem %s3, %s156
      %p158 = scmp.lt.s32.totalorder %s14, 1
      %s159 = scalar_select %p158, %s14, 1
      %s160 = smul.addr %s159, 8
      %s161 = scalar_lea.vmem %s0, %s160
      %p162 = scmp.lt.s32.totalorder %s14, 1
      %s163 = scalar_select %p162, %s14, 1
      %s164 = smul.addr %s163, 8
      %s165 = scalar_lea.vmem %s3, %s164
      %v166 = vld [vmem:[%s161] sm:$0xff]
      %v167 = vld [vmem:[%s1] sm:$0xff]
      %v168 = vld [vmem:[%s1 + $0x8] sm:$0xff]
      %v169 = vld [vmem:[%s1 + $0x10] sm:$0xff]
      %v170 = vld [vmem:[%s1 + $0x18] sm:$0xff]
      %v171 = vld [vmem:[%s2] sm:$0x1]
      %v173 = vperm.slane %v171, 0
      %vm175 = vcmask 261120
      %v177 = vsel %vm175, %v166, 0
      %179 = vmatpush.msra.mxu0 0.0
      %180 = vmatpush.msra.mxu0 0.0
      %181 = vmatpush.msra.mxu0 0.0
      %182 = vmatpush.msra.mxu0 0.0
      %183 = vmatpush.msra.mxu0 0.0
      %184 = vmatpush.msra.mxu0 0.0
      %185 = vmatpush.msra.mxu0 0.0
      %186 = vmatpush.msra.mxu0 0.0
      %187 = vmatpush.msra.mxu0 0.0
      %188 = vmatpush.msra.mxu0 0.0
      %189 = vmatpush.msra.mxu0 0.0
      %190 = vmatpush.msra.mxu0 0.0
      %191 = vmatpush.msra.mxu0 %v170
      %192 = vmatpush.msra.mxu0 %v169
      %193 = vmatpush.msra.mxu0 %v168
      %194 = vmatpush.msra.mxu0 %v167
      %195 = vmatmul.f32.gmra.mxu0 %v177
      %v196 = vpop.f32.mrf.mxu0
      %v197 = vadd.f32 %v173, %v196
      %198 = vdwg.mxu0
      %199 = vst.msk [vmem:[%s165] sm:$0xff] %vm175, %v197
      %p200 = scmp.lt.s32.totalorder %s14, 1
      %s201 = scalar_select %p200, %s14, 1
      %s202 = smul.addr %s201, 8
      %s203 = scalar_lea.vmem %s3, %s202
      // Predicated region
      $region33: #{decoder_layer.11} parent=31 // pred_check
        %p204 = pneg %p100
      $region34: #{decoder_layer.11} parent=31 // pred_check_branch
        %206 = sbr.rel (%p204) target = $region36
      $region35: #{decoder_layer.11} parent=31 // pred_region
        _
      $region36: #{decoder_layer.11} parent=31 // pred_fallthru
        _
    $region32: #{decoder_layer.11} parent=5 // pred_fallthru
      _
    %p207 = scmp.le.s32.totalorder 2, %s9
    // Predicated region
    $region37: #{decoder_layer.11} parent=5 // pred_check
      %p208 = pneg %p207
    $region38: #{decoder_layer.11} parent=5 // pred_check_branch
      %210 = sbr.rel (%p208) target = $region40
    $region39: #{decoder_layer.11} parent=5 // pred_region
      %s211 = ssub.s32 %s9, 2
      // Predicated region
      $region41: #{decoder_layer.11} parent=39 // pred_check
        %p212 = pneg %p106
      $region42: #{decoder_layer.11} parent=39 // pred_check_branch
        %214 = sbr.rel (%p212) target = $region44
      $region43: #{decoder_layer.11} parent=39 // pred_region
        %p215 = scmp.lt.s32.totalorder %s15, 1
        %s216 = scalar_select %p215, %s15, 1
        %s217 = smul.addr %s216, 8
        %s218 = scalar_lea.vmem %s3, %s217
      $region44: #{decoder_layer.11} parent=39 // pred_fallthru
        _
    $region40: #{decoder_layer.11} parent=5 // pred_fallthru
      _
  $region6: #{decoder_layer.11} parent=0 // loop_footer
    %s13 = sadd.s32 1, %s9
  $region7: #{decoder_layer.11} parent=0 // loop_footer_branch
    %8 = sbr.rel target = $region3
  $region8: #{decoder_layer.11} parent=0 // loop_exit
    _

// kernel: decoder_layer.10
$region0: #{decoder_layer.10}
  #allocation0 [shape = 'u32[]', space=smem, size = 0x4, offset = 0x4, fixed_abs, tag = 'smem constant byte address 0x4 - core index']
  #allocation1 [shape = 'u32[72,128]{1,0:T(1,128)}', space=vmem, size = 0x9000, scoped, tag = 'internal scratch']
  %s0 = inlined_call_operand.vmem [shape: f32[16,32], index: 0, kind: input, shape index: {}]
  %s1 = inlined_call_operand.vmem [shape: f32[16,32], index: 1, kind: input, shape index: {}]
  %s2 = inlined_call_operand.vmem [shape: f32[32,32], index: 2, kind: input, shape index: {}]
  %s3 = inlined_call_operand.vmem [shape: f32[1,32], index: 3, kind: input, shape index: {}]
  %s4 = inlined_call_operand.vmem [shape: f32[1,32], index: 4, kind: input, shape index: {}]
  %s5 = inlined_call_operand.vmem [shape: f32[1,32], index: 5, kind: input, shape index: {}]
  %s6 = inlined_call_operand.vmem [shape: f32[16,32], index: 6, kind: output, shape index: {}]
  %s7 = sld [smem:[#allocation0]]
  $region57: #{decoder_layer.10} parent=0
    _
  %s9 = ssub.s32 1, %s7
  %s10 = scalar_select 0, %s9, %s7
  loop: start=0, step=1, limit=4
  $region2: #{decoder_layer.10} parent=0 // loop_pre_header
    _
  $region3: #{decoder_layer.10} parent=0 // loop_header
    %s12 = sphi 0, %s16
    %p13 = scmp.ge.s32.totalorder %s12, 4
    %s22 = sphi 0, %s24
    %s25 = sphi 0, %s22
    %s26 = sphi 0, %s25
    %s42 = sphi 0, %s26
    %s48 = sphi 0, %s50
    %s51 = sphi 0, %s48
    %s52 = sphi 0, %s51
    %s68 = sphi 0, %s52
    %s72 = sphi 0, %s72
    %s74 = sphi 0, %s72
    %s75 = sphi 0, %s74
    %s89 = sphi 0, %s75
    %s93 = sphi 0, %s93
    %s95 = sphi 0, %s93
    %s96 = sphi 0, %s95
    %s110 = sphi 0, %s96
    %s114 = sphi 0, %s114
    %s116 = sphi 0, %s114
    %s117 = sphi 0, %s116
    %s131 = sphi 0, %s117
    %s135 = sphi 0, %s135
    %s137 = sphi 0, %s135
    %s138 = sphi 0, %s137
    %s152 = sphi 0, %s138
    %s158 = sphi 0, %s160
    %s161 = sphi 0, %s158
    %s162 = sphi 0, %s161
    %s178 = sphi 0, %s162
  $region4: #{decoder_layer.10} parent=0 // loop_header_branch
    %15 = sbr.rel (%p13) target = $region8
  $region5: #{decoder_layer.10} parent=0 // loop_body
    %s17 = ssub.s32 %s12, 1
    %s18 = ssub.s32 %s12, 2
    %s19 = sadd.s32 %s12, 1
    %s20 = ssub.s32 %s12, %s19
    %p21 = scmp.eq.s32.totalorder %s20, 0
    %s23 = sadd.s32 %s22, 1
    %s24 = scalar_select %p21, %s22, %s23
    %p27 = pneg %p21
    %p28 = scmp.eq.s32.totalorder %s12, 1
    %p29 = por %p27, %p28
    %p30 = scmp.ne.s32.totalorder %s22, %s25
    %p31 = scmp.eq.s32.totalorder %s12, 0
    %p32 = por %p30, %p31
    %p33 = scmp.ne.s32.totalorder %s22, %s25
    %p34 = scmp.eq.s32.totalorder %s17, 1
    %p35 = por %p33, %p34
    %p36 = scmp.ne.s32.totalorder %s25, %s26
    %p37 = scmp.eq.s32.totalorder %s17, 0
    %p38 = por %p36, %p37
    %p39 = scmp.ne.s32.totalorder %s25, %s26
    %p40 = scmp.eq.s32.totalorder %s18, 1
    %p41 = por %p39, %p40
    %p43 = scmp.ne.s32.totalorder %s26, %s42
    %p44 = scmp.eq.s32.totalorder %s18, 0
    %p45 = por %p43, %p44
    %s46 = ssub.s32 %s12, %s19
    %p47 = scmp.eq.s32.totalorder %s46, 0
    %s49 = sadd.s32 %s48, 1
    %s50 = scalar_select %p47, %s48, %s49
    %p53 = pneg %p47
    %p54 = scmp.eq.s32.totalorder %s12, 1
    %p55 = por %p53, %p54
    %p56 = scmp.ne.s32.totalorder %s48, %s51
    %p57 = scmp.eq.s32.totalorder %s12, 0
    %p58 = por %p56, %p57
    %p59 = scmp.ne.s32.totalorder %s48, %s51
    %p60 = scmp.eq.s32.totalorder %s17, 1
    %p61 = por %p59, %p60
    %p62 = scmp.ne.s32.totalorder %s51, %s52
    %p63 = scmp.eq.s32.totalorder %s17, 0
    %p64 = por %p62, %p63
    %p65 = scmp.ne.s32.totalorder %s51, %s52
    %p66 = scmp.eq.s32.totalorder %s18, 1
    %p67 = por %p65, %p66
    %p69 = scmp.ne.s32.totalorder %s52, %s68
    %p70 = scmp.eq.s32.totalorder %s18, 0
    %p71 = por %p69, %p70
    %s73 = sadd.s32 %s72, 1
    %p76 = scmp.eq.s32.totalorder %s12, 1
    %p77 = scmp.ne.s32.totalorder %s72, %s74
    %p78 = scmp.eq.s32.totalorder %s12, 0
    %p79 = por %p77, %p78
    %p80 = scmp.ne.s32.totalorder %s72, %s74
    %p81 = scmp.eq.s32.totalorder %s17, 1
    %p82 = por %p80, %p81
    %p83 = scmp.ne.s32.totalorder %s74, %s75
    %p84 = scmp.eq.s32.totalorder %s17, 0
    %p85 = por %p83, %p84
    %p86 = scmp.ne.s32.totalorder %s74, %s75
    %p87 = scmp.eq.s32.totalorder %s18, 1
    %p88 = por %p86, %p87
    %p90 = scmp.ne.s32.totalorder %s75, %s89
    %p91 = scmp.eq.s32.totalorder %s18, 0
    %p92 = por %p90, %p91
    %s94 = sadd.s32 %s93, 1
    %p97 = scmp.eq.s32.totalorder %s12, 1
    %p98 = scmp.ne.s32.totalorder %s93, %s95
    %p99 = scmp.eq.s32.totalorder %s12, 0
    %p100 = por %p98, %p99
    %p101 = scmp.ne.s32.totalorder %s93, %s95
    %p102 = scmp.eq.s32.totalorder %s17, 1
    %p103 = por %p101, %p102
    %p104 = scmp.ne.s32.totalorder %s95, %s96
    %p105 = scmp.eq.s32.totalorder %s17, 0
    %p106 = por %p104, %p105
    %p107 = scmp.ne.s32.totalorder %s95, %s96
    %p108 = scmp.eq.s32.totalorder %s18, 1
    %p109 = por %p107, %p108
    %p111 = scmp.ne.s32.totalorder %s96, %s110
    %p112 = scmp.eq.s32.totalorder %s18, 0
    %p113 = por %p111, %p112
    %s115 = sadd.s32 %s114, 1
    %p118 = scmp.eq.s32.totalorder %s12, 1
    %p119 = scmp.ne.s32.totalorder %s114, %s116
    %p120 = scmp.eq.s32.totalorder %s12, 0
    %p121 = por %p119, %p120
    %p122 = scmp.ne.s32.totalorder %s114, %s116
    %p123 = scmp.eq.s32.totalorder %s17, 1
    %p124 = por %p122, %p123
    %p125 = scmp.ne.s32.totalorder %s116, %s117
    %p126 = scmp.eq.s32.totalorder %s17, 0
    %p127 = por %p125, %p126
    %p128 = scmp.ne.s32.totalorder %s116, %s117
    %p129 = scmp.eq.s32.totalorder %s18, 1
    %p130 = por %p128, %p129
    %p132 = scmp.ne.s32.totalorder %s117, %s131
    %p133 = scmp.eq.s32.totalorder %s18, 0
    %p134 = por %p132, %p133
    %s136 = sadd.s32 %s135, 1
    %p139 = scmp.eq.s32.totalorder %s12, 1
    %p140 = scmp.ne.s32.totalorder %s135, %s137
    %p141 = scmp.eq.s32.totalorder %s12, 0
    %p142 = por %p140, %p141
    %p143 = scmp.ne.s32.totalorder %s135, %s137
    %p144 = scmp.eq.s32.totalorder %s17, 1
    %p145 = por %p143, %p144
    %p146 = scmp.ne.s32.totalorder %s137, %s138
    %p147 = scmp.eq.s32.totalorder %s17, 0
    %p148 = por %p146, %p147
    %p149 = scmp.ne.s32.totalorder %s137, %s138
    %p150 = scmp.eq.s32.totalorder %s18, 1
    %p151 = por %p149, %p150
    %p153 = scmp.ne.s32.totalorder %s138, %s152
    %p154 = scmp.eq.s32.totalorder %s18, 0
    %p155 = por %p153, %p154
    %s156 = ssub.s32 %s12, %s19
    %p157 = scmp.eq.s32.totalorder %s156, 0
    %s159 = sadd.s32 %s158, 1
    %s160 = scalar_select %p157, %s158, %s159
    %p163 = pneg %p157
    %p164 = scmp.eq.s32.totalorder %s12, 1
    %p165 = por %p163, %p164
    %p166 = scmp.ne.s32.totalorder %s158, %s161
    %p167 = scmp.eq.s32.totalorder %s12, 0
    %p168 = por %p166, %p167
    %p169 = scmp.ne.s32.totalorder %s158, %s161
    %p170 = scmp.eq.s32.totalorder %s17, 1
    %p171 = por %p169, %p170
    %p172 = scmp.ne.s32.totalorder %s161, %s162
    %p173 = scmp.eq.s32.totalorder %s17, 0
    %p174 = por %p172, %p173
    %p175 = scmp.ne.s32.totalorder %s161, %s162
    %p176 = scmp.eq.s32.totalorder %s18, 1
    %p177 = por %p175, %p176
    %p179 = scmp.ne.s32.totalorder %s162, %s178
    %p180 = scmp.eq.s32.totalorder %s18, 0
    %p181 = por %p179, %p180
    %p182 = scmp.le.s32.totalorder 1, %s12
    %p183 = scmp.lt.s32.totalorder %s12, 3
    %p184 = pnand %p182, %p183
    %p185 = pneg %p184
    // Predicated region
    $region9: #{decoder_layer.10} parent=5 // pred_check
      _
    $region10: #{decoder_layer.10} parent=5 // pred_check_branch
      %187 = sbr.rel (%p184) target = $region12
    $region11: #{decoder_layer.10} parent=5 // pred_region
      %s188 = ssub.s32 %s12, 1
      // Predicated region
      $region13: #{decoder_layer.10} parent=11 // pred_check
        %p189 = pneg %p85
      $region14: #{decoder_layer.10} parent=11 // pred_check_branch
        %191 = sbr.rel (%p189) target = $region16
      $region15: #{decoder_layer.10} parent=11 // pred_region
        _
      $region16: #{decoder_layer.10} parent=11 // pred_fallthru
        _
      // Predicated region
      $region17: #{decoder_layer.10} parent=11 // pred_check
        %p192 = pneg %p106
      $region18: #{decoder_layer.10} parent=11 // pred_check_branch
        %194 = sbr.rel (%p192) target = $region20
      $region19: #{decoder_layer.10} parent=11 // pred_region
        _
      $region20: #{decoder_layer.10} parent=11 // pred_fallthru
        _
      // Predicated region
      $region21: #{decoder_layer.10} parent=11 // pred_check
        %p195 = pneg %p127
      $region22: #{decoder_layer.10} parent=11 // pred_check_branch
        %197 = sbr.rel (%p195) target = $region24
      $region23: #{decoder_layer.10} parent=11 // pred_region
        _
      $region24: #{decoder_layer.10} parent=11 // pred_fallthru
        _
      // Predicated region
      $region25: #{decoder_layer.10} parent=11 // pred_check
        %p198 = pneg %p148
      $region26: #{decoder_layer.10} parent=11 // pred_check_branch
        %200 = sbr.rel (%p198) target = $region28
      $region27: #{decoder_layer.10} parent=11 // pred_region
        _
      $region28: #{decoder_layer.10} parent=11 // pred_fallthru
        _
    $region12: #{decoder_layer.10} parent=5 // pred_fallthru
      _
    %p201 = scmp.lt.s32.totalorder %s12, 2
    // Predicated region
    $region29: #{decoder_layer.10} parent=5 // pred_check
      %p202 = pneg %p201
    $region30: #{decoder_layer.10} parent=5 // pred_check_branch
      %204 = sbr.rel (%p202) target = $region32
    $region31: #{decoder_layer.10} parent=5 // pred_region
      // Predicated region
      $region33: #{decoder_layer.10} parent=31 // pred_check
        %p205 = pneg %p32
      $region34: #{decoder_layer.10} parent=31 // pred_check_branch
        %207 = sbr.rel (%p205) target = $region36
      $region35: #{decoder_layer.10} parent=31 // pred_region
        %p208 = scmp.lt.s32.totalorder %s12, 1
        %s209 = scalar_select %p208, %s12, 1
        %s210 = smul.addr %s209, 8
        %s211 = scalar_lea.vmem %s0, %s210
      $region36: #{decoder_layer.10} parent=31 // pred_fallthru
        _
      // Predicated region
      $region37: #{decoder_layer.10} parent=31 // pred_check
        %p212 = pneg %p58
      $region38: #{decoder_layer.10} parent=31 // pred_check_branch
        %214 = sbr.rel (%p212) target = $region40
      $region39: #{decoder_layer.10} parent=31 // pred_region
        %p215 = scmp.lt.s32.totalorder %s12, 1
        %s216 = scalar_select %p215, %s12, 1
        %s217 = smul.addr %s216, 8
        %s218 = scalar_lea.vmem %s1, %s217
      $region40: #{decoder_layer.10} parent=31 // pred_fallthru
        _
    $region32: #{decoder_layer.10} parent=5 // pred_fallthru
      _
    %p219 = scmp.le.s32.totalorder 1, %s12
    %p220 = scmp.lt.s32.totalorder %s12, 3
    %p221 = pnand %p219, %p220
    %p222 = pneg %p221
    // Predicated region
    $region41: #{decoder_layer.10} parent=5 // pred_check
      _
    $region42: #{decoder_layer.10} parent=5 // pred_check_branch
      %224 = sbr.rel (%p221) target = $region44
    $region43: #{decoder_layer.10} parent=5 // pred_region
      %s225 = ssub.s32 %s12, 1
      %p226 = scmp.lt.s32.totalorder %s17, 1
      %s227 = scalar_select %p226, %s17, 1
      %s228 = smul.addr %s227, 8
      %s229 = scalar_lea.vmem %s0, %s228
      %p230 = pneg %p38
      %p231 = pneg %p35
      %p232 = scmp.lt.s32.totalorder %s17, 1
      %s233 = scalar_select %p232, %s17, 1
      %s234 = smul.addr %s233, 8
      %s235 = scalar_lea.vmem %s1, %s234
      %p236 = pneg %p64
      %p237 = pneg %p61
      %p238 = pneg %p85
      %p239 = pneg %p82
      %p240 = pneg %p106
      %p241 = pneg %p103
      %p242 = pneg %p127
      %p243 = pneg %p124
      %p244 = pneg %p148
      %p245 = pneg %p145
      %p246 = pneg %p174
      %p247 = pneg %p171
      %p248 = scmp.lt.s32.totalorder %s17, 1
      %s249 = scalar_select %p248, %s17, 1
      %s250 = smul.addr %s249, 8
      %s251 = scalar_lea.vmem %s6, %s250
      %p252 = scmp.lt.s32.totalorder %s17, 1
      %s253 = scalar_select %p252, %s17, 1
      %s254 = smul.addr %s253, 8
      %s255 = scalar_lea.vmem %s0, %s254
      %p256 = scmp.lt.s32.totalorder %s17, 1
      %s257 = scalar_select %p256, %s17, 1
      %s258 = smul.addr %s257, 8
      %s259 = scalar_lea.vmem %s1, %s258
      %p260 = scmp.lt.s32.totalorder %s17, 1
      %s261 = scalar_select %p260, %s17, 1
      %s262 = smul.addr %s261, 8
      %s263 = scalar_lea.vmem %s6, %s262
      %v264 = vld [vmem:[%s255] sm:$0xff]
      %v265 = vld [vmem:[%s2] sm:$0xff]
      %v266 = vld [vmem:[%s2 + $0x8] sm:$0xff]
      %v267 = vld [vmem:[%s2 + $0x10] sm:$0xff]
      %v268 = vld [vmem:[%s2 + $0x18] sm:$0xff]
      %v269 = vld [vmem:[%s3] sm:$0x1]
      %v271 = vperm.slane %v269, 0
      %vm273 = vcmask 261120
      %v275 = vsel %vm273, %v264, 0
      %277 = vmatpush.msra.mxu0 0.0
      %278 = vmatpush.msra.mxu0 0.0
      %279 = vmatpush.msra.mxu0 0.0
      %280 = vmatpush.msra.mxu0 0.0
      %281 = vmatpush.msra.mxu0 0.0
      %282 = vmatpush.msra.mxu0 0.0
      %283 = vmatpush.msra.mxu0 0.0
      %284 = vmatpush.msra.mxu0 0.0
      %285 = vmatpush.msra.mxu0 0.0
      %286 = vmatpush.msra.mxu0 0.0
      %287 = vmatpush.msra.mxu0 0.0
      %288 = vmatpush.msra.mxu0 0.0
      %289 = vmatpush.msra.mxu0 %v268
      %290 = vmatpush.msra.mxu0 %v267
      %291 = vmatpush.msra.mxu0 %v266
      %292 = vmatpush.msra.mxu0 %v265
      %293 = vmatmul.f32.gmra.mxu0 %v275
      %v294 = vpop.f32.mrf.mxu0
      %v295 = vadd.f32 %v271, %v294
      %296 = vdwg.mxu0
      %v297 = vld [vmem:[%s259] sm:$0xff]
      %v298 = vadd.f32 %v297, %v295
      %v299 = vsel %vm273, %v298, 0.0
      %300 = vadd.xlane.f32.xlu0 %v299
      %v301 = vpop.xlane.xlu0 %300
      %v302 = vrcp.pop 32.0
      %v303 = vmul.f32 32.0, %v302
      %v304 = vsub.f32 1.0, %v303
      %v305 = vmul.f32 %v302, %v304
      %v306 = vadd.f32 %v302, %v305
      %vm307 = vweird.f32 %v302
      %v308 = vsel %vm307, %v302, %v306
      %v309 = vmul.f32 %v301, %v308
      %v310 = vsub.f32 %v298, %v309
      %v311 = vmul.f32 %v310, %v310
      %v312 = vsel %vm273, %v311, 0.0
      %313 = vadd.xlane.f32.xlu0 %v312
      %v314 = vpop.xlane.xlu0 %313
      %v315 = vmul.f32 %v314, %v308
      %v316 = vadd.f32 %v315, 1e-12
      %v317 = vrsqrt.pop %v316
      %v318 = vmul.f32 %v317, %v316
      %v319 = vmul.f32 %v318, %v317
      %v320 = vmul.f32 0.5, %v319
      %v321 = vsub.f32 1.5, %v320
      %v322 = vmul.f32 %v317, %v321
      %vm323 = vweird.f32 %v316
      %vm324 = vweird.f32 %v317
      %vm325 = vmor %vm323, %vm324
      %v326 = vsel %vm325, %v317, %v322
      %v327 = vld [vmem:[%s4] sm:$0x1]
      %v328 = vmul.f32 %v310, %v326
      %v330 = vperm.slane %v327, 0
      %v332 = vmul.f32 %v330, %v328
      %v333 = vld [vmem:[%s5] sm:$0x1]
      %v335 = vperm.slane %v333, 0
      %v337 = vadd.f32 %v332, %v335
      %338 = vst.msk [vmem:[%s263] sm:$0xff] %vm273, %v337
      %p339 = scmp.lt.s32.totalorder %s17, 1
      %s340 = scalar_select %p339, %s17, 1
      %s341 = smul.addr %s340, 8
      %s342 = scalar_lea.vmem %s6, %s341
      // Predicated region
      $region45: #{decoder_layer.10} parent=43 // pred_check
        %p343 = pneg %p171
      $region46: #{decoder_layer.10} parent=43 // pred_check_branch
        %345 = sbr.rel (%p343) target = $region48
      $region47: #{decoder_layer.10} parent=43 // pred_region
        _
      $region48: #{decoder_layer.10} parent=43 // pred_fallthru
        _
    $region44: #{decoder_layer.10} parent=5 // pred_fallthru
      _
    %p346 = scmp.le.s32.totalorder 2, %s12
    // Predicated region
    $region49: #{decoder_layer.10} parent=5 // pred_check
      %p347 = pneg %p346
    $region50: #{decoder_layer.10} parent=5 // pred_check_branch
      %349 = sbr.rel (%p347) target = $region52
    $region51: #{decoder_layer.10} parent=5 // pred_region
      %s350 = ssub.s32 %s12, 2
      // Predicated region
      $region53: #{decoder_layer.10} parent=51 // pred_check
        %p351 = pneg %p177
      $region54: #{decoder_layer.10} parent=51 // pred_check_branch
        %353 = sbr.rel (%p351) target = $region56
      $region55: #{decoder_layer.10} parent=51 // pred_region
        %p354 = scmp.lt.s32.totalorder %s18, 1
        %s355 = scalar_select %p354, %s18, 1
        %s356 = smul.addr %s355, 8
        %s357 = scalar_lea.vmem %s6, %s356
      $region56: #{decoder_layer.10} parent=51 // pred_fallthru
        _
    $region52: #{decoder_layer.10} parent=5 // pred_fallthru
      _
  $region6: #{decoder_layer.10} parent=0 // loop_footer
    %s16 = sadd.s32 1, %s12
  $region7: #{decoder_layer.10} parent=0 // loop_footer_branch
    %11 = sbr.rel target = $region3
  $region8: #{decoder_layer.10} parent=0 // loop_exit
    _

// kernel: decoder_layer.9
$region0: #{decoder_layer.9}
  #allocation0 [shape = 'u32[]', space=smem, size = 0x4, offset = 0x4, fixed_abs, tag = 'smem constant byte address 0x4 - core index']
  #allocation1 [shape = 'u32[72,128]{1,0:T(1,128)}', space=vmem, size = 0x9000, scoped, tag = 'internal scratch']
  %s0 = inlined_call_operand.vmem [shape: s32[2,8,8], index: 0, kind: input, shape index: {}]
  %s1 = inlined_call_operand.vmem [shape: f32[2,4,8,8], index: 1, kind: input, shape index: {}]
  %s2 = inlined_call_operand.vmem [shape: f32[2,4,8,8], index: 2, kind: input, shape index: {}]
  %s3 = inlined_call_operand.vmem [shape: f32[2,4,8,8], index: 3, kind: input, shape index: {}]
  %s4 = inlined_call_operand.vmem [shape: f32[2,4,8,8], index: 4, kind: output, shape index: {0}]
  %s5 = inlined_call_operand.hbm [shape: f32[2,4,8,8], index: 5, kind: output, shape index: {1}]
  %6 = xla_tuple %s4, %s5
  %s7 = sld [smem:[#allocation0]]
  $region57: #{decoder_layer.9} parent=0
    _
  %s9 = ssub.s32 1, %s7
  %s10 = scalar_select 0, %s9, %s7
  $region1: #{decoder_layer.9} parent=0
    #allocation2 [shape = 'u8[32768]{0}', space=vmem, size = 0x8000, scoped, tag = 'output window, operand 1']
    #allocation3 [shape = 's32[2]{0}', space=sflag, size = 0x8, scoped, tag = 'scoped memory for decoder_layer.9']
    %11 = vsyncpa [#allocation3], 0
    %s12 = scalar_lea.sflag [#allocation3], 1
    %13 = vsyncpa %s12, 0
    loop: start=0, step=1, limit=4
    $region2: #{decoder_layer.9} parent=1 // loop_pre_header
      _
    $region3: #{decoder_layer.9} parent=1 // loop_header
      %s15 = sphi 0, %s19
      %p16 = scmp.ge.s32.totalorder %s15, 4
      %s25 = sphi 0, %s27
      %s28 = sphi 0, %s25
      %s29 = sphi 0, %s28
      %s45 = sphi 0, %s29
      %s51 = sphi 0, %s53
      %s54 = sphi 0, %s51
      %s55 = sphi 0, %s54
      %s71 = sphi 0, %s55
      %s77 = sphi 0, %s79
      %s80 = sphi 0, %s77
      %s81 = sphi 0, %s80
      %s97 = sphi 0, %s81
      %s103 = sphi 0, %s105
      %s106 = sphi 0, %s103
      %s107 = sphi 0, %s106
      %s123 = sphi 0, %s107
      %s129 = sphi 0, %s131
      %s132 = sphi 0, %s129
      %s133 = sphi 0, %s132
      %s149 = sphi 0, %s133
      %s155 = sphi 0, %s157
      %s158 = sphi 0, %s155
      %s159 = sphi 0, %s158
      %s175 = sphi 0, %s159
    $region4: #{decoder_layer.9} parent=1 // loop_header_branch
      %18 = sbr.rel (%p16) target = $region8
    $region5: #{decoder_layer.9} parent=1 // loop_body
      %s20 = ssub.s32 %s15, 1
      %s21 = ssub.s32 %s15, 2
      %s22 = sadd.s32 %s15, 1
      %s23 = ssub.s32 %s15, %s22
      %p24 = scmp.eq.s32.totalorder %s23, 0
      %s26 = sadd.s32 %s25, 1
      %s27 = scalar_select %p24, %s25, %s26
      %p30 = pneg %p24
      %p31 = scmp.eq.s32.totalorder %s15, 1
      %p32 = por %p30, %p31
      %p33 = scmp.ne.s32.totalorder %s25, %s28
      %p34 = scmp.eq.s32.totalorder %s15, 0
      %p35 = por %p33, %p34
      %p36 = scmp.ne.s32.totalorder %s25, %s28
      %p37 = scmp.eq.s32.totalorder %s20, 1
      %p38 = por %p36, %p37
      %p39 = scmp.ne.s32.totalorder %s28, %s29
      %p40 = scmp.eq.s32.totalorder %s20, 0
      %p41 = por %p39, %p40
      %p42 = scmp.ne.s32.totalorder %s28, %s29
      %p43 = scmp.eq.s32.totalorder %s21, 1
      %p44 = por %p42, %p43
      %p46 = scmp.ne.s32.totalorder %s29, %s45
      %p47 = scmp.eq.s32.totalorder %s21, 0
      %p48 = por %p46, %p47
      %s49 = ssub.s32 %s15, %s22
      %p50 = scmp.eq.s32.totalorder %s49, 0
      %s52 = sadd.s32 %s51, 1
      %s53 = scalar_select %p50, %s51, %s52
      %p56 = pneg %p50
      %p57 = scmp.eq.s32.totalorder %s15, 1
      %p58 = por %p56, %p57
      %p59 = scmp.ne.s32.totalorder %s51, %s54
      %p60 = scmp.eq.s32.totalorder %s15, 0
      %p61 = por %p59, %p60
      %p62 = scmp.ne.s32.totalorder %s51, %s54
      %p63 = scmp.eq.s32.totalorder %s20, 1
      %p64 = por %p62, %p63
      %p65 = scmp.ne.s32.totalorder %s54, %s55
      %p66 = scmp.eq.s32.totalorder %s20, 0
      %p67 = por %p65, %p66
      %p68 = scmp.ne.s32.totalorder %s54, %s55
      %p69 = scmp.eq.s32.totalorder %s21, 1
      %p70 = por %p68, %p69
      %p72 = scmp.ne.s32.totalorder %s55, %s71
      %p73 = scmp.eq.s32.totalorder %s21, 0
      %p74 = por %p72, %p73
      %s75 = ssub.s32 %s15, %s22
      %p76 = scmp.eq.s32.totalorder %s75, 0
      %s78 = sadd.s32 %s77, 1
      %s79 = scalar_select %p76, %s77, %s78
      %p82 = pneg %p76
      %p83 = scmp.eq.s32.totalorder %s15, 1
      %p84 = por %p82, %p83
      %p85 = scmp.ne.s32.totalorder %s77, %s80
      %p86 = scmp.eq.s32.totalorder %s15, 0
      %p87 = por %p85, %p86
      %p88 = scmp.ne.s32.totalorder %s77, %s80
      %p89 = scmp.eq.s32.totalorder %s20, 1
      %p90 = por %p88, %p89
      %p91 = scmp.ne.s32.totalorder %s80, %s81
      %p92 = scmp.eq.s32.totalorder %s20, 0
      %p93 = por %p91, %p92
      %p94 = scmp.ne.s32.totalorder %s80, %s81
      %p95 = scmp.eq.s32.totalorder %s21, 1
      %p96 = por %p94, %p95
      %p98 = scmp.ne.s32.totalorder %s81, %s97
      %p99 = scmp.eq.s32.totalorder %s21, 0
      %p100 = por %p98, %p99
      %s101 = ssub.s32 %s15, %s22
      %p102 = scmp.eq.s32.totalorder %s101, 0
      %s104 = sadd.s32 %s103, 1
      %s105 = scalar_select %p102, %s103, %s104
      %p108 = pneg %p102
      %p109 = scmp.eq.s32.totalorder %s15, 1
      %p110 = por %p108, %p109
      %p111 = scmp.ne.s32.totalorder %s103, %s106
      %p112 = scmp.eq.s32.totalorder %s15, 0
      %p113 = por %p111, %p112
      %p114 = scmp.ne.s32.totalorder %s103, %s106
      %p115 = scmp.eq.s32.totalorder %s20, 1
      %p116 = por %p114, %p115
      %p117 = scmp.ne.s32.totalorder %s106, %s107
      %p118 = scmp.eq.s32.totalorder %s20, 0
      %p119 = por %p117, %p118
      %p120 = scmp.ne.s32.totalorder %s106, %s107
      %p121 = scmp.eq.s32.totalorder %s21, 1
      %p122 = por %p120, %p121
      %p124 = scmp.ne.s32.totalorder %s107, %s123
      %p125 = scmp.eq.s32.totalorder %s21, 0
      %p126 = por %p124, %p125
      %s127 = ssub.s32 %s15, %s22
      %p128 = scmp.eq.s32.totalorder %s127, 0
      %s130 = sadd.s32 %s129, 1
      %s131 = scalar_select %p128, %s129, %s130
      %p134 = pneg %p128
      %p135 = scmp.eq.s32.totalorder %s15, 1
      %p136 = por %p134, %p135
      %p137 = scmp.ne.s32.totalorder %s129, %s132
      %p138 = scmp.eq.s32.totalorder %s15, 0
      %p139 = por %p137, %p138
      %p140 = scmp.ne.s32.totalorder %s129, %s132
      %p141 = scmp.eq.s32.totalorder %s20, 1
      %p142 = por %p140, %p141
      %p143 = scmp.ne.s32.totalorder %s132, %s133
      %p144 = scmp.eq.s32.totalorder %s20, 0
      %p145 = por %p143, %p144
      %p146 = scmp.ne.s32.totalorder %s132, %s133
      %p147 = scmp.eq.s32.totalorder %s21, 1
      %p148 = por %p146, %p147
      %p150 = scmp.ne.s32.totalorder %s133, %s149
      %p151 = scmp.eq.s32.totalorder %s21, 0
      %p152 = por %p150, %p151
      %s153 = ssub.s32 %s15, %s22
      %p154 = scmp.eq.s32.totalorder %s153, 0
      %s156 = sadd.s32 %s155, 1
      %s157 = scalar_select %p154, %s155, %s156
      %p160 = pneg %p154
      %p161 = scmp.eq.s32.totalorder %s15, 1
      %p162 = por %p160, %p161
      %p163 = scmp.ne.s32.totalorder %s155, %s158
      %p164 = scmp.eq.s32.totalorder %s15, 0
      %p165 = por %p163, %p164
      %p166 = scmp.ne.s32.totalorder %s155, %s158
      %p167 = scmp.eq.s32.totalorder %s20, 1
      %p168 = por %p166, %p167
      %p169 = scmp.ne.s32.totalorder %s158, %s159
      %p170 = scmp.eq.s32.totalorder %s20, 0
      %p171 = por %p169, %p170
      %p172 = scmp.ne.s32.totalorder %s158, %s159
      %p173 = scmp.eq.s32.totalorder %s21, 1
      %p174 = por %p172, %p173
      %p176 = scmp.ne.s32.totalorder %s159, %s175
      %p177 = scmp.eq.s32.totalorder %s21, 0
      %p178 = por %p176, %p177
      %p179 = scmp.le.s32.totalorder 1, %s15
      %p180 = scmp.lt.s32.totalorder %s15, 3
      %p181 = pnand %p179, %p180
      %p182 = pneg %p181
      // Predicated region
      $region9: #{decoder_layer.9} parent=5 // pred_check
        _
      $region10: #{decoder_layer.9} parent=5 // pred_check_branch
        %184 = sbr.rel (%p181) target = $region12
      $region11: #{decoder_layer.9} parent=5 // pred_region
        %s185 = ssub.s32 %s15, 1
      $region12: #{decoder_layer.9} parent=5 // pred_fallthru
        _
      %p186 = scmp.lt.s32.totalorder %s15, 2
      // Predicated region
      $region13: #{decoder_layer.9} parent=5 // pred_check
        %p187 = pneg %p186
      $region14: #{decoder_layer.9} parent=5 // pred_check_branch
        %189 = sbr.rel (%p187) target = $region16
      $region15: #{decoder_layer.9} parent=5 // pred_region
        // Predicated region
        $region17: #{decoder_layer.9} parent=15 // pred_check
          %p190 = pneg %p35
        $region18: #{decoder_layer.9} parent=15 // pred_check_branch
          %192 = sbr.rel (%p190) target = $region20
        $region19: #{decoder_layer.9} parent=15 // pred_region
          %p193 = scmp.lt.s32.totalorder %s15, 1
          %s194 = scalar_select %p193, %s15, 1
          %s195 = smul.addr %s194, 8
          %s196 = scalar_lea.vmem %s0, %s195
        $region20: #{decoder_layer.9} parent=15 // pred_fallthru
          _
        // Predicated region
        $region21: #{decoder_layer.9} parent=15 // pred_check
          %p197 = pneg %p61
        $region22: #{decoder_layer.9} parent=15 // pred_check_branch
          %199 = sbr.rel (%p197) target = $region24
        $region23: #{decoder_layer.9} parent=15 // pred_region
          %p200 = scmp.lt.s32.totalorder %s15, 1
          %s201 = scalar_select %p200, %s15, 1
          %s202 = smul.addr %s201, 4
          %s203 = smul.addr %s202, 8
          %s204 = scalar_lea.vmem %s1, %s203
        $region24: #{decoder_layer.9} parent=15 // pred_fallthru
          _
        // Predicated region
        $region25: #{decoder_layer.9} parent=15 // pred_check
          %p205 = pneg %p87
        $region26: #{decoder_layer.9} parent=15 // pred_check_branch
          %207 = sbr.rel (%p205) target = $region28
        $region27: #{decoder_layer.9} parent=15 // pred_region
          %p208 = scmp.lt.s32.totalorder %s15, 1
          %s209 = scalar_select %p208, %s15, 1
          %s210 = smul.addr %s209, 4
          %s211 = smul.addr %s210, 8
          %s212 = scalar_lea.vmem %s2, %s211
        $region28: #{decoder_layer.9} parent=15 // pred_fallthru
          _
        // Predicated region
        $region29: #{decoder_layer.9} parent=15 // pred_check
          %p213 = pneg %p113
        $region30: #{decoder_layer.9} parent=15 // pred_check_branch
          %215 = sbr.rel (%p213) target = $region32
        $region31: #{decoder_layer.9} parent=15 // pred_region
          %p216 = scmp.lt.s32.totalorder %s15, 1
          %s217 = scalar_select %p216, %s15, 1
          %s218 = smul.addr %s217, 4
          %s219 = smul.addr %s218, 8
          %s220 = scalar_lea.vmem %s3, %s219
        $region32: #{decoder_layer.9} parent=15 // pred_fallthru
          _
      $region16: #{decoder_layer.9} parent=5 // pred_fallthru
        _
      %p221 = scmp.le.s32.totalorder 1, %s15
      %p222 = scmp.lt.s32.totalorder %s15, 3
      %p223 = pnand %p221, %p222
      %p224 = pneg %p223
      // Predicated region
      $region33: #{decoder_layer.9} parent=5 // pred_check
        _
      $region34: #{decoder_layer.9} parent=5 // pred_check_branch
        %226 = sbr.rel (%p223) target = $region36
      $region35: #{decoder_layer.9} parent=5 // pred_region
        %s227 = ssub.s32 %s15, 1
        %p228 = scmp.lt.s32.totalorder %s20, 1
        %s229 = scalar_select %p228, %s20, 1
        %s230 = smul.addr %s229, 8
        %s231 = scalar_lea.vmem %s0, %s230
        %p232 = pneg %p41
        %p233 = pneg %p38
        %p234 = scmp.lt.s32.totalorder %s20, 1
        %s235 = scalar_select %p234, %s20, 1
        %s236 = smul.addr %s235, 4
        %s237 = smul.addr %s236, 8
        %s238 = scalar_lea.vmem %s1, %s237
        %p239 = pneg %p67
        %p240 = pneg %p64
        %p241 = scmp.lt.s32.totalorder %s20, 1
        %s242 = scalar_select %p241, %s20, 1
        %s243 = smul.addr %s242, 4
        %s244 = smul.addr %s243, 8
        %s245 = scalar_lea.vmem %s2, %s244
        %p246 = pneg %p93
        %p247 = pneg %p90
        %p248 = scmp.lt.s32.totalorder %s20, 1
        %s249 = scalar_select %p248, %s20, 1
        %s250 = smul.addr %s249, 4
        %s251 = smul.addr %s250, 8
        %s252 = scalar_lea.vmem %s3, %s251
        %p253 = pneg %p119
        %p254 = pneg %p116
        %p255 = pneg %p145
        %p256 = pneg %p142
        %p257 = scmp.lt.s32.totalorder %s20, 1
        %s258 = scalar_select %p257, %s20, 1
        %s259 = smul.addr %s258, 4
        %s260 = smul.addr %s259, 8
        %s261 = scalar_lea.vmem %s4, %s260
        %p262 = pneg %p171
        %p263 = pneg %p168
        %s264 = sand.u32 %s158, 1
        %s265 = scalar_lea.sflag [#allocation3], %s264
        %s266 = sand.u32 %s158, 1
        %s267 = smul.addr %s266, 32
        %s268 = scalar_lea.vmem [#allocation2], %s267
        %p269 = scmp.lt.s32.totalorder %s20, 1
        %s270 = scalar_select %p269, %s20, 1
        %s271 = smul.addr %s270, 8
        %s272 = scalar_lea.vmem %s0, %s271
        %p273 = scmp.lt.s32.totalorder %s20, 1
        %s274 = scalar_select %p273, %s20, 1
        %s275 = smul.addr %s274, 4
        %s276 = smul.addr %s275, 8
        %s277 = scalar_lea.vmem %s1, %s276
        %p278 = scmp.lt.s32.totalorder %s20, 1
        %s279 = scalar_select %p278, %s20, 1
        %s280 = smul.addr %s279, 4
        %s281 = smul.addr %s280, 8
        %s282 = scalar_lea.vmem %s2, %s281
        %p283 = scmp.lt.s32.totalorder %s20, 1
        %s284 = scalar_select %p283, %s20, 1
        %s285 = smul.addr %s284, 4
        %s286 = smul.addr %s285, 8
        %s287 = scalar_lea.vmem %s3, %s286
        %p288 = scmp.lt.s32.totalorder %s20, 1
        %s289 = scalar_select %p288, %s20, 1
        %s290 = smul.addr %s289, 4
        %s291 = smul.addr %s290, 8
        %s292 = scalar_lea.vmem %s4, %s291
        %v293 = vld [vmem:[%s277] sm:$0xff]
        %v294 = vld [vmem:[%s277 + $0x8] sm:$0xff]
        %v295 = vld [vmem:[%s277 + $0x10] sm:$0xff]
        %v296 = vld [vmem:[%s277 + $0x18] sm:$0xff]
        %v297 = vld [vmem:[%s282] sm:$0xff]
        %v298 = vld [vmem:[%s282 + $0x8] sm:$0xff]
        %v299 = vld [vmem:[%s282 + $0x10] sm:$0xff]
        %v300 = vld [vmem:[%s282 + $0x18] sm:$0xff]
        %v301 = vld [vmem:[%s287] sm:$0xff]
        %v302 = vld [vmem:[%s287 + $0x8] sm:$0xff]
        %v303 = vld [vmem:[%s287 + $0x10] sm:$0xff]
        %v304 = vld [vmem:[%s287 + $0x18] sm:$0xff]
        %vm305 = vcmask 64512
        %v307 = vsel %vm305, %v293, 0
        %v310 = vsel %vm305, %v297, 0
        %312 = vmatpush.xpose.msra.mxu0 0.0
        %313 = vmatpush.xpose.msra.mxu0 0.0
        %314 = vmatpush.xpose.msra.mxu0 0.0
        %315 = vmatpush.xpose.msra.mxu0 0.0
        %316 = vmatpush.xpose.msra.mxu0 0.0
        %317 = vmatpush.xpose.msra.mxu0 0.0
        %318 = vmatpush.xpose.msra.mxu0 0.0
        %319 = vmatpush.xpose.msra.mxu0 0.0
        %320 = vmatpush.xpose.msra.mxu0 0.0
        %321 = vmatpush.xpose.msra.mxu0 0.0
        %322 = vmatpush.xpose.msra.mxu0 0.0
        %323 = vmatpush.xpose.msra.mxu0 0.0
        %324 = vmatpush.xpose.msra.mxu0 0.0
        %325 = vmatpush.xpose.msra.mxu0 0.0
        %326 = vmatpush.xpose.msra.mxu0 0.0
        %327 = vmatpush.xpose.msra.mxu0 %v310
        %328 = vmatmul.f32.gmra.mxu0 %v307
        %v329 = vpop.f32.mrf.mxu0
        %v330 = vadd.f32 0.0, %v329
        %331 = vdwg.mxu0
        %v333 = vsel %vm305, %v294, 0
        %v336 = vsel %vm305, %v298, 0
        %338 = vmatpush.xpose.msra.mxu0 0.0
        %339 = vmatpush.xpose.msra.mxu0 0.0
        %340 = vmatpush.xpose.msra.mxu0 0.0
        %341 = vmatpush.xpose.msra.mxu0 0.0
        %342 = vmatpush.xpose.msra.mxu0 0.0
        %343 = vmatpush.xpose.msra.mxu0 0.0
        %344 = vmatpush.xpose.msra.mxu0 0.0
        %345 = vmatpush.xpose.msra.mxu0 0.0
        %346 = vmatpush.xpose.msra.mxu0 0.0
        %347 = vmatpush.xpose.msra.mxu0 0.0
        %348 = vmatpush.xpose.msra.mxu0 0.0
        %349 = vmatpush.xpose.msra.mxu0 0.0
        %350 = vmatpush.xpose.msra.mxu0 0.0
        %351 = vmatpush.xpose.msra.mxu0 0.0
        %352 = vmatpush.xpose.msra.mxu0 0.0
        %353 = vmatpush.xpose.msra.mxu0 %v336
        %354 = vmatmul.f32.gmra.mxu0 %v333
        %v355 = vpop.f32.mrf.mxu0
        %v356 = vadd.f32 0.0, %v355
        %357 = vdwg.mxu0
        %v359 = vsel %vm305, %v295, 0
        %v362 = vsel %vm305, %v299, 0
        %364 = vmatpush.xpose.msra.mxu0 0.0
        %365 = vmatpush.xpose.msra.mxu0 0.0
        %366 = vmatpush.xpose.msra.mxu0 0.0
        %367 = vmatpush.xpose.msra.mxu0 0.0
        %368 = vmatpush.xpose.msra.mxu0 0.0
        %369 = vmatpush.xpose.msra.mxu0 0.0
        %370 = vmatpush.xpose.msra.mxu0 0.0
        %371 = vmatpush.xpose.msra.mxu0 0.0
        %372 = vmatpush.xpose.msra.mxu0 0.0
        %373 = vmatpush.xpose.msra.mxu0 0.0
        %374 = vmatpush.xpose.msra.mxu0 0.0
        %375 = vmatpush.xpose.msra.mxu0 0.0
        %376 = vmatpush.xpose.msra.mxu0 0.0
        %377 = vmatpush.xpose.msra.mxu0 0.0
        %378 = vmatpush.xpose.msra.mxu0 0.0
        %379 = vmatpush.xpose.msra.mxu0 %v362
        %380 = vmatmul.f32.gmra.mxu0 %v359
        %v381 = vpop.f32.mrf.mxu0
        %v382 = vadd.f32 0.0, %v381
        %383 = vdwg.mxu0
        %v385 = vsel %vm305, %v296, 0
        %v388 = vsel %vm305, %v300, 0
        %390 = vmatpush.xpose.msra.mxu0 0.0
        %391 = vmatpush.xpose.msra.mxu0 0.0
        %392 = vmatpush.xpose.msra.mxu0 0.0
        %393 = vmatpush.xpose.msra.mxu0 0.0
        %394 = vmatpush.xpose.msra.mxu0 0.0
        %395 = vmatpush.xpose.msra.mxu0 0.0
        %396 = vmatpush.xpose.msra.mxu0 0.0
        %397 = vmatpush.xpose.msra.mxu0 0.0
        %398 = vmatpush.xpose.msra.mxu0 0.0
        %399 = vmatpush.xpose.msra.mxu0 0.0
        %400 = vmatpush.xpose.msra.mxu0 0.0
        %401 = vmatpush.xpose.msra.mxu0 0.0
        %402 = vmatpush.xpose.msra.mxu0 0.0
        %403 = vmatpush.xpose.msra.mxu0 0.0
        %404 = vmatpush.xpose.msra.mxu0 0.0
        %405 = vmatpush.xpose.msra.mxu0 %v388
        %406 = vmatmul.f32.gmra.mxu0 %v385
        %v407 = vpop.f32.mrf.mxu0
        %v408 = vadd.f32 0.0, %v407
        %409 = vdwg.mxu0
        %v410 = vmul.f32 %v330, 0.35355338
        %v411 = vmul.f32 %v356, 0.35355338
        %v412 = vmul.f32 %v382, 0.35355338
        %v413 = vmul.f32 %v408, 0.35355338
        %v414 = vld [vmem:[%s272] sm:$0xff]
        %vm415 = vcmp.eq.s32.totalorder %v414, 0
        %v416 = vsel %vm415, 1, 0
        %vm417 = vcmp.eq.s32.totalorder %v416, 1
        %v418 = vsel %vm417, -1e+09, %v410
        %v419 = vsel %vm417, -1e+09, %v411
        %v420 = vsel %vm417, -1e+09, %v412
        %v421 = vsel %vm417, -1e+09, %v413
        %v422 = vsel %vm305, %v418, -inf
        %423 = vmax.xlane.f32.xlu0 %v422
        %v424 = vpop.xlane.xlu0 %423
        %v425 = vsel %vm305, %v419, -inf
        %426 = vmax.xlane.f32.xlu0 %v425
        %v427 = vpop.xlane.xlu0 %426
        %v428 = vsel %vm305, %v420, -inf
        %429 = vmax.xlane.f32.xlu0 %v428
        %v430 = vpop.xlane.xlu0 %429
        %v431 = vsel %vm305, %v421, -inf
        %432 = vmax.xlane.f32.xlu0 %v431
        %v433 = vpop.xlane.xlu0 %432
        %v434 = vsub.f32 %v418, %v424
        %v435 = vsub.f32 %v419, %v427
        %v436 = vsub.f32 %v420, %v430
        %v437 = vsub.f32 %v421, %v433
        %v438 = vmul.f32 %v434, 1.442695
        %v439 = vpow.pop %v438
        %v440 = vmul.f32 %v435, 1.442695
        %v441 = vpow.pop %v440
        %v442 = vmul.f32 %v436, 1.442695
        %v443 = vpow.pop %v442
        %v444 = vmul.f32 %v437, 1.442695
        %v445 = vpow.pop %v444
        %v446 = vsel %vm305, %v439, 0.0
        %447 = vadd.xlane.f32.xlu0 %v446
        %v448 = vpop.xlane.xlu0 %447
        %v449 = vsel %vm305, %v441, 0.0
        %450 = vadd.xlane.f32.xlu0 %v449
        %v451 = vpop.xlane.xlu0 %450
        %v452 = vsel %vm305, %v443, 0.0
        %453 = vadd.xlane.f32.xlu0 %v452
        %v454 = vpop.xlane.xlu0 %453
        %v455 = vsel %vm305, %v445, 0.0
        %456 = vadd.xlane.f32.xlu0 %v455
        %v457 = vpop.xlane.xlu0 %456
        %v458 = vrcp.pop %v448
        %v459 = vrcp.pop %v451
        %v460 = vrcp.pop %v454
        %v461 = vrcp.pop %v457
        %v462 = vmul.f32 %v439, %v458
        %v463 = vmul.f32 %v441, %v459
        %v464 = vmul.f32 %v443, %v460
        %v465 = vmul.f32 %v445, %v461
        %466 = vst.msk [vmem:[%s268] sm:$0xff] %vm305, %v462
        %467 = vst.msk [vmem:[%s268 + $0x8] sm:$0xff] %vm305, %v463
        %468 = vst.msk [vmem:[%s268 + $0x10] sm:$0xff] %vm305, %v464
        %469 = vst.msk [vmem:[%s268 + $0x18] sm:$0xff] %vm305, %v465
        %v471 = vsel %vm305, %v462, 0
        %473 = vmatpush.msra.mxu0 0.0
        %474 = vmatpush.msra.mxu0 0.0
        %475 = vmatpush.msra.mxu0 0.0
        %476 = vmatpush.msra.mxu0 0.0
        %477 = vmatpush.msra.mxu0 0.0
        %478 = vmatpush.msra.mxu0 0.0
        %479 = vmatpush.msra.mxu0 0.0
        %480 = vmatpush.msra.mxu0 0.0
        %481 = vmatpush.msra.mxu0 0.0
        %482 = vmatpush.msra.mxu0 0.0
        %483 = vmatpush.msra.mxu0 0.0
        %484 = vmatpush.msra.mxu0 0.0
        %485 = vmatpush.msra.mxu0 0.0
        %486 = vmatpush.msra.mxu0 0.0
        %487 = vmatpush.msra.mxu0 0.0
        %488 = vmatpush.msra.mxu0 %v301
        %489 = vmatmul.f32.gmra.mxu0 %v471
        %v490 = vpop.f32.mrf.mxu0
        %v491 = vadd.f32 0.0, %v490
        %492 = vdwg.mxu0
        %v494 = vsel %vm305, %v463, 0
        %496 = vmatpush.msra.mxu0 0.0
        %497 = vmatpush.msra.mxu0 0.0
        %498 = vmatpush.msra.mxu0 0.0
        %499 = vmatpush.msra.mxu0 0.0
        %500 = vmatpush.msra.mxu0 0.0
        %501 = vmatpush.msra.mxu0 0.0
        %502 = vmatpush.msra.mxu0 0.0
        %503 = vmatpush.msra.mxu0 0.0
        %504 = vmatpush.msra.mxu0 0.0
        %505 = vmatpush.msra.mxu0 0.0
        %506 = vmatpush.msra.mxu0 0.0
        %507 = vmatpush.msra.mxu0 0.0
        %508 = vmatpush.msra.mxu0 0.0
        %509 = vmatpush.msra.mxu0 0.0
        %510 = vmatpush.msra.mxu0 0.0
        %511 = vmatpush.msra.mxu0 %v302
        %512 = vmatmul.f32.gmra.mxu0 %v494
        %v513 = vpop.f32.mrf.mxu0
        %v514 = vadd.f32 0.0, %v513
        %515 = vdwg.mxu0
        %v517 = vsel %vm305, %v464, 0
        %519 = vmatpush.msra.mxu0 0.0
        %520 = vmatpush.msra.mxu0 0.0
        %521 = vmatpush.msra.mxu0 0.0
        %522 = vmatpush.msra.mxu0 0.0
        %523 = vmatpush.msra.mxu0 0.0
        %524 = vmatpush.msra.mxu0 0.0
        %525 = vmatpush.msra.mxu0 0.0
        %526 = vmatpush.msra.mxu0 0.0
        %527 = vmatpush.msra.mxu0 0.0
        %528 = vmatpush.msra.mxu0 0.0
        %529 = vmatpush.msra.mxu0 0.0
        %530 = vmatpush.msra.mxu0 0.0
        %531 = vmatpush.msra.mxu0 0.0
        %532 = vmatpush.msra.mxu0 0.0
        %533 = vmatpush.msra.mxu0 0.0
        %534 = vmatpush.msra.mxu0 %v303
        %535 = vmatmul.f32.gmra.mxu0 %v517
        %v536 = vpop.f32.mrf.mxu0
        %v537 = vadd.f32 0.0, %v536
        %538 = vdwg.mxu0
        %v540 = vsel %vm305, %v465, 0
        %542 = vmatpush.msra.mxu0 0.0
        %543 = vmatpush.msra.mxu0 0.0
        %544 = vmatpush.msra.mxu0 0.0
        %545 = vmatpush.msra.mxu0 0.0
        %546 = vmatpush.msra.mxu0 0.0
        %547 = vmatpush.msra.mxu0 0.0
        %548 = vmatpush.msra.mxu0 0.0
        %549 = vmatpush.msra.mxu0 0.0
        %550 = vmatpush.msra.mxu0 0.0
        %551 = vmatpush.msra.mxu0 0.0
        %552 = vmatpush.msra.mxu0 0.0
        %553 = vmatpush.msra.mxu0 0.0
        %554 = vmatpush.msra.mxu0 0.0
        %555 = vmatpush.msra.mxu0 0.0
        %556 = vmatpush.msra.mxu0 0.0
        %557 = vmatpush.msra.mxu0 %v304
        %558 = vmatmul.f32.gmra.mxu0 %v540
        %v559 = vpop.f32.mrf.mxu0
        %v560 = vadd.f32 0.0, %v559
        %561 = vdwg.mxu0
        %562 = vst.msk [vmem:[%s292] sm:$0xff] %vm305, %v491
        %563 = vst.msk [vmem:[%s292 + $0x8] sm:$0xff] %vm305, %v514
        %564 = vst.msk [vmem:[%s292 + $0x10] sm:$0xff] %vm305, %v537
        %565 = vst.msk [vmem:[%s292 + $0x18] sm:$0xff] %vm305, %v560
        %p566 = scmp.lt.s32.totalorder %s20, 1
        %s567 = scalar_select %p566, %s20, 1
        %s568 = smul.addr %s567, 4
        %s569 = smul.addr %s568, 8
        %s570 = scalar_lea.vmem %s4, %s569
        %s571 = sand.u32 %s158, 1
        %s572 = scalar_lea.sflag [#allocation3], %s571
        %s573 = sand.u32 %s158, 1
        %s574 = smul.addr %s573, 32
        %s575 = scalar_lea.vmem [#allocation2], %s574
        // Predicated region
        $region37: #{decoder_layer.9} parent=35 // pred_check
          %p576 = pneg %p142
        $region38: #{decoder_layer.9} parent=35 // pred_check_branch
          %578 = sbr.rel (%p576) target = $region40
        $region39: #{decoder_layer.9} parent=35 // pred_region
          _
        $region40: #{decoder_layer.9} parent=35 // pred_fallthru
          _
        // Predicated region
        $region41: #{decoder_layer.9} parent=35 // pred_check
          %p579 = pneg %p168
        $region42: #{decoder_layer.9} parent=35 // pred_check_branch
          %581 = sbr.rel (%p579) target = $region44
        $region43: #{decoder_layer.9} parent=35 // pred_region
          %583 = vsyncadd %s572, 0
          %s584 = smul.addr %s20, 4
          %s585 = smul.addr %s584, 8
          %s586 = scalar_lea.hbm %s5, %s585
          %s587 = sshll.u32 %s575, 4
          %s588 = int_to_ptr.vmem [resolvable:$true] %s587
          %s589 = sshll.u32 %s586, 4
          %s590 = int_to_ptr.hbm [resolvable:$true] %s589
          %595 = dma.vmem_to_hbm [thread:$0]  %s588, 512, %s590, %s572, 128, 128, 8
        $region44: #{decoder_layer.9} parent=35 // pred_fallthru
          _
      $region36: #{decoder_layer.9} parent=5 // pred_fallthru
        _
      %p596 = scmp.le.s32.totalorder 2, %s15
      // Predicated region
      $region45: #{decoder_layer.9} parent=5 // pred_check
        %p597 = pneg %p596
      $region46: #{decoder_layer.9} parent=5 // pred_check_branch
        %599 = sbr.rel (%p597) target = $region48
      $region47: #{decoder_layer.9} parent=5 // pred_region
        %s600 = ssub.s32 %s15, 2
        // Predicated region
        $region49: #{decoder_layer.9} parent=47 // pred_check
          %p601 = pneg %p148
        $region50: #{decoder_layer.9} parent=47 // pred_check_branch
          %603 = sbr.rel (%p601) target = $region52
        $region51: #{decoder_layer.9} parent=47 // pred_region
          %p604 = scmp.lt.s32.totalorder %s21, 1
          %s605 = scalar_select %p604, %s21, 1
          %s606 = smul.addr %s605, 4
          %s607 = smul.addr %s606, 8
          %s608 = scalar_lea.vmem %s4, %s607
        $region52: #{decoder_layer.9} parent=47 // pred_fallthru
          _
        // Predicated region
        $region53: #{decoder_layer.9} parent=47 // pred_check
          %p609 = pneg %p174
        $region54: #{decoder_layer.9} parent=47 // pred_check_branch
          %611 = sbr.rel (%p609) target = $region56
        $region55: #{decoder_layer.9} parent=47 // pred_region
          %s612 = sand.u32 %s159, 1
          %s613 = scalar_lea.sflag [#allocation3], %s612
          %s614 = sand.u32 %s159, 1
          %s615 = smul.addr %s614, 32
          %s616 = scalar_lea.vmem [#allocation2], %s615
          %618 = dma.done %s613, 512
        $region56: #{decoder_layer.9} parent=47 // pred_fallthru
          _
      $region48: #{decoder_layer.9} parent=5 // pred_fallthru
        _
    $region6: #{decoder_layer.9} parent=1 // loop_footer
      %s19 = sadd.s32 1, %s15
    $region7: #{decoder_layer.9} parent=1 // loop_footer_branch
      %14 = sbr.rel target = $region3
    $region8: #{decoder_layer.9} parent=1 // loop_exit
      _
    %619 = vsyncpa [#allocation3], 1
    %s620 = scalar_lea.sflag [#allocation3], 1
    %621 = vsyncpa %s620, 1

// kernel: decoder_layer.12
$region0: #{decoder_layer.12}
  #allocation0 [shape = 'u32[]', space=smem, size = 0x4, offset = 0x4, fixed_abs, tag = 'smem constant byte address 0x4 - core index']
  #allocation1 [shape = 'u32[72,128]{1,0:T(1,128)}', space=vmem, size = 0x9000, scoped, tag = 'internal scratch']
  %s0 = inlined_call_operand.vmem [shape: f32[32,32], index: 0, kind: input, shape index: {}]
  %s1 = inlined_call_operand.vmem [shape: f32[32,64], index: 1, kind: input, shape index: {}]
  %s2 = inlined_call_operand.vmem [shape: f32[1,64], index: 2, kind: input, shape index: {}]
  %s3 = inlined_call_operand.vmem [shape: f32[32,64], index: 3, kind: output, shape index: {}]
  %s4 = sld [smem:[#allocation0]]
  $region45: #{decoder_layer.12} parent=0
    _
  %s6 = ssub.s32 1, %s4
  %s7 = scalar_select 0, %s6, %s4
  loop: start=0, step=1, limit=4
  $region2: #{decoder_layer.12} parent=0 // loop_pre_header
    _
  $region3: #{decoder_layer.12} parent=0 // loop_header
    %s9 = sphi 0, %s13
    %p10 = scmp.ge.s32.totalorder %s9, 4
    %s19 = sphi 0, %s21
    %s22 = sphi 0, %s19
    %s23 = sphi 0, %s22
    %s39 = sphi 0, %s23
    %s43 = sphi 0, %s43
    %s45 = sphi 0, %s43
    %s46 = sphi 0, %s45
    %s60 = sphi 0, %s46
    %s64 = sphi 0, %s64
    %s66 = sphi 0, %s64
    %s67 = sphi 0, %s66
    %s81 = sphi 0, %s67
    %s87 = sphi 0, %s89
    %s90 = sphi 0, %s87
    %s91 = sphi 0, %s90
    %s107 = sphi 0, %s91
  $region4: #{decoder_layer.12} parent=0 // loop_header_branch
    %12 = sbr.rel (%p10) target = $region8
  $region5: #{decoder_layer.12} parent=0 // loop_body
    %s14 = ssub.s32 %s9, 1
    %s15 = ssub.s32 %s9, 2
    %s16 = sadd.s32 %s9, 1
    %s17 = ssub.s32 %s9, %s16
    %p18 = scmp.eq.s32.totalorder %s17, 0
    %s20 = sadd.s32 %s19, 1
    %s21 = scalar_select %p18, %s19, %s20
    %p24 = pneg %p18
    %p25 = scmp.eq.s32.totalorder %s9, 1
    %p26 = por %p24, %p25
    %p27 = scmp.ne.s32.totalorder %s19, %s22
    %p28 = scmp.eq.s32.totalorder %s9, 0
    %p29 = por %p27, %p28
    %p30 = scmp.ne.s32.totalorder %s19, %s22
    %p31 = scmp.eq.s32.totalorder %s14, 1
    %p32 = por %p30, %p31
    %p33 = scmp.ne.s32.totalorder %s22, %s23
    %p34 = scmp.eq.s32.totalorder %s14, 0
    %p35 = por %p33, %p34
    %p36 = scmp.ne.s32.totalorder %s22, %s23
    %p37 = scmp.eq.s32.totalorder %s15, 1
    %p38 = por %p36, %p37
    %p40 = scmp.ne.s32.totalorder %s23, %s39
    %p41 = scmp.eq.s32.totalorder %s15, 0
    %p42 = por %p40, %p41
    %s44 = sadd.s32 %s43, 1
    %p47 = scmp.eq.s32.totalorder %s9, 1
    %p48 = scmp.ne.s32.totalorder %s43, %s45
    %p49 = scmp.eq.s32.totalorder %s9, 0
    %p50 = por %p48, %p49
    %p51 = scmp.ne.s32.totalorder %s43, %s45
    %p52 = scmp.eq.s32.totalorder %s14, 1
    %p53 = por %p51, %p52
    %p54 = scmp.ne.s32.totalorder %s45, %s46
    %p55 = scmp.eq.s32.totalorder %s14, 0
    %p56 = por %p54, %p55
    %p57 = scmp.ne.s32.totalorder %s45, %s46
    %p58 = scmp.eq.s32.totalorder %s15, 1
    %p59 = por %p57, %p58
    %p61 = scmp.ne.s32.totalorder %s46, %s60
    %p62 = scmp.eq.s32.totalorder %s15, 0
    %p63 = por %p61, %p62
    %s65 = sadd.s32 %s64, 1
    %p68 = scmp.eq.s32.totalorder %s9, 1
    %p69 = scmp.ne.s32.totalorder %s64, %s66
    %p70 = scmp.eq.s32.totalorder %s9, 0
    %p71 = por %p69, %p70
    %p72 = scmp.ne.s32.totalorder %s64, %s66
    %p73 = scmp.eq.s32.totalorder %s14, 1
    %p74 = por %p72, %p73
    %p75 = scmp.ne.s32.totalorder %s66, %s67
    %p76 = scmp.eq.s32.totalorder %s14, 0
    %p77 = por %p75, %p76
    %p78 = scmp.ne.s32.totalorder %s66, %s67
    %p79 = scmp.eq.s32.totalorder %s15, 1
    %p80 = por %p78, %p79
    %p82 = scmp.ne.s32.totalorder %s67, %s81
    %p83 = scmp.eq.s32.totalorder %s15, 0
    %p84 = por %p82, %p83
    %s85 = ssub.s32 %s9, %s16
    %p86 = scmp.eq.s32.totalorder %s85, 0
    %s88 = sadd.s32 %s87, 1
    %s89 = scalar_select %p86, %s87, %s88
    %p92 = pneg %p86
    %p93 = scmp.eq.s32.totalorder %s9, 1
    %p94 = por %p92, %p93
    %p95 = scmp.ne.s32.totalorder %s87, %s90
    %p96 = scmp.eq.s32.totalorder %s9, 0
    %p97 = por %p95, %p96
    %p98 = scmp.ne.s32.totalorder %s87, %s90
    %p99 = scmp.eq.s32.totalorder %s14, 1
    %p100 = por %p98, %p99
    %p101 = scmp.ne.s32.totalorder %s90, %s91
    %p102 = scmp.eq.s32.totalorder %s14, 0
    %p103 = por %p101, %p102
    %p104 = scmp.ne.s32.totalorder %s90, %s91
    %p105 = scmp.eq.s32.totalorder %s15, 1
    %p106 = por %p104, %p105
    %p108 = scmp.ne.s32.totalorder %s91, %s107
    %p109 = scmp.eq.s32.totalorder %s15, 0
    %p110 = por %p108, %p109
    %p111 = scmp.le.s32.totalorder 1, %s9
    %p112 = scmp.lt.s32.totalorder %s9, 3
    %p113 = pnand %p111, %p112
    %p114 = pneg %p113
    // Predicated region
    $region9: #{decoder_layer.12} parent=5 // pred_check
      _
    $region10: #{decoder_layer.12} parent=5 // pred_check_branch
      %116 = sbr.rel (%p113) target = $region12
    $region11: #{decoder_layer.12} parent=5 // pred_region
      %s117 = ssub.s32 %s9, 1
      // Predicated region
      $region13: #{decoder_layer.12} parent=11 // pred_check
        %p118 = pneg %p56
      $region14: #{decoder_layer.12} parent=11 // pred_check_branch
        %120 = sbr.rel (%p118) target = $region16
      $region15: #{decoder_layer.12} parent=11 // pred_region
        _
      $region16: #{decoder_layer.12} parent=11 // pred_fallthru
        _
      // Predicated region
      $region17: #{decoder_layer.12} parent=11 // pred_check
        %p121 = pneg %p77
      $region18: #{decoder_layer.12} parent=11 // pred_check_branch
        %123 = sbr.rel (%p121) target = $region20
      $region19: #{decoder_layer.12} parent=11 // pred_region
        _
      $region20: #{decoder_layer.12} parent=11 // pred_fallthru
        _
    $region12: #{decoder_layer.12} parent=5 // pred_fallthru
      _
    %p124 = scmp.lt.s32.totalorder %s9, 2
    // Predicated region
    $region21: #{decoder_layer.12} parent=5 // pred_check
      %p125 = pneg %p124
    $region22: #{decoder_layer.12} parent=5 // pred_check_branch
      %127 = sbr.rel (%p125) target = $region24
    $region23: #{decoder_layer.12} parent=5 // pred_region
      // Predicated region
      $region25: #{decoder_layer.12} parent=23 // pred_check
        %p128 = pneg %p29
      $region26: #{decoder_layer.12} parent=23 // pred_check_branch
        %130 = sbr.rel (%p128) target = $region28
      $region27: #{decoder_layer.12} parent=23 // pred_region
        %s131 = smul.u32 2, %s9
        %p132 = scmp.lt.s32.totalorder %s131, 3
        %s133 = scalar_select %p132, %s131, 3
        %s134 = smul.addr %s133, 8
        %s135 = scalar_lea.vmem %s0, %s134
        %s136 = smul.u32 2, %s9
      $region28: #{decoder_layer.12} parent=23 // pred_fallthru
        _
    $region24: #{decoder_layer.12} parent=5 // pred_fallthru
      _
    %p137 = scmp.le.s32.totalorder 1, %s9
    %p138 = scmp.lt.s32.totalorder %s9, 3
    %p139 = pnand %p137, %p138
    %p140 = pneg %p139
    // Predicated region
    $region29: #{decoder_layer.12} parent=5 // pred_check
      _
    $region30: #{decoder_layer.12} parent=5 // pred_check_branch
      %142 = sbr.rel (%p139) target = $region32
    $region31: #{decoder_layer.12} parent=5 // pred_region
      %s143 = ssub.s32 %s9, 1
      %s144 = smul.u32 2, %s14
      %p145 = scmp.lt.s32.totalorder %s144, 3
      %s146 = scalar_select %p145, %s144, 3
      %s147 = smul.addr %s146, 8
      %s148 = scalar_lea.vmem %s0, %s147
      %p149 = pneg %p35
      %p150 = pneg %p32
      %p151 = pneg %p56
      %p152 = pneg %p53
      %p153 = pneg %p77
      %p154 = pneg %p74
      %p155 = pneg %p103
      %p156 = pneg %p100
      %s157 = smul.u32 2, %s14
      %p158 = scmp.lt.s32.totalorder %s157, 3
      %s159 = scalar_select %p158, %s157, 3
      %s160 = smul.addr %s159, 8
      %s161 = scalar_lea.vmem %s3, %s160
      %s162 = smul.u32 2, %s14
      %p163 = scmp.lt.s32.totalorder %s162, 3
      %s164 = scalar_select %p163, %s162, 3
      %s165 = smul.addr %s164, 8
      %s166 = scalar_lea.vmem %s0, %s165
      %s167 = smul.u32 2, %s14
      %s168 = smul.u32 2, %s14
      %p169 = scmp.lt.s32.totalorder %s168, 3
      %s170 = scalar_select %p169, %s168, 3
      %s171 = smul.addr %s170, 8
      %s172 = scalar_lea.vmem %s3, %s171
      %s173 = smul.u32 2, %s14
      %v174 = vld [vmem:[%s166] sm:$0xff]
      %v175 = vld [vmem:[%s166 + $0x8] sm:$0xff]
      %v176 = vld [vmem:[%s1] sm:$0xff]
      %v177 = vld [vmem:[%s1 + $0x8] sm:$0xff]
      %v178 = vld [vmem:[%s1 + $0x10] sm:$0xff]
      %v179 = vld [vmem:[%s1 + $0x18] sm:$0xff]
      %v180 = vld [vmem:[%s2] sm:$0x1]
      %v182 = vperm.slane %v180, 0
      %vm184 = vcmask 261120
      %v186 = vsel %vm184, %v174, 0
      %v189 = vsel %vm184, %v175, 0
      %191 = vmatpush.msra.mxu0 0.0
      %192 = vmatpush.msra.mxu0 0.0
      %193 = vmatpush.msra.mxu0 0.0
      %194 = vmatpush.msra.mxu0 0.0
      %195 = vmatpush.msra.mxu0 0.0
      %196 = vmatpush.msra.mxu0 0.0
      %197 = vmatpush.msra.mxu0 0.0
      %198 = vmatpush.msra.mxu0 0.0
      %199 = vmatpush.msra.mxu0 0.0
      %200 = vmatpush.msra.mxu0 0.0
      %201 = vmatpush.msra.mxu0 0.0
      %202 = vmatpush.msra.mxu0 0.0
      %203 = vmatpush.msra.mxu0 %v179
      %204 = vmatpush.msra.mxu0 %v178
      %205 = vmatpush.msra.mxu0 %v177
      %206 = vmatpush.msra.mxu0 %v176
      %207 = vmatmul.f32.gmra.mxu0 %v186
      %v208 = vpop.f32.mrf.mxu0
      %v209 = vadd.f32 %v182, %v208
      %210 = vmatmul.f32.gmra.mxu0 %v189
      %v211 = vpop.f32.mrf.mxu0
      %v212 = vadd.f32 %v182, %v211
      %213 = vdwg.mxu0
      %vm214 = vcmask 523264
      %215 = vst.msk [vmem:[%s172] sm:$0xff] %vm214, %v209
      %216 = vst.msk [vmem:[%s172 + $0x8] sm:$0xff] %vm214, %v212
      %s217 = smul.u32 2, %s14
      %p218 = scmp.lt.s32.totalorder %s217, 3
      %s219 = scalar_select %p218, %s217, 3
      %s220 = smul.addr %s219, 8
      %s221 = scalar_lea.vmem %s3, %s220
      // Predicated region
      $region33: #{decoder_layer.12} parent=31 // pred_check
        %p222 = pneg %p100
      $region34: #{decoder_layer.12} parent=31 // pred_check_branch
        %224 = sbr.rel (%p222) target = $region36
      $region35: #{decoder_layer.12} parent=31 // pred_region
        %s225 = smul.u32 2, %s14
      $region36: #{decoder_layer.12} parent=31 // pred_fallthru
        _
    $region32: #{decoder_layer.12} parent=5 // pred_fallthru
      _
    %p226 = scmp.le.s32.totalorder 2, %s9
    // Predicated region
    $region37: #{decoder_layer.12} parent=5 // pred_check
      %p227 = pneg %p226
    $region38: #{decoder_layer.12} parent=5 // pred_check_branch
      %229 = sbr.rel (%p227) target = $region40
    $region39: #{decoder_layer.12} parent=5 // pred_region
      %s230 = ssub.s32 %s9, 2
      // Predicated region
      $region41: #{decoder_layer.12} parent=39 // pred_check
        %p231 = pneg %p106
      $region42: #{decoder_layer.12} parent=39 // pred_check_branch
        %233 = sbr.rel (%p231) target = $region44
      $region43: #{decoder_layer.12} parent=39 // pred_region
        %s234 = smul.u32 2, %s15
        %p235 = scmp.lt.s32.totalorder %s234, 3
        %s236 = scalar_select %p235, %s234, 3
        %s237 = smul.addr %s236, 8
        %s238 = scalar_lea.vmem %s3, %s237
      $region44: #{decoder_layer.12} parent=39 // pred_fallthru
        _
    $region40: #{decoder_layer.12} parent=5 // pred_fallthru
      _
  $region6: #{decoder_layer.12} parent=0 // loop_footer
    %s13 = sadd.s32 1, %s9
  $region7: #{decoder_layer.12} parent=0 // loop_footer_branch
    %8 = sbr.rel target = $region3
  $region8: #{decoder_layer.12} parent=0 // loop_exit
    _

// kernel: decoder_layer.13
$region0: #{decoder_layer.13}
  #allocation0 [shape = 'u32[]', space=smem, size = 0x4, offset = 0x4, fixed_abs, tag = 'smem constant byte address 0x4 - core index']
  #allocation1 [shape = 'u32[72,128]{1,0:T(1,128)}', space=vmem, size = 0x9000, scoped, tag = 'internal scratch']
  %s0 = inlined_call_operand.vmem [shape: f32[2,4,8,8], index: 0, kind: input, shape index: {}]
  %s1 = inlined_call_operand.vmem [shape: f32[2,4,16,8], index: 1, kind: input, shape index: {}]
  %s2 = inlined_call_operand.vmem [shape: f32[2,4,16,8], index: 2, kind: input, shape index: {}]
  %s3 = inlined_call_operand.vmem [shape: f32[2,4,8,8], index: 3, kind: output, shape index: {0}]
  %s4 = inlined_call_operand.hbm [shape: f32[2,4,8,16], index: 4, kind: output, shape index: {1}]
  %5 = xla_tuple %s3, %s4
  %s6 = sld [smem:[#allocation0]]
  $region53: #{decoder_layer.13} parent=0
    _
  %s8 = ssub.s32 1, %s6
  %s9 = scalar_select 0, %s8, %s6
  $region1: #{decoder_layer.13} parent=0
    #allocation2 [shape = 'u8[32768]{0}', space=vmem, size = 0x8000, scoped, tag = 'output window, operand 1']
    #allocation3 [shape = 's32[2]{0}', space=sflag, size = 0x8, scoped, tag = 'scoped memory for decoder_layer.13']
    %10 = vsyncpa [#allocation3], 0
    %s11 = scalar_lea.sflag [#allocation3], 1
    %12 = vsyncpa %s11, 0
    loop: start=0, step=1, limit=4
    $region2: #{decoder_layer.13} parent=1 // loop_pre_header
      _
    $region3: #{decoder_layer.13} parent=1 // loop_header
      %s14 = sphi 0, %s18
      %p15 = scmp.ge.s32.totalorder %s14, 4
      %s24 = sphi 0, %s26
      %s27 = sphi 0, %s24
      %s28 = sphi 0, %s27
      %s44 = sphi 0, %s28
      %s50 = sphi 0, %s52
      %s53 = sphi 0, %s50
      %s54 = sphi 0, %s53
      %s70 = sphi 0, %s54
      %s76 = sphi 0, %s78
      %s79 = sphi 0, %s76
      %s80 = sphi 0, %s79
      %s96 = sphi 0, %s80
      %s102 = sphi 0, %s104
      %s105 = sphi 0, %s102
      %s106 = sphi 0, %s105
      %s122 = sphi 0, %s106
      %s128 = sphi 0, %s130
      %s131 = sphi 0, %s128
      %s132 = sphi 0, %s131
      %s148 = sphi 0, %s132
    $region4: #{decoder_layer.13} parent=1 // loop_header_branch
      %17 = sbr.rel (%p15) target = $region8
    $region5: #{decoder_layer.13} parent=1 // loop_body
      %s19 = ssub.s32 %s14, 1
      %s20 = ssub.s32 %s14, 2
      %s21 = sadd.s32 %s14, 1
      %s22 = ssub.s32 %s14, %s21
      %p23 = scmp.eq.s32.totalorder %s22, 0
      %s25 = sadd.s32 %s24, 1
      %s26 = scalar_select %p23, %s24, %s25
      %p29 = pneg %p23
      %p30 = scmp.eq.s32.totalorder %s14, 1
      %p31 = por %p29, %p30
      %p32 = scmp.ne.s32.totalorder %s24, %s27
      %p33 = scmp.eq.s32.totalorder %s14, 0
      %p34 = por %p32, %p33
      %p35 = scmp.ne.s32.totalorder %s24, %s27
      %p36 = scmp.eq.s32.totalorder %s19, 1
      %p37 = por %p35, %p36
      %p38 = scmp.ne.s32.totalorder %s27, %s28
      %p39 = scmp.eq.s32.totalorder %s19, 0
      %p40 = por %p38, %p39
      %p41 = scmp.ne.s32.totalorder %s27, %s28
      %p42 = scmp.eq.s32.totalorder %s20, 1
      %p43 = por %p41, %p42
      %p45 = scmp.ne.s32.totalorder %s28, %s44
      %p46 = scmp.eq.s32.totalorder %s20, 0
      %p47 = por %p45, %p46
      %s48 = ssub.s32 %s14, %s21
      %p49 = scmp.eq.s32.totalorder %s48, 0
      %s51 = sadd.s32 %s50, 1
      %s52 = scalar_select %p49, %s50, %s51
      %p55 = pneg %p49
      %p56 = scmp.eq.s32.totalorder %s14, 1
      %p57 = por %p55, %p56
      %p58 = scmp.ne.s32.totalorder %s50, %s53
      %p59 = scmp.eq.s32.totalorder %s14, 0
      %p60 = por %p58, %p59
      %p61 = scmp.ne.s32.totalorder %s50, %s53
      %p62 = scmp.eq.s32.totalorder %s19, 1
      %p63 = por %p61, %p62
      %p64 = scmp.ne.s32.totalorder %s53, %s54
      %p65 = scmp.eq.s32.totalorder %s19, 0
      %p66 = por %p64, %p65
      %p67 = scmp.ne.s32.totalorder %s53, %s54
      %p68 = scmp.eq.s32.totalorder %s20, 1
      %p69 = por %p67, %p68
      %p71 = scmp.ne.s32.totalorder %s54, %s70
      %p72 = scmp.eq.s32.totalorder %s20, 0
      %p73 = por %p71, %p72
      %s74 = ssub.s32 %s14, %s21
      %p75 = scmp.eq.s32.totalorder %s74, 0
      %s77 = sadd.s32 %s76, 1
      %s78 = scalar_select %p75, %s76, %s77
      %p81 = pneg %p75
      %p82 = scmp.eq.s32.totalorder %s14, 1
      %p83 = por %p81, %p82
      %p84 = scmp.ne.s32.totalorder %s76, %s79
      %p85 = scmp.eq.s32.totalorder %s14, 0
      %p86 = por %p84, %p85
      %p87 = scmp.ne.s32.totalorder %s76, %s79
      %p88 = scmp.eq.s32.totalorder %s19, 1
      %p89 = por %p87, %p88
      %p90 = scmp.ne.s32.totalorder %s79, %s80
      %p91 = scmp.eq.s32.totalorder %s19, 0
      %p92 = por %p90, %p91
      %p93 = scmp.ne.s32.totalorder %s79, %s80
      %p94 = scmp.eq.s32.totalorder %s20, 1
      %p95 = por %p93, %p94
      %p97 = scmp.ne.s32.totalorder %s80, %s96
      %p98 = scmp.eq.s32.totalorder %s20, 0
      %p99 = por %p97, %p98
      %s100 = ssub.s32 %s14, %s21
      %p101 = scmp.eq.s32.totalorder %s100, 0
      %s103 = sadd.s32 %s102, 1
      %s104 = scalar_select %p101, %s102, %s103
      %p107 = pneg %p101
      %p108 = scmp.eq.s32.totalorder %s14, 1
      %p109 = por %p107, %p108
      %p110 = scmp.ne.s32.totalorder %s102, %s105
      %p111 = scmp.eq.s32.totalorder %s14, 0
      %p112 = por %p110, %p111
      %p113 = scmp.ne.s32.totalorder %s102, %s105
      %p114 = scmp.eq.s32.totalorder %s19, 1
      %p115 = por %p113, %p114
      %p116 = scmp.ne.s32.totalorder %s105, %s106
      %p117 = scmp.eq.s32.totalorder %s19, 0
      %p118 = por %p116, %p117
      %p119 = scmp.ne.s32.totalorder %s105, %s106
      %p120 = scmp.eq.s32.totalorder %s20, 1
      %p121 = por %p119, %p120
      %p123 = scmp.ne.s32.totalorder %s106, %s122
      %p124 = scmp.eq.s32.totalorder %s20, 0
      %p125 = por %p123, %p124
      %s126 = ssub.s32 %s14, %s21
      %p127 = scmp.eq.s32.totalorder %s126, 0
      %s129 = sadd.s32 %s128, 1
      %s130 = scalar_select %p127, %s128, %s129
      %p133 = pneg %p127
      %p134 = scmp.eq.s32.totalorder %s14, 1
      %p135 = por %p133, %p134
      %p136 = scmp.ne.s32.totalorder %s128, %s131
      %p137 = scmp.eq.s32.totalorder %s14, 0
      %p138 = por %p136, %p137
      %p139 = scmp.ne.s32.totalorder %s128, %s131
      %p140 = scmp.eq.s32.totalorder %s19, 1
      %p141 = por %p139, %p140
      %p142 = scmp.ne.s32.totalorder %s131, %s132
      %p143 = scmp.eq.s32.totalorder %s19, 0
      %p144 = por %p142, %p143
      %p145 = scmp.ne.s32.totalorder %s131, %s132
      %p146 = scmp.eq.s32.totalorder %s20, 1
      %p147 = por %p145, %p146
      %p149 = scmp.ne.s32.totalorder %s132, %s148
      %p150 = scmp.eq.s32.totalorder %s20, 0
      %p151 = por %p149, %p150
      %p152 = scmp.le.s32.totalorder 1, %s14
      %p153 = scmp.lt.s32.totalorder %s14, 3
      %p154 = pnand %p152, %p153
      %p155 = pneg %p154
      // Predicated region
      $region9: #{decoder_layer.13} parent=5 // pred_check
        _
      $region10: #{decoder_layer.13} parent=5 // pred_check_branch
        %157 = sbr.rel (%p154) target = $region12
      $region11: #{decoder_layer.13} parent=5 // pred_region
        %s158 = ssub.s32 %s14, 1
      $region12: #{decoder_layer.13} parent=5 // pred_fallthru
        _
      %p159 = scmp.lt.s32.totalorder %s14, 2
      // Predicated region
      $region13: #{decoder_layer.13} parent=5 // pred_check
        %p160 = pneg %p159
      $region14: #{decoder_layer.13} parent=5 // pred_check_branch
        %162 = sbr.rel (%p160) target = $region16
      $region15: #{decoder_layer.13} parent=5 // pred_region
        // Predicated region
        $region17: #{decoder_layer.13} parent=15 // pred_check
          %p163 = pneg %p34
        $region18: #{decoder_layer.13} parent=15 // pred_check_branch
          %165 = sbr.rel (%p163) target = $region20
        $region19: #{decoder_layer.13} parent=15 // pred_region
          %p166 = scmp.lt.s32.totalorder %s14, 1
          %s167 = scalar_select %p166, %s14, 1
          %s168 = smul.addr %s167, 4
          %s169 = smul.addr %s168, 8
          %s170 = scalar_lea.vmem %s0, %s169
        $region20: #{decoder_layer.13} parent=15 // pred_fallthru
          _
        // Predicated region
        $region21: #{decoder_layer.13} parent=15 // pred_check
          %p171 = pneg %p60
        $region22: #{decoder_layer.13} parent=15 // pred_check_branch
          %173 = sbr.rel (%p171) target = $region24
        $region23: #{decoder_layer.13} parent=15 // pred_region
          %p174 = scmp.lt.s32.totalorder %s14, 1
          %s175 = scalar_select %p174, %s14, 1
          %s176 = smul.addr %s175, 8
          %s177 = smul.addr %s176, 8
          %s178 = scalar_lea.vmem %s1, %s177
        $region24: #{decoder_layer.13} parent=15 // pred_fallthru
          _
        // Predicated region
        $region25: #{decoder_layer.13} parent=15 // pred_check
          %p179 = pneg %p86
        $region26: #{decoder_layer.13} parent=15 // pred_check_branch
          %181 = sbr.rel (%p179) target = $region28
        $region27: #{decoder_layer.13} parent=15 // pred_region
          %p182 = scmp.lt.s32.totalorder %s14, 1
          %s183 = scalar_select %p182, %s14, 1
          %s184 = smul.addr %s183, 8
          %s185 = smul.addr %s184, 8
          %s186 = scalar_lea.vmem %s2, %s185
        $region28: #{decoder_layer.13} parent=15 // pred_fallthru
          _
      $region16: #{decoder_layer.13} parent=5 // pred_fallthru
        _
      %p187 = scmp.le.s32.totalorder 1, %s14
      %p188 = scmp.lt.s32.totalorder %s14, 3
      %p189 = pnand %p187, %p188
      %p190 = pneg %p189
      // Predicated region
      $region29: #{decoder_layer.13} parent=5 // pred_check
        _
      $region30: #{decoder_layer.13} parent=5 // pred_check_branch
        %192 = sbr.rel (%p189) target = $region32
      $region31: #{decoder_layer.13} parent=5 // pred_region
        %s193 = ssub.s32 %s14, 1
        %p194 = scmp.lt.s32.totalorder %s19, 1
        %s195 = scalar_select %p194, %s19, 1
        %s196 = smul.addr %s195, 4
        %s197 = smul.addr %s196, 8
        %s198 = scalar_lea.vmem %s0, %s197
        %p199 = pneg %p40
        %p200 = pneg %p37
        %p201 = scmp.lt.s32.totalorder %s19, 1
        %s202 = scalar_select %p201, %s19, 1
        %s203 = smul.addr %s202, 8
        %s204 = smul.addr %s203, 8
        %s205 = scalar_lea.vmem %s1, %s204
        %p206 = pneg %p66
        %p207 = pneg %p63
        %p208 = scmp.lt.s32.totalorder %s19, 1
        %s209 = scalar_select %p208, %s19, 1
        %s210 = smul.addr %s209, 8
        %s211 = smul.addr %s210, 8
        %s212 = scalar_lea.vmem %s2, %s211
        %p213 = pneg %p92
        %p214 = pneg %p89
        %p215 = pneg %p118
        %p216 = pneg %p115
        %p217 = scmp.lt.s32.totalorder %s19, 1
        %s218 = scalar_select %p217, %s19, 1
        %s219 = smul.addr %s218, 4
        %s220 = smul.addr %s219, 8
        %s221 = scalar_lea.vmem %s3, %s220
        %p222 = pneg %p144
        %p223 = pneg %p141
        %s224 = sand.u32 %s131, 1
        %s225 = scalar_lea.sflag [#allocation3], %s224
        %s226 = sand.u32 %s131, 1
        %s227 = smul.addr %s226, 32
        %s228 = scalar_lea.vmem [#allocation2], %s227
        %p229 = scmp.lt.s32.totalorder %s19, 1
        %s230 = scalar_select %p229, %s19, 1
        %s231 = smul.addr %s230, 4
        %s232 = smul.addr %s231, 8
        %s233 = scalar_lea.vmem %s0, %s232
        %p234 = scmp.lt.s32.totalorder %s19, 1
        %s235 = scalar_select %p234, %s19, 1
        %s236 = smul.addr %s235, 8
        %s237 = smul.addr %s236, 8
        %s238 = scalar_lea.vmem %s1, %s237
        %p239 = scmp.lt.s32.totalorder %s19, 1
        %s240 = scalar_select %p239, %s19, 1
        %s241 = smul.addr %s240, 8
        %s242 = smul.addr %s241, 8
        %s243 = scalar_lea.vmem %s2, %s242
        %p244 = scmp.lt.s32.totalorder %s19, 1
        %s245 = scalar_select %p244, %s19, 1
        %s246 = smul.addr %s245, 4
        %s247 = smul.addr %s246, 8
        %s248 = scalar_lea.vmem %s3, %s247
        %v249 = vld [vmem:[%s233] sm:$0xff]
        %v250 = vld [vmem:[%s233 + $0x8] sm:$0xff]
        %v251 = vld [vmem:[%s233 + $0x10] sm:$0xff]
        %v252 = vld [vmem:[%s233 + $0x18] sm:$0xff]
        %v253 = vld [vmem:[%s238] sm:$0xff]
        %v254 = vld [vmem:[%s238 + $0x8] sm:$0xff]
        %v255 = vld [vmem:[%s238 + $0x10] sm:$0xff]
        %v256 = vld [vmem:[%s238 + $0x18] sm:$0xff]
        %v257 = vld [vmem:[%s238 + $0x20] sm:$0xff]
        %v258 = vld [vmem:[%s238 + $0x28] sm:$0xff]
        %v259 = vld [vmem:[%s238 + $0x30] sm:$0xff]
        %v260 = vld [vmem:[%s238 + $0x38] sm:$0xff]
        %v261 = vld [vmem:[%s243] sm:$0xff]
        %v262 = vld [vmem:[%s243 + $0x8] sm:$0xff]
        %v263 = vld [vmem:[%s243 + $0x10] sm:$0xff]
        %v264 = vld [vmem:[%s243 + $0x18] sm:$0xff]
        %v265 = vld [vmem:[%s243 + $0x20] sm:$0xff]
        %v266 = vld [vmem:[%s243 + $0x28] sm:$0xff]
        %v267 = vld [vmem:[%s243 + $0x30] sm:$0xff]
        %v268 = vld [vmem:[%s243 + $0x38] sm:$0xff]
        %vm269 = vcmask 64512
        %v271 = vsel %vm269, %v249, 0
        %v274 = vsel %vm269, %v253, 0
        %v277 = vsel %vm269, %v254, 0
        %279 = vmatpush.xpose.msra.mxu0 0.0
        %280 = vmatpush.xpose.msra.mxu0 0.0
        %281 = vmatpush.xpose.msra.mxu0 0.0
        %282 = vmatpush.xpose.msra.mxu0 0.0
        %283 = vmatpush.xpose.msra.mxu0 0.0
        %284 = vmatpush.xpose.msra.mxu0 0.0
        %285 = vmatpush.xpose.msra.mxu0 0.0
        %286 = vmatpush.xpose.msra.mxu0 0.0
        %287 = vmatpush.xpose.msra.mxu0 0.0
        %288 = vmatpush.xpose.msra.mxu0 0.0
        %289 = vmatpush.xpose.msra.mxu0 0.0
        %290 = vmatpush.xpose.msra.mxu0 0.0
        %291 = vmatpush.xpose.msra.mxu0 0.0
        %292 = vmatpush.xpose.msra.mxu0 0.0
        %293 = vmatpush.xpose.msra.mxu0 %v277
        %294 = vmatpush.xpose.msra.mxu0 %v274
        %295 = vmatmul.f32.gmra.mxu0 %v271
        %v296 = vpop.f32.mrf.mxu0
        %v297 = vadd.f32 0.0, %v296
        %298 = vdwg.mxu0
        %v300 = vsel %vm269, %v250, 0
        %v303 = vsel %vm269, %v255, 0
        %v306 = vsel %vm269, %v256, 0
        %308 = vmatpush.xpose.msra.mxu0 0.0
        %309 = vmatpush.xpose.msra.mxu0 0.0
        %310 = vmatpush.xpose.msra.mxu0 0.0
        %311 = vmatpush.xpose.msra.mxu0 0.0
        %312 = vmatpush.xpose.msra.mxu0 0.0
        %313 = vmatpush.xpose.msra.mxu0 0.0
        %314 = vmatpush.xpose.msra.mxu0 0.0
        %315 = vmatpush.xpose.msra.mxu0 0.0
        %316 = vmatpush.xpose.msra.mxu0 0.0
        %317 = vmatpush.xpose.msra.mxu0 0.0
        %318 = vmatpush.xpose.msra.mxu0 0.0
        %319 = vmatpush.xpose.msra.mxu0 0.0
        %320 = vmatpush.xpose.msra.mxu0 0.0
        %321 = vmatpush.xpose.msra.mxu0 0.0
        %322 = vmatpush.xpose.msra.mxu0 %v306
        %323 = vmatpush.xpose.msra.mxu0 %v303
        %324 = vmatmul.f32.gmra.mxu0 %v300
        %v325 = vpop.f32.mrf.mxu0
        %v326 = vadd.f32 0.0, %v325
        %327 = vdwg.mxu0
        %v329 = vsel %vm269, %v251, 0
        %v332 = vsel %vm269, %v257, 0
        %v335 = vsel %vm269, %v258, 0
        %337 = vmatpush.xpose.msra.mxu0 0.0
        %338 = vmatpush.xpose.msra.mxu0 0.0
        %339 = vmatpush.xpose.msra.mxu0 0.0
        %340 = vmatpush.xpose.msra.mxu0 0.0
        %341 = vmatpush.xpose.msra.mxu0 0.0
        %342 = vmatpush.xpose.msra.mxu0 0.0
        %343 = vmatpush.xpose.msra.mxu0 0.0
        %344 = vmatpush.xpose.msra.mxu0 0.0
        %345 = vmatpush.xpose.msra.mxu0 0.0
        %346 = vmatpush.xpose.msra.mxu0 0.0
        %347 = vmatpush.xpose.msra.mxu0 0.0
        %348 = vmatpush.xpose.msra.mxu0 0.0
        %349 = vmatpush.xpose.msra.mxu0 0.0
        %350 = vmatpush.xpose.msra.mxu0 0.0
        %351 = vmatpush.xpose.msra.mxu0 %v335
        %352 = vmatpush.xpose.msra.mxu0 %v332
        %353 = vmatmul.f32.gmra.mxu0 %v329
        %v354 = vpop.f32.mrf.mxu0
        %v355 = vadd.f32 0.0, %v354
        %356 = vdwg.mxu0
        %v358 = vsel %vm269, %v252, 0
        %v361 = vsel %vm269, %v259, 0
        %v364 = vsel %vm269, %v260, 0
        %366 = vmatpush.xpose.msra.mxu0 0.0
        %367 = vmatpush.xpose.msra.mxu0 0.0
        %368 = vmatpush.xpose.msra.mxu0 0.0
        %369 = vmatpush.xpose.msra.mxu0 0.0
        %370 = vmatpush.xpose.msra.mxu0 0.0
        %371 = vmatpush.xpose.msra.mxu0 0.0
        %372 = vmatpush.xpose.msra.mxu0 0.0
        %373 = vmatpush.xpose.msra.mxu0 0.0
        %374 = vmatpush.xpose.msra.mxu0 0.0
        %375 = vmatpush.xpose.msra.mxu0 0.0
        %376 = vmatpush.xpose.msra.mxu0 0.0
        %377 = vmatpush.xpose.msra.mxu0 0.0
        %378 = vmatpush.xpose.msra.mxu0 0.0
        %379 = vmatpush.xpose.msra.mxu0 0.0
        %380 = vmatpush.xpose.msra.mxu0 %v364
        %381 = vmatpush.xpose.msra.mxu0 %v361
        %382 = vmatmul.f32.gmra.mxu0 %v358
        %v383 = vpop.f32.mrf.mxu0
        %v384 = vadd.f32 0.0, %v383
        %385 = vdwg.mxu0
        %v386 = vmul.f32 %v297, 0.35355338
        %v387 = vmul.f32 %v326, 0.35355338
        %v388 = vmul.f32 %v355, 0.35355338
        %v389 = vmul.f32 %v384, 0.35355338
        %vm390 = vcmask 130048
        %v391 = vsel %vm390, %v386, -inf
        %392 = vmax.xlane.f32.xlu0 %v391
        %v393 = vpop.xlane.xlu0 %392
        %v394 = vsel %vm390, %v387, -inf
        %395 = vmax.xlane.f32.xlu0 %v394
        %v396 = vpop.xlane.xlu0 %395
        %v397 = vsel %vm390, %v388, -inf
        %398 = vmax.xlane.f32.xlu0 %v397
        %v399 = vpop.xlane.xlu0 %398
        %v400 = vsel %vm390, %v389, -inf
        %401 = vmax.xlane.f32.xlu0 %v400
        %v402 = vpop.xlane.xlu0 %401
        %v403 = vsub.f32 %v386, %v393
        %v404 = vsub.f32 %v387, %v396
        %v405 = vsub.f32 %v388, %v399
        %v406 = vsub.f32 %v389, %v402
        %v407 = vmul.f32 %v403, 1.442695
        %v408 = vpow.pop %v407
        %v409 = vmul.f32 %v404, 1.442695
        %v410 = vpow.pop %v409
        %v411 = vmul.f32 %v405, 1.442695
        %v412 = vpow.pop %v411
        %v413 = vmul.f32 %v406, 1.442695
        %v414 = vpow.pop %v413
        %v415 = vsel %vm390, %v408, 0.0
        %416 = vadd.xlane.f32.xlu0 %v415
        %v417 = vpop.xlane.xlu0 %416
        %v418 = vsel %vm390, %v410, 0.0
        %419 = vadd.xlane.f32.xlu0 %v418
        %v420 = vpop.xlane.xlu0 %419
        %v421 = vsel %vm390, %v412, 0.0
        %422 = vadd.xlane.f32.xlu0 %v421
        %v423 = vpop.xlane.xlu0 %422
        %v424 = vsel %vm390, %v414, 0.0
        %425 = vadd.xlane.f32.xlu0 %v424
        %v426 = vpop.xlane.xlu0 %425
        %v427 = vrcp.pop %v417
        %v428 = vrcp.pop %v420
        %v429 = vrcp.pop %v423
        %v430 = vrcp.pop %v426
        %v431 = vmul.f32 %v408, %v427
        %v432 = vmul.f32 %v410, %v428
        %v433 = vmul.f32 %v412, %v429
        %v434 = vmul.f32 %v414, %v430
        %435 = vst.msk [vmem:[%s228] sm:$0xff] %vm390, %v431
        %436 = vst.msk [vmem:[%s228 + $0x8] sm:$0xff] %vm390, %v432
        %437 = vst.msk [vmem:[%s228 + $0x10] sm:$0xff] %vm390, %v433
        %438 = vst.msk [vmem:[%s228 + $0x18] sm:$0xff] %vm390, %v434
        %v440 = vsel %vm390, %v431, 0
        %442 = vmatpush.msra.mxu0 0.0
        %443 = vmatpush.msra.mxu0 0.0
        %444 = vmatpush.msra.mxu0 0.0
        %445 = vmatpush.msra.mxu0 0.0
        %446 = vmatpush.msra.mxu0 0.0
        %447 = vmatpush.msra.mxu0 0.0
        %448 = vmatpush.msra.mxu0 0.0
        %449 = vmatpush.msra.mxu0 0.0
        %450 = vmatpush.msra.mxu0 0.0
        %451 = vmatpush.msra.mxu0 0.0
        %452 = vmatpush.msra.mxu0 0.0
        %453 = vmatpush.msra.mxu0 0.0
        %454 = vmatpush.msra.mxu0 0.0
        %455 = vmatpush.msra.mxu0 0.0
        %456 = vmatpush.msra.mxu0 %v262
        %457 = vmatpush.msra.mxu0 %v261
        %458 = vmatmul.f32.gmra.mxu0 %v440
        %v459 = vpop.f32.mrf.mxu0
        %v460 = vadd.f32 0.0, %v459
        %461 = vdwg.mxu0
        %v463 = vsel %vm390, %v432, 0
        %465 = vmatpush.msra.mxu0 0.0
        %466 = vmatpush.msra.mxu0 0.0
        %467 = vmatpush.msra.mxu0 0.0
        %468 = vmatpush.msra.mxu0 0.0
        %469 = vmatpush.msra.mxu0 0.0
        %470 = vmatpush.msra.mxu0 0.0
        %471 = vmatpush.msra.mxu0 0.0
        %472 = vmatpush.msra.mxu0 0.0
        %473 = vmatpush.msra.mxu0 0.0
        %474 = vmatpush.msra.mxu0 0.0
        %475 = vmatpush.msra.mxu0 0.0
        %476 = vmatpush.msra.mxu0 0.0
        %477 = vmatpush.msra.mxu0 0.0
        %478 = vmatpush.msra.mxu0 0.0
        %479 = vmatpush.msra.mxu0 %v264
        %480 = vmatpush.msra.mxu0 %v263
        %481 = vmatmul.f32.gmra.mxu0 %v463
        %v482 = vpop.f32.mrf.mxu0
        %v483 = vadd.f32 0.0, %v482
        %484 = vdwg.mxu0
        %v486 = vsel %vm390, %v433, 0
        %488 = vmatpush.msra.mxu0 0.0
        %489 = vmatpush.msra.mxu0 0.0
        %490 = vmatpush.msra.mxu0 0.0
        %491 = vmatpush.msra.mxu0 0.0
        %492 = vmatpush.msra.mxu0 0.0
        %493 = vmatpush.msra.mxu0 0.0
        %494 = vmatpush.msra.mxu0 0.0
        %495 = vmatpush.msra.mxu0 0.0
        %496 = vmatpush.msra.mxu0 0.0
        %497 = vmatpush.msra.mxu0 0.0
        %498 = vmatpush.msra.mxu0 0.0
        %499 = vmatpush.msra.mxu0 0.0
        %500 = vmatpush.msra.mxu0 0.0
        %501 = vmatpush.msra.mxu0 0.0
        %502 = vmatpush.msra.mxu0 %v266
        %503 = vmatpush.msra.mxu0 %v265
        %504 = vmatmul.f32.gmra.mxu0 %v486
        %v505 = vpop.f32.mrf.mxu0
        %v506 = vadd.f32 0.0, %v505
        %507 = vdwg.mxu0
        %v509 = vsel %vm390, %v434, 0
        %511 = vmatpush.msra.mxu0 0.0
        %512 = vmatpush.msra.mxu0 0.0
        %513 = vmatpush.msra.mxu0 0.0
        %514 = vmatpush.msra.mxu0 0.0
        %515 = vmatpush.msra.mxu0 0.0
        %516 = vmatpush.msra.mxu0 0.0
        %517 = vmatpush.msra.mxu0 0.0
        %518 = vmatpush.msra.mxu0 0.0
        %519 = vmatpush.msra.mxu0 0.0
        %520 = vmatpush.msra.mxu0 0.0
        %521 = vmatpush.msra.mxu0 0.0
        %522 = vmatpush.msra.mxu0 0.0
        %523 = vmatpush.msra.mxu0 0.0
        %524 = vmatpush.msra.mxu0 0.0
        %525 = vmatpush.msra.mxu0 %v268
        %526 = vmatpush.msra.mxu0 %v267
        %527 = vmatmul.f32.gmra.mxu0 %v509
        %v528 = vpop.f32.mrf.mxu0
        %v529 = vadd.f32 0.0, %v528
        %530 = vdwg.mxu0
        %531 = vst.msk [vmem:[%s248] sm:$0xff] %vm269, %v460
        %532 = vst.msk [vmem:[%s248 + $0x8] sm:$0xff] %vm269, %v483
        %533 = vst.msk [vmem:[%s248 + $0x10] sm:$0xff] %vm269, %v506
        %534 = vst.msk [vmem:[%s248 + $0x18] sm:$0xff] %vm269, %v529
        %p535 = scmp.lt.s32.totalorder %s19, 1
        %s536 = scalar_select %p535, %s19, 1
        %s537 = smul.addr %s536, 4
        %s538 = smul.addr %s537, 8
        %s539 = scalar_lea.vmem %s3, %s538
        %s540 = sand.u32 %s131, 1
        %s541 = scalar_lea.sflag [#allocation3], %s540
        %s542 = sand.u32 %s131, 1
        %s543 = smul.addr %s542, 32
        %s544 = scalar_lea.vmem [#allocation2], %s543
        // Predicated region
        $region33: #{decoder_layer.13} parent=31 // pred_check
          %p545 = pneg %p115
        $region34: #{decoder_layer.13} parent=31 // pred_check_branch
          %547 = sbr.rel (%p545) target = $region36
        $region35: #{decoder_layer.13} parent=31 // pred_region
          _
        $region36: #{decoder_layer.13} parent=31 // pred_fallthru
          _
        // Predicated region
        $region37: #{decoder_layer.13} parent=31 // pred_check
          %p548 = pneg %p141
        $region38: #{decoder_layer.13} parent=31 // pred_check_branch
          %550 = sbr.rel (%p548) target = $region40
        $region39: #{decoder_layer.13} parent=31 // pred_region
          %552 = vsyncadd %s541, 0
          %s553 = smul.addr %s19, 4
          %s554 = smul.addr %s553, 8
          %s555 = scalar_lea.hbm %s4, %s554
          %s556 = sshll.u32 %s544, 4
          %s557 = int_to_ptr.vmem [resolvable:$true] %s556
          %s558 = sshll.u32 %s555, 4
          %s559 = int_to_ptr.hbm [resolvable:$true] %s558
          %564 = dma.vmem_to_hbm [thread:$0]  %s557, 512, %s559, %s541, 128, 128, 8
        $region40: #{decoder_layer.13} parent=31 // pred_fallthru
          _
      $region32: #{decoder_layer.13} parent=5 // pred_fallthru
        _
      %p565 = scmp.le.s32.totalorder 2, %s14
      // Predicated region
      $region41: #{decoder_layer.13} parent=5 // pred_check
        %p566 = pneg %p565
      $region42: #{decoder_layer.13} parent=5 // pred_check_branch
        %568 = sbr.rel (%p566) target = $region44
      $region43: #{decoder_layer.13} parent=5 // pred_region
        %s569 = ssub.s32 %s14, 2
        // Predicated region
        $region45: #{decoder_layer.13} parent=43 // pred_check
          %p570 = pneg %p121
        $region46: #{decoder_layer.13} parent=43 // pred_check_branch
          %572 = sbr.rel (%p570) target = $region48
        $region47: #{decoder_layer.13} parent=43 // pred_region
          %p573 = scmp.lt.s32.totalorder %s20, 1
          %s574 = scalar_select %p573, %s20, 1
          %s575 = smul.addr %s574, 4
          %s576 = smul.addr %s575, 8
          %s577 = scalar_lea.vmem %s3, %s576
        $region48: #{decoder_layer.13} parent=43 // pred_fallthru
          _
        // Predicated region
        $region49: #{decoder_layer.13} parent=43 // pred_check
          %p578 = pneg %p147
        $region50: #{decoder_layer.13} parent=43 // pred_check_branch
          %580 = sbr.rel (%p578) target = $region52
        $region51: #{decoder_layer.13} parent=43 // pred_region
          %s581 = sand.u32 %s132, 1
          %s582 = scalar_lea.sflag [#allocation3], %s581
          %s583 = sand.u32 %s132, 1
          %s584 = smul.addr %s583, 32
          %s585 = scalar_lea.vmem [#allocation2], %s584
          %587 = dma.done %s582, 512
        $region52: #{decoder_layer.13} parent=43 // pred_fallthru
          _
      $region44: #{decoder_layer.13} parent=5 // pred_fallthru
        _
    $region6: #{decoder_layer.13} parent=1 // loop_footer
      %s18 = sadd.s32 1, %s14
    $region7: #{decoder_layer.13} parent=1 // loop_footer_branch
      %13 = sbr.rel target = $region3
    $region8: #{decoder_layer.13} parent=1 // loop_exit
      _
    %588 = vsyncpa [#allocation3], 1
    %s589 = scalar_lea.sflag [#allocation3], 1
    %590 = vsyncpa %s589, 1

// kernel: decoder_layer.15
$region0: #{decoder_layer.15}
  #allocation0 [shape = 'u32[]', space=smem, size = 0x4, offset = 0x4, fixed_abs, tag = 'smem constant byte address 0x4 - core index']
  #allocation1 [shape = 'u32[72,128]{1,0:T(1,128)}', space=vmem, size = 0x9000, scoped, tag = 'internal scratch']
  #allocation2 [shape = 'f32[8,32]{1,0:T(8,128)}', space=vmem, size = 0x1000, scoped, tag = 'scratch operand']
  %s0 = inlined_call_operand.vmem [shape: f32[16,32], index: 0, kind: input, shape index: {}]
  %s1 = inlined_call_operand.vmem [shape: f32[32,64], index: 1, kind: input, shape index: {}]
  %s2 = inlined_call_operand.vmem [shape: f32[1,64], index: 2, kind: input, shape index: {}]
  %s3 = inlined_call_operand.vmem [shape: f32[64,32], index: 3, kind: input, shape index: {}]
  %s4 = inlined_call_operand.vmem [shape: f32[1,32], index: 4, kind: input, shape index: {}]
  %s5 = inlined_call_operand.vmem [shape: f32[1,32], index: 5, kind: input, shape index: {}]
  %s6 = inlined_call_operand.vmem [shape: f32[1,32], index: 6, kind: input, shape index: {}]
  %s7 = inlined_call_operand.hbm [shape: f32[16,32], index: 7, kind: output, shape index: {}]
  %s8 = sld [smem:[#allocation0]]
  $region69: #{decoder_layer.15} parent=0
    _
  %s10 = ssub.s32 1, %s8
  %s11 = scalar_select 0, %s10, %s8
  $region1: #{decoder_layer.15} parent=0
    #allocation3 [shape = 'u8[8192]{0}', space=vmem, size = 0x2000, scoped, tag = 'output window, operand 0']
    #allocation4 [shape = 's32[2]{0}', space=sflag, size = 0x8, scoped, tag = 'scoped memory for decoder_layer.15']
    %12 = vsyncpa [#allocation4], 0
    %s13 = scalar_lea.sflag [#allocation4], 1
    %14 = vsyncpa %s13, 0
    loop: start=0, step=1, limit=4
    $region2: #{decoder_layer.15} parent=1 // loop_pre_header
      _
    $region3: #{decoder_layer.15} parent=1 // loop_header
      %s16 = sphi 0, %s20
      %p17 = scmp.ge.s32.totalorder %s16, 4
      %s23 = sphi 0, %s35
      %s24 = sphi 0, %s31
      %s25 = sphi 0, %s23
      %s26 = sphi 0, %s24
      %s27 = sphi 0, %s25
      %s28 = sphi 0, %s26
      %s38 = sphi 0, %s40
      %s41 = sphi 0, %s38
      %s42 = sphi 0, %s41
      %s58 = sphi 0, %s42
      %s64 = sphi 0, %s66
      %s67 = sphi 0, %s64
      %s68 = sphi 0, %s67
      %s84 = sphi 0, %s68
      %s90 = sphi 0, %s92
      %s93 = sphi 0, %s90
      %s94 = sphi 0, %s93
      %s110 = sphi 0, %s94
      %s116 = sphi 0, %s118
      %s119 = sphi 0, %s116
      %s120 = sphi 0, %s119
      %s136 = sphi 0, %s120
      %s140 = sphi 0, %s140
      %s142 = sphi 0, %s140
      %s143 = sphi 0, %s142
      %s157 = sphi 0, %s143
      %s161 = sphi 0, %s161
      %s163 = sphi 0, %s161
      %s164 = sphi 0, %s163
      %s178 = sphi 0, %s164
      %s182 = sphi 0, %s182
      %s184 = sphi 0, %s182
      %s185 = sphi 0, %s184
      %s199 = sphi 0, %s185
      %s205 = sphi 0, %s207
      %s208 = sphi 0, %s205
      %s209 = sphi 0, %s208
      %s225 = sphi 0, %s209
    $region4: #{decoder_layer.15} parent=1 // loop_header_branch
      %19 = sbr.rel (%p17) target = $region8
    $region5: #{decoder_layer.15} parent=1 // loop_body
      %s21 = ssub.s32 %s16, 1
      %s22 = ssub.s32 %s16, 2
      %s29 = sadd.s32 1, %s24
      %p30 = scmp.ge.s32.totalorder %s29, 1
      %s31 = scalar_select %p30, 0, %s29
      %s32 = sadd.s32 1, %s23
      %s33 = scalar_select %p30, %s32, %s23
      %p34 = scmp.ge.s32.totalorder %s33, 2
      %s35 = scalar_select %p34, 0, %s33
      %s36 = ssub.s32 %s23, %s35
      %p37 = scmp.eq.s32.totalorder %s36, 0
      %s39 = sadd.s32 %s38, 1
      %s40 = scalar_select %p37, %s38, %s39
      %p43 = pneg %p37
      %p44 = scmp.eq.s32.totalorder %s16, 1
      %p45 = por %p43, %p44
      %p46 = scmp.ne.s32.totalorder %s38, %s41
      %p47 = scmp.eq.s32.totalorder %s16, 0
      %p48 = por %p46, %p47
      %p49 = scmp.ne.s32.totalorder %s38, %s41
      %p50 = scmp.eq.s32.totalorder %s21, 1
      %p51 = por %p49, %p50
      %p52 = scmp.ne.s32.totalorder %s41, %s42
      %p53 = scmp.eq.s32.totalorder %s21, 0
      %p54 = por %p52, %p53
      %p55 = scmp.ne.s32.totalorder %s41, %s42
      %p56 = scmp.eq.s32.totalorder %s22, 1
      %p57 = por %p55, %p56
      %p59 = scmp.ne.s32.totalorder %s42, %s58
      %p60 = scmp.eq.s32.totalorder %s22, 0
      %p61 = por %p59, %p60
      %s62 = ssub.s32 %s24, %s31
      %p63 = scmp.eq.s32.totalorder %s62, 0
      %s65 = sadd.s32 %s64, 1
      %s66 = scalar_select %p63, %s64, %s65
      %p69 = pneg %p63
      %p70 = scmp.eq.s32.totalorder %s16, 1
      %p71 = por %p69, %p70
      %p72 = scmp.ne.s32.totalorder %s64, %s67
      %p73 = scmp.eq.s32.totalorder %s16, 0
      %p74 = por %p72, %p73
      %p75 = scmp.ne.s32.totalorder %s64, %s67
      %p76 = scmp.eq.s32.totalorder %s21, 1
      %p77 = por %p75, %p76
      %p78 = scmp.ne.s32.totalorder %s67, %s68
      %p79 = scmp.eq.s32.totalorder %s21, 0
      %p80 = por %p78, %p79
      %p81 = scmp.ne.s32.totalorder %s67, %s68
      %p82 = scmp.eq.s32.totalorder %s22, 1
      %p83 = por %p81, %p82
      %p85 = scmp.ne.s32.totalorder %s68, %s84
      %p86 = scmp.eq.s32.totalorder %s22, 0
      %p87 = por %p85, %p86
      %s88 = ssub.s32 %s24, %s31
      %p89 = scmp.eq.s32.totalorder %s88, 0
      %s91 = sadd.s32 %s90, 1
      %s92 = scalar_select %p89, %s90, %s91
      %p95 = pneg %p89
      %p96 = scmp.eq.s32.totalorder %s16, 1
      %p97 = por %p95, %p96
      %p98 = scmp.ne.s32.totalorder %s90, %s93
      %p99 = scmp.eq.s32.totalorder %s16, 0
      %p100 = por %p98, %p99
      %p101 = scmp.ne.s32.totalorder %s90, %s93
      %p102 = scmp.eq.s32.totalorder %s21, 1
      %p103 = por %p101, %p102
      %p104 = scmp.ne.s32.totalorder %s93, %s94
      %p105 = scmp.eq.s32.totalorder %s21, 0
      %p106 = por %p104, %p105
      %p107 = scmp.ne.s32.totalorder %s93, %s94
      %p108 = scmp.eq.s32.totalorder %s22, 1
      %p109 = por %p107, %p108
      %p111 = scmp.ne.s32.totalorder %s94, %s110
      %p112 = scmp.eq.s32.totalorder %s22, 0
      %p113 = por %p111, %p112
      %s114 = ssub.s32 %s24, %s31
      %p115 = scmp.eq.s32.totalorder %s114, 0
      %s117 = sadd.s32 %s116, 1
      %s118 = scalar_select %p115, %s116, %s117
      %p121 = pneg %p115
      %p122 = scmp.eq.s32.totalorder %s16, 1
      %p123 = por %p121, %p122
      %p124 = scmp.ne.s32.totalorder %s116, %s119
      %p125 = scmp.eq.s32.totalorder %s16, 0
      %p126 = por %p124, %p125
      %p127 = scmp.ne.s32.totalorder %s116, %s119
      %p128 = scmp.eq.s32.totalorder %s21, 1
      %p129 = por %p127, %p128
      %p130 = scmp.ne.s32.totalorder %s119, %s120
      %p131 = scmp.eq.s32.totalorder %s21, 0
      %p132 = por %p130, %p131
      %p133 = scmp.ne.s32.totalorder %s119, %s120
      %p134 = scmp.eq.s32.totalorder %s22, 1
      %p135 = por %p133, %p134
      %p137 = scmp.ne.s32.totalorder %s120, %s136
      %p138 = scmp.eq.s32.totalorder %s22, 0
      %p139 = por %p137, %p138
      %s141 = sadd.s32 %s140, 1
      %p144 = scmp.eq.s32.totalorder %s16, 1
      %p145 = scmp.ne.s32.totalorder %s140, %s142
      %p146 = scmp.eq.s32.totalorder %s16, 0
      %p147 = por %p145, %p146
      %p148 = scmp.ne.s32.totalorder %s140, %s142
      %p149 = scmp.eq.s32.totalorder %s21, 1
      %p150 = por %p148, %p149
      %p151 = scmp.ne.s32.totalorder %s142, %s143
      %p152 = scmp.eq.s32.totalorder %s21, 0
      %p153 = por %p151, %p152
      %p154 = scmp.ne.s32.totalorder %s142, %s143
      %p155 = scmp.eq.s32.totalorder %s22, 1
      %p156 = por %p154, %p155
      %p158 = scmp.ne.s32.totalorder %s143, %s157
      %p159 = scmp.eq.s32.totalorder %s22, 0
      %p160 = por %p158, %p159
      %s162 = sadd.s32 %s161, 1
      %p165 = scmp.eq.s32.totalorder %s16, 1
      %p166 = scmp.ne.s32.totalorder %s161, %s163
      %p167 = scmp.eq.s32.totalorder %s16, 0
      %p168 = por %p166, %p167
      %p169 = scmp.ne.s32.totalorder %s161, %s163
      %p170 = scmp.eq.s32.totalorder %s21, 1
      %p171 = por %p169, %p170
      %p172 = scmp.ne.s32.totalorder %s163, %s164
      %p173 = scmp.eq.s32.totalorder %s21, 0
      %p174 = por %p172, %p173
      %p175 = scmp.ne.s32.totalorder %s163, %s164
      %p176 = scmp.eq.s32.totalorder %s22, 1
      %p177 = por %p175, %p176
      %p179 = scmp.ne.s32.totalorder %s164, %s178
      %p180 = scmp.eq.s32.totalorder %s22, 0
      %p181 = por %p179, %p180
      %s183 = sadd.s32 %s182, 1
      %p186 = scmp.eq.s32.totalorder %s16, 1
      %p187 = scmp.ne.s32.totalorder %s182, %s184
      %p188 = scmp.eq.s32.totalorder %s16, 0
      %p189 = por %p187, %p188
      %p190 = scmp.ne.s32.totalorder %s182, %s184
      %p191 = scmp.eq.s32.totalorder %s21, 1
      %p192 = por %p190, %p191
      %p193 = scmp.ne.s32.totalorder %s184, %s185
      %p194 = scmp.eq.s32.totalorder %s21, 0
      %p195 = por %p193, %p194
      %p196 = scmp.ne.s32.totalorder %s184, %s185
      %p197 = scmp.eq.s32.totalorder %s22, 1
      %p198 = por %p196, %p197
      %p200 = scmp.ne.s32.totalorder %s185, %s199
      %p201 = scmp.eq.s32.totalorder %s22, 0
      %p202 = por %p200, %p201
      %s203 = ssub.s32 %s23, %s35
      %p204 = scmp.eq.s32.totalorder %s203, 0
      %s206 = sadd.s32 %s205, 1
      %s207 = scalar_select %p204, %s205, %s206
      %p210 = pneg %p204
      %p211 = scmp.eq.s32.totalorder %s16, 1
      %p212 = por %p210, %p211
      %p213 = scmp.ne.s32.totalorder %s205, %s208
      %p214 = scmp.eq.s32.totalorder %s16, 0
      %p215 = por %p213, %p214
      %p216 = scmp.ne.s32.totalorder %s205, %s208
      %p217 = scmp.eq.s32.totalorder %s21, 1
      %p218 = por %p216, %p217
      %p219 = scmp.ne.s32.totalorder %s208, %s209
      %p220 = scmp.eq.s32.totalorder %s21, 0
      %p221 = por %p219, %p220
      %p222 = scmp.ne.s32.totalorder %s208, %s209
      %p223 = scmp.eq.s32.totalorder %s22, 1
      %p224 = por %p222, %p223
      %p226 = scmp.ne.s32.totalorder %s209, %s225
      %p227 = scmp.eq.s32.totalorder %s22, 0
      %p228 = por %p226, %p227
      %p229 = scmp.le.s32.totalorder 1, %s16
      %p230 = scmp.lt.s32.totalorder %s16, 3
      %p231 = pnand %p229, %p230
      %p232 = pneg %p231
      // Predicated region
      $region9: #{decoder_layer.15} parent=5 // pred_check
        _
      $region10: #{decoder_layer.15} parent=5 // pred_check_branch
        %234 = sbr.rel (%p231) target = $region12
      $region11: #{decoder_layer.15} parent=5 // pred_region
        %s235 = ssub.s32 %s16, 1
        // Predicated region
        $region13: #{decoder_layer.15} parent=11 // pred_check
          %p236 = pneg %p80
        $region14: #{decoder_layer.15} parent=11 // pred_check_branch
          %238 = sbr.rel (%p236) target = $region16
        $region15: #{decoder_layer.15} parent=11 // pred_region
          %p239 = scmp.lt.s32.totalorder %s26, 0
          %s240 = scalar_select %p239, %s26, 0
          %s241 = smul.addr %s240, 8
          %s242 = scalar_lea.vmem %s1, %s241
        $region16: #{decoder_layer.15} parent=11 // pred_fallthru
          _
        // Predicated region
        $region17: #{decoder_layer.15} parent=11 // pred_check
          %p243 = pneg %p106
        $region18: #{decoder_layer.15} parent=11 // pred_check_branch
          %245 = sbr.rel (%p243) target = $region20
        $region19: #{decoder_layer.15} parent=11 // pred_region
          %p246 = scmp.lt.s32.totalorder %s26, 0
          %s247 = scalar_select %p246, %s26, 0
          %s248 = scalar_lea.vmem %s2, %s247
        $region20: #{decoder_layer.15} parent=11 // pred_fallthru
          _
        // Predicated region
        $region21: #{decoder_layer.15} parent=11 // pred_check
          %p249 = pneg %p132
        $region22: #{decoder_layer.15} parent=11 // pred_check_branch
          %251 = sbr.rel (%p249) target = $region24
        $region23: #{decoder_layer.15} parent=11 // pred_region
          %s252 = smul.u32 8, %s26
          %p253 = scmp.lt.s32.totalorder %s252, 7
          %s254 = scalar_select %p253, %s252, 7
          %s255 = smul.addr %s254, 8
          %s256 = scalar_lea.vmem %s3, %s255
          %s257 = smul.u32 8, %s26
        $region24: #{decoder_layer.15} parent=11 // pred_fallthru
          _
        // Predicated region
        $region25: #{decoder_layer.15} parent=11 // pred_check
          %p258 = pneg %p153
        $region26: #{decoder_layer.15} parent=11 // pred_check_branch
          %260 = sbr.rel (%p258) target = $region28
        $region27: #{decoder_layer.15} parent=11 // pred_region
          _
        $region28: #{decoder_layer.15} parent=11 // pred_fallthru
          _
        // Predicated region
        $region29: #{decoder_layer.15} parent=11 // pred_check
          %p261 = pneg %p174
        $region30: #{decoder_layer.15} parent=11 // pred_check_branch
          %263 = sbr.rel (%p261) target = $region32
        $region31: #{decoder_layer.15} parent=11 // pred_region
          _
        $region32: #{decoder_layer.15} parent=11 // pred_fallthru
          _
        // Predicated region
        $region33: #{decoder_layer.15} parent=11 // pred_check
          %p264 = pneg %p195
        $region34: #{decoder_layer.15} parent=11 // pred_check_branch
          %266 = sbr.rel (%p264) target = $region36
        $region35: #{decoder_layer.15} parent=11 // pred_region
          _
        $region36: #{decoder_layer.15} parent=11 // pred_fallthru
          _
      $region12: #{decoder_layer.15} parent=5 // pred_fallthru
        _
      %p267 = scmp.lt.s32.totalorder %s16, 2
      // Predicated region
      $region37: #{decoder_layer.15} parent=5 // pred_check
        %p268 = pneg %p267
      $region38: #{decoder_layer.15} parent=5 // pred_check_branch
        %270 = sbr.rel (%p268) target = $region40
      $region39: #{decoder_layer.15} parent=5 // pred_region
        // Predicated region
        $region41: #{decoder_layer.15} parent=39 // pred_check
          %p271 = pneg %p48
        $region42: #{decoder_layer.15} parent=39 // pred_check_branch
          %273 = sbr.rel (%p271) target = $region44
        $region43: #{decoder_layer.15} parent=39 // pred_region
          %p274 = scmp.lt.s32.totalorder %s23, 1
          %s275 = scalar_select %p274, %s23, 1
          %s276 = smul.addr %s275, 8
          %s277 = scalar_lea.vmem %s0, %s276
        $region44: #{decoder_layer.15} parent=39 // pred_fallthru
          _
      $region40: #{decoder_layer.15} parent=5 // pred_fallthru
        _
      %p278 = scmp.le.s32.totalorder 1, %s16
      %p279 = scmp.lt.s32.totalorder %s16, 3
      %p280 = pnand %p278, %p279
      %p281 = pneg %p280
      // Predicated region
      $region45: #{decoder_layer.15} parent=5 // pred_check
        _
      $region46: #{decoder_layer.15} parent=5 // pred_check_branch
        %283 = sbr.rel (%p280) target = $region48
      $region47: #{decoder_layer.15} parent=5 // pred_region
        %s284 = ssub.s32 %s16, 1
        %p285 = scmp.lt.s32.totalorder %s25, 1
        %s286 = scalar_select %p285, %s25, 1
        %s287 = smul.addr %s286, 8
        %s288 = scalar_lea.vmem %s0, %s287
        %p289 = pneg %p54
        %p290 = pneg %p51
        %p291 = scmp.lt.s32.totalorder %s26, 0
        %s292 = scalar_select %p291, %s26, 0
        %s293 = smul.addr %s292, 8
        %s294 = scalar_lea.vmem %s1, %s293
        %p295 = pneg %p80
        %p296 = pneg %p77
        %p297 = scmp.lt.s32.totalorder %s26, 0
        %s298 = scalar_select %p297, %s26, 0
        %s299 = scalar_lea.vmem %s2, %s298
        %p300 = pneg %p106
        %p301 = pneg %p103
        %s302 = smul.u32 8, %s26
        %p303 = scmp.lt.s32.totalorder %s302, 7
        %s304 = scalar_select %p303, %s302, 7
        %s305 = smul.addr %s304, 8
        %s306 = scalar_lea.vmem %s3, %s305
        %p307 = pneg %p132
        %p308 = pneg %p129
        %p309 = pneg %p153
        %p310 = pneg %p150
        %p311 = pneg %p174
        %p312 = pneg %p171
        %p313 = pneg %p195
        %p314 = pneg %p192
        %p315 = pneg %p221
        %p316 = pneg %p218
        %s317 = sand.u32 %s208, 1
        %s318 = scalar_lea.sflag [#allocation4], %s317
        %s319 = sand.u32 %s208, 1
        %s320 = smul.addr %s319, 8
        %s321 = scalar_lea.vmem [#allocation3], %s320
        %p322 = scmp.lt.s32.totalorder %s25, 1
        %s323 = scalar_select %p322, %s25, 1
        %s324 = smul.addr %s323, 8
        %s325 = scalar_lea.vmem %s0, %s324
        %p326 = scmp.lt.s32.totalorder %s26, 0
        %s327 = scalar_select %p326, %s26, 0
        %s328 = smul.addr %s327, 8
        %s329 = scalar_lea.vmem %s1, %s328
        %p330 = scmp.lt.s32.totalorder %s26, 0
        %s331 = scalar_select %p330, %s26, 0
        %s332 = scalar_lea.vmem %s2, %s331
        %s333 = smul.u32 8, %s26
        %p334 = scmp.lt.s32.totalorder %s333, 7
        %s335 = scalar_select %p334, %s333, 7
        %s336 = smul.addr %s335, 8
        %s337 = scalar_lea.vmem %s3, %s336
        %s338 = smul.u32 8, %s26
        %p339 = scmp.eq.s32.totalorder %s26, 0
        // Predicated region
        $region49: #{decoder_layer.15} parent=47 // pred_check
          %p340 = pneg %p339
        $region50: #{decoder_layer.15} parent=47 // pred_check_branch
          %342 = sbr.rel (%p340) target = $region52
        $region51: #{decoder_layer.15} parent=47 // pred_region
          %vm343 = vcmask 261120
          %344 = vst.msk [vmem:[#allocation2] sm:$0xff] %vm343, 0.0
        $region52: #{decoder_layer.15} parent=47 // pred_fallthru
          _
        %v345 = vld [vmem:[%s325] sm:$0xff]
        %v346 = vld [vmem:[%s329] sm:$0xff]
        %v347 = vld [vmem:[%s329 + $0x8] sm:$0xff]
        %v348 = vld [vmem:[%s329 + $0x10] sm:$0xff]
        %v349 = vld [vmem:[%s329 + $0x18] sm:$0xff]
        %v350 = vld [vmem:[%s332] sm:$0x1]
        %v352 = vperm.slane %v350, 0
        %vm354 = vcmask 261120
        %v356 = vsel %vm354, %v345, 0
        %358 = vmatpush.msra.mxu0 0.0
        %359 = vmatpush.msra.mxu0 0.0
        %360 = vmatpush.msra.mxu0 0.0
        %361 = vmatpush.msra.mxu0 0.0
        %362 = vmatpush.msra.mxu0 0.0
        %363 = vmatpush.msra.mxu0 0.0
        %364 = vmatpush.msra.mxu0 0.0
        %365 = vmatpush.msra.mxu0 0.0
        %366 = vmatpush.msra.mxu0 0.0
        %367 = vmatpush.msra.mxu0 0.0
        %368 = vmatpush.msra.mxu0 0.0
        %369 = vmatpush.msra.mxu0 0.0
        %370 = vmatpush.msra.mxu0 %v349
        %371 = vmatpush.msra.mxu0 %v348
        %372 = vmatpush.msra.mxu0 %v347
        %373 = vmatpush.msra.mxu0 %v346
        %374 = vmatmul.f32.gmra.mxu0 %v356
        %v375 = vpop.f32.mrf.mxu0
        %v376 = vadd.f32 %v352, %v375
        %377 = vdwg.mxu0
        %v378 = vmax.f32 %v376, 0.0
        %v379 = vld [vmem:[#allocation2] sm:$0xff]
        %v380 = vld [vmem:[%s337] sm:$0xff]
        %v381 = vld [vmem:[%s337 + $0x8] sm:$0xff]
        %v382 = vld [vmem:[%s337 + $0x10] sm:$0xff]
        %v383 = vld [vmem:[%s337 + $0x18] sm:$0xff]
        %v384 = vld [vmem:[%s337 + $0x20] sm:$0xff]
        %v385 = vld [vmem:[%s337 + $0x28] sm:$0xff]
        %v386 = vld [vmem:[%s337 + $0x30] sm:$0xff]
        %v387 = vld [vmem:[%s337 + $0x38] sm:$0xff]
        %vm388 = vcmask 523264
        %v390 = vsel %vm388, %v378, 0
        %392 = vmatpush.msra.mxu0 0.0
        %393 = vmatpush.msra.mxu0 0.0
        %394 = vmatpush.msra.mxu0 0.0
        %395 = vmatpush.msra.mxu0 0.0
        %396 = vmatpush.msra.mxu0 0.0
        %397 = vmatpush.msra.mxu0 0.0
        %398 = vmatpush.msra.mxu0 0.0
        %399 = vmatpush.msra.mxu0 0.0
        %400 = vmatpush.msra.mxu0 %v387
        %401 = vmatpush.msra.mxu0 %v386
        %402 = vmatpush.msra.mxu0 %v385
        %403 = vmatpush.msra.mxu0 %v384
        %404 = vmatpush.msra.mxu0 %v383
        %405 = vmatpush.msra.mxu0 %v382
        %406 = vmatpush.msra.mxu0 %v381
        %407 = vmatpush.msra.mxu0 %v380
        %408 = vmatmul.f32.gmra.mxu0 %v390
        %v409 = vpop.f32.mrf.mxu0
        %v410 = vadd.f32 0.0, %v409
        %411 = vdwg.mxu0
        %v412 = vadd.f32 %v379, %v410
        %413 = vst.msk [vmem:[#allocation2] sm:$0xff] %vm354, %v412
        // Predicated region
        $region53: #{decoder_layer.15} parent=47 // pred_check
          %p414 = pneg %p339
        $region54: #{decoder_layer.15} parent=47 // pred_check_branch
          %416 = sbr.rel (%p414) target = $region56
        $region55: #{decoder_layer.15} parent=47 // pred_region
          %v417 = vld [vmem:[%s325] sm:$0xff]
          %v418 = vld [vmem:[#allocation2] sm:$0xff]
          %v419 = vadd.f32 %v417, %v418
          %v420 = vld [vmem:[%s4] sm:$0x1]
          %v422 = vperm.slane %v420, 0
          %v424 = vadd.f32 %v419, %v422
          %v425 = vsel %vm354, %v424, 0.0
          %426 = vadd.xlane.f32.xlu0 %v425
          %v427 = vpop.xlane.xlu0 %426
          %v428 = vrcp.pop 32.0
          %v429 = vmul.f32 32.0, %v428
          %v430 = vsub.f32 1.0, %v429
          %v431 = vmul.f32 %v428, %v430
          %v432 = vadd.f32 %v428, %v431
          %vm433 = vweird.f32 %v428
          %v434 = vsel %vm433, %v428, %v432
          %v435 = vmul.f32 %v427, %v434
          %v436 = vsub.f32 %v424, %v435
          %v437 = vmul.f32 %v436, %v436
          %v438 = vsel %vm354, %v437, 0.0
          %439 = vadd.xlane.f32.xlu0 %v438
          %v440 = vpop.xlane.xlu0 %439
          %v441 = vmul.f32 %v440, %v434
          %v442 = vadd.f32 %v441, 1e-12
          %v443 = vrsqrt.pop %v442
          %v444 = vmul.f32 %v443, %v442
          %v445 = vmul.f32 %v444, %v443
          %v446 = vmul.f32 0.5, %v445
          %v447 = vsub.f32 1.5, %v446
          %v448 = vmul.f32 %v443, %v447
          %vm449 = vweird.f32 %v442
          %vm450 = vweird.f32 %v443
          %vm451 = vmor %vm449, %vm450
          %v452 = vsel %vm451, %v443, %v448
          %v453 = vld [vmem:[%s5] sm:$0x1]
          %v454 = vmul.f32 %v436, %v452
          %v456 = vperm.slane %v453, 0
          %v458 = vmul.f32 %v456, %v454
          %v459 = vld [vmem:[%s6] sm:$0x1]
          %v461 = vperm.slane %v459, 0
          %v463 = vadd.f32 %v458, %v461
          %464 = vst.msk [vmem:[%s321] sm:$0xff] %vm354, %v463
        $region56: #{decoder_layer.15} parent=47 // pred_fallthru
          _
        %s465 = sand.u32 %s208, 1
        %s466 = scalar_lea.sflag [#allocation4], %s465
        %s467 = sand.u32 %s208, 1
        %s468 = smul.addr %s467, 8
        %s469 = scalar_lea.vmem [#allocation3], %s468
        // Predicated region
        $region57: #{decoder_layer.15} parent=47 // pred_check
          %p470 = pneg %p218
        $region58: #{decoder_layer.15} parent=47 // pred_check_branch
          %472 = sbr.rel (%p470) target = $region60
        $region59: #{decoder_layer.15} parent=47 // pred_region
          %474 = vsyncadd %s466, 0
          %s475 = smul.addr %s25, 8
          %s476 = scalar_lea.hbm %s7, %s475
          %s478 = sshll.u32 %s469, 4
          %s479 = int_to_ptr.vmem [resolvable:$true] %s478
          %s480 = sshll.u32 %s476, 4
          %s481 = int_to_ptr.hbm [resolvable:$true] %s480
          %483 = dma.vmem_to_hbm [thread:$0]  %s479, 128, %s481, %s466
        $region60: #{decoder_layer.15} parent=47 // pred_fallthru
          _
      $region48: #{decoder_layer.15} parent=5 // pred_fallthru
        _
      %p484 = scmp.le.s32.totalorder 2, %s16
      // Predicated region
      $region61: #{decoder_layer.15} parent=5 // pred_check
        %p485 = pneg %p484
      $region62: #{decoder_layer.15} parent=5 // pred_check_branch
        %487 = sbr.rel (%p485) target = $region64
      $region63: #{decoder_layer.15} parent=5 // pred_region
        %s488 = ssub.s32 %s16, 2
        // Predicated region
        $region65: #{decoder_layer.15} parent=63 // pred_check
          %p489 = pneg %p224
        $region66: #{decoder_layer.15} parent=63 // pred_check_branch
          %491 = sbr.rel (%p489) target = $region68
        $region67: #{decoder_layer.15} parent=63 // pred_region
          %s492 = sand.u32 %s209, 1
          %s493 = scalar_lea.sflag [#allocation4], %s492
          %s494 = sand.u32 %s209, 1
          %s495 = smul.addr %s494, 8
          %s496 = scalar_lea.vmem [#allocation3], %s495
          %498 = dma.done %s493, 128
        $region68: #{decoder_layer.15} parent=63 // pred_fallthru
          _
      $region64: #{decoder_layer.15} parent=5 // pred_fallthru
        _
    $region6: #{decoder_layer.15} parent=1 // loop_footer
      %s20 = sadd.s32 1, %s16
    $region7: #{decoder_layer.15} parent=1 // loop_footer_branch
      %15 = sbr.rel target = $region3
    $region8: #{decoder_layer.15} parent=1 // loop_exit
      _
    %499 = vsyncpa [#allocation4], 1
    %s500 = scalar_lea.sflag [#allocation4], 1
    %501 = vsyncpa %s500, 1

</llo_original>
